<compile_context>
chip_gen: v7x
topology: tpu7x:2x2x1
jax: 0.10.0
libtpu: 0.0.40
codegen_flags: <defaults>
</compile_context>

<pallas_src>
import math
from functools import partial

import jax
import jax.numpy as jnp
from jax.experimental import pallas as pl
from jax.experimental.pallas import tpu as pltpu


# ------------------------------ fused kernel ------------------------------

def _cross_attn_kernel(x_ref, k_ref, v_ref, wq_ref, wo_ref, o_ref,
                       q_sc, m_sc, l_sc, acc_sc,
                       *, num_heads, num_kv_heads, head_dim, tq, tk, causal):
    qi = pl.program_id(1)
    ki = pl.program_id(2)
    nk = pl.num_programs(2)
    scale = 1.0 / math.sqrt(head_dim)

    # ---- init (first KV block for this (batch, q-tile)): fused Q projection
    @pl.when(ki == 0)
    def _init():
        # operands stay in their native dtype for the MXU; f32 accumulation
        q = jnp.dot(x_ref[0], wq_ref[...], preferred_element_type=jnp.float32)
        q_sc[...] = q.astype(q_sc.dtype)
        m_sc[...] = jnp.full(m_sc.shape, -jnp.inf, m_sc.dtype)
        l_sc[...] = jnp.zeros(l_sc.shape, l_sc.dtype)
        acc_sc[...] = jnp.zeros(acc_sc.shape, acc_sc.dtype)

    q_start = qi * tq
    k_start = ki * tk

    # ---- online-softmax update for this KV block
    def _update():
        k = k_ref[0]                                   # (tk, Hkv*dh)
        v = v_ref[0]
        if causal:
            row = q_start + jax.lax.broadcasted_iota(jnp.int32, (tq, tk), 0)
            col = k_start + jax.lax.broadcasted_iota(jnp.int32, (tq, tk), 1)
            neg = jnp.where(col > row, jnp.float32(-jnp.inf), jnp.float32(0.0))
        for h in range(num_heads):
            hk = h if num_kv_heads == num_heads else 0
            q_h = q_sc[:, h * head_dim:(h + 1) * head_dim]       # (tq, dh)
            k_h = k[:, hk * head_dim:(hk + 1) * head_dim]        # (tk, dh)
            v_h = v[:, hk * head_dim:(hk + 1) * head_dim]        # (tk, dh)
            s = jax.lax.dot_general(
                q_h, k_h, (((1,), (1,)), ((), ())),
                preferred_element_type=jnp.float32) * scale       # (tq, tk) f32
            if causal:
                s = s + neg
            m_prev = m_sc[h]                                      # (tq, 1)
            m_new = jnp.maximum(m_prev, jnp.max(s, axis=-1, keepdims=True))
            alpha = jnp.exp(m_prev - m_new)
            p = jnp.exp(s - m_new)
            l_sc[h] = alpha * l_sc[h] + jnp.sum(p, axis=-1, keepdims=True)
            acc_sc[h] = alpha * acc_sc[h] + jnp.dot(
                p.astype(v_h.dtype), v_h, preferred_element_type=jnp.float32)
            m_sc[h] = m_new

    if causal:
        # Skip KV blocks that lie entirely above the causal diagonal.
        @pl.when(k_start <= q_start + tq - 1)
        def _():
            _update()
    else:
        _update()

    # ---- finalize: normalise, merge heads, fused output projection
    @pl.when(ki == nk - 1)
    def _fin():
        cols = []
        for h in range(num_heads):
            inv_l = pl.reciprocal(l_sc[h], approx=True)           # (tq, 1)
            cols.append(acc_sc[h] * inv_l)                        # (tq, dh) f32
        attn = jnp.concatenate(cols, axis=-1)                     # (tq, D)
        out = jnp.dot(attn.astype(wo_ref.dtype), wo_ref[...],
                      preferred_element_type=jnp.float32)
        o_ref[0] = out.astype(o_ref.dtype)


# ------------------------------ wrapper -----------------------------------

def cross_attention(x, key, value, wq, wo, *, num_heads, num_kv_heads,
                    causal=True, block_q=256, block_k=256):
    """Fused q_proj -> causal attention -> out_proj (YOCO CrossAttention).

    x:            (B, S, D)
    key, value:   (B, Skv, num_kv_heads, head_dim)
    wq, wo:       (D, D) stored [in, out]  (PyTorch does x @ W.T -> same math)
    """
    B, S, D = x.shape
    Bk, Sk, Hkv, dh = key.shape
    assert Bk == B and value.shape == key.shape
    assert dh * num_heads == D
    assert Hkv == num_kv_heads and num_kv_heads in (num_heads, 1)

    # Reference flash_attn_func only masks when the query length > 1.
    causal = bool(causal) and S > 1

    dkv = Hkv * dh
    k2 = key.reshape(B, Sk, dkv)      # keep D (not dh) on the lane axis
    v2 = value.reshape(B, Sk, dkv)

    tq = min(block_q, S)
    tk = min(block_k, Sk)
    # TODO(synk): pad ragged sequence lengths instead of requiring divisibility.
    assert S % tq == 0 and Sk % tk == 0

    grid = (B, S // tq, Sk // tk)
    kernel = partial(_cross_attn_kernel,
                     num_heads=num_heads, num_kv_heads=Hkv, head_dim=dh,
                     tq=tq, tk=tk, causal=causal)

    return pl.pallas_call(
        kernel,
        out_shape=jax.ShapeDtypeStruct((B, S, D), x.dtype),
        grid_spec=pltpu.PrefetchScalarGridSpec(
            num_scalar_prefetch=0,
            grid=grid,
            in_specs=[
                pl.BlockSpec((1, tq, D), lambda b, qi, ki: (b, qi, 0)),     # x
                pl.BlockSpec((1, tk, dkv), lambda b, qi, ki: (b, ki, 0)),   # key
                pl.BlockSpec((1, tk, dkv), lambda b, qi, ki: (b, ki, 0)),   # value
                pl.BlockSpec((D, D), lambda b, qi, ki: (0, 0)),             # Wq
                pl.BlockSpec((D, D), lambda b, qi, ki: (0, 0)),             # Wo
            ],
            out_specs=pl.BlockSpec((1, tq, D), lambda b, qi, ki: (b, qi, 0)),
            scratch_shapes=[
                pltpu.VMEM((tq, D), x.dtype),                      # fused Q tile
                pltpu.VMEM((num_heads, tq, 1), jnp.float32),       # running max
                pltpu.VMEM((num_heads, tq, 1), jnp.float32),       # running sum
                pltpu.VMEM((num_heads, tq, dh), jnp.float32),      # un-normalised acc
            ],
        ),
        compiler_params=pltpu.CompilerParams(
            dimension_semantics=("parallel", "parallel", "arbitrary"),
            vmem_limit_bytes=32 * 1024 * 1024,   # sized for v7x's 64 MiB VMEM
        ),
    )(x, k2, v2, wq, wo)


# ------------------------------ reference ----------------------------------

def _reference(x, key, value, wq, wo, *, num_heads):
    """Plain-JAX transcription of the PyTorch CrossAttention forward."""
    B, S, D = x.shape
    dh = D // num_heads
    q = (x @ wq).reshape(B, S, num_heads, dh).transpose(0, 2, 1, 3)
    k = key.transpose(0, 2, 1, 3)
    v = value.transpose(0, 2, 1, 3)
    s = jnp.einsum("bhqd,bhkd->bhqk", q, k) / (dh ** 0.5)
    if S > 1:
        mask = jnp.triu(jnp.full((S, key.shape[1]), -jnp.inf, jnp.float32), k=1)
        s = s + mask
    p = jax.nn.softmax(s, axis=-1)
    o = jnp.einsum("bhqk,bhkd->bhqd", p, v)
    o = o.transpose(0, 2, 1, 3).reshape(B, S, D)
    return o @ wo


# ------------------------------ test ---------------------------------------

class Args:
    dim = 64
    n_attn_heads = 8
    n_attn_kv_heads = 8


def _init_linear(rng, fan_in, fan_out):
    bound = 1.0 / math.sqrt(fan_in)
    return jax.random.uniform(rng, (fan_in, fan_out), jnp.float32, -bound, bound)


if __name__ == "__main__":
    args = Args()
    B, S = 2, 8
    D = args.dim
    H = args.n_attn_heads
    Hkv = args.n_attn_kv_heads
    dh = D // H

    root = jax.random.PRNGKey(0)
    kx, kk, kv, kq, ko = jax.random.split(root, 5)
    x = jax.random.normal(kx, (B, S, D), jnp.float32)
    key = jax.random.normal(kk, (B, S, Hkv, dh), jnp.float32)
    value = jax.random.normal(kv, (B, S, Hkv, dh), jnp.float32)
    wq = _init_linear(kq, D, D)
    wo = _init_linear(ko, D, D)
    # rel_pos is accepted by the reference forward but never used -> omitted.

    out = cross_attention(x, key, value, wq, wo,
                          num_heads=H, num_kv_heads=Hkv, causal=True)
    out = jax.block_until_ready(out)

    assert out.shape == (B, S, D), out.shape
    assert bool(jnp.all(jnp.isfinite(out)))

    ref = _reference(x, key, value, wq, wo, num_heads=H)
    err = float(jnp.max(jnp.abs(out - ref)))
    assert err < 2e-2, err

    print("KERNEL_OK")
</pallas_src>

<mosaic_0001>
module attributes {stable_mosaic.version = 11 : i64} {
  func.func @_cross_attn_kernel(%arg0: i32, %arg1: i32, %arg2: i32, %arg3: memref<1x8x64xf32, #tpu.memory_space<vmem>>, %arg4: memref<1x8x64xf32, #tpu.memory_space<vmem>>, %arg5: memref<1x8x64xf32, #tpu.memory_space<vmem>>, %arg6: memref<64x64xf32, #tpu.memory_space<vmem>>, %arg7: memref<64x64xf32, #tpu.memory_space<vmem>>, %arg8: memref<1x8x64xf32, #tpu.memory_space<vmem>>, %arg9: memref<8x64xf32, #tpu.memory_space<vmem>>, %arg10: memref<8x8x1xf32, #tpu.memory_space<vmem>>, %arg11: memref<8x8x1xf32, #tpu.memory_space<vmem>>, %arg12: memref<8x8x8xf32, #tpu.memory_space<vmem>>) attributes {dimension_semantics = [#tpu.dimension_semantics<parallel>, #tpu.dimension_semantics<parallel>, #tpu.dimension_semantics<arbitrary>], iteration_bounds = array<i64: 2, 1, 1>, scalar_prefetch = 0 : i64, scratch_operands = 4 : i64, tpu.core_type = #tpu.core_type<tc>, window_params = [{transform_indices = @transform_0, window_bounds = array<i64: 1, 8, 64>}, {transform_indices = @transform_1, window_bounds = array<i64: 1, 8, 64>}, {transform_indices = @transform_2, window_bounds = array<i64: 1, 8, 64>}, {pipeline_mode = #tpu.pipeline_mode<synchronous>, transform_indices = @transform_3, window_bounds = array<i64: 64, 64>}, {pipeline_mode = #tpu.pipeline_mode<synchronous>, transform_indices = @transform_4, window_bounds = array<i64: 64, 64>}, {transform_indices = @transform_5, window_bounds = array<i64: 1, 8, 64>}]} {
    %c0_i32 = arith.constant 0 : i32
    %0 = arith.cmpi eq, %arg2, %c0_i32 : i32
    %1 = arith.extui %0 : i1 to i32
    %c0_i32_0 = arith.constant 0 : i32
    %2 = arith.cmpi ne, %1, %c0_i32_0 : i32
    scf.if %2 {
      %c0 = arith.constant 0 : index
      %c0_6 = arith.constant 0 : index
      %c0_7 = arith.constant 0 : index
      %13 = vector.load %arg3[%c0, %c0_6, %c0_7] : memref<1x8x64xf32, #tpu.memory_space<vmem>>, vector<1x8x64xf32>
      %14 = vector.shape_cast %13 : vector<1x8x64xf32> to vector<8x64xf32>
      %c0_8 = arith.constant 0 : index
      %c0_9 = arith.constant 0 : index
      %15 = vector.load %arg6[%c0_8, %c0_9] : memref<64x64xf32, #tpu.memory_space<vmem>>, vector<64x64xf32>
      %cst = arith.constant dense<0.000000e+00> : vector<8x64xf32>
      %16 = tpu.matmul %14, %15, %cst {dimension_numbers = #tpu.dot_dimension_numbers<[1], [0], [0], [1], [0, 0, 1, 1], [], []>} : vector<8x64xf32>, vector<64x64xf32>, vector<8x64xf32> -> vector<8x64xf32>
      %c0_10 = arith.constant 0 : index
      %c0_11 = arith.constant 0 : index
      %17 = vector.load %arg9[%c0_10, %c0_11] : memref<8x64xf32, #tpu.memory_space<vmem>>, vector<8x64xf32>
      tpu.vector_store %arg9[%c0_10, %c0_11], %16 {strides = array<i32>} : memref<8x64xf32, #tpu.memory_space<vmem>>, vector<8x64xf32>,
      %cst_12 = arith.constant 0xFF800000 : f32
      %18 = vector.broadcast %cst_12 : f32 to vector<8x8x1xf32>
      %c0_13 = arith.constant 0 : index
      %c0_14 = arith.constant 0 : index
      %c0_15 = arith.constant 0 : index
      %19 = vector.load %arg10[%c0_13, %c0_14, %c0_15] : memref<8x8x1xf32, #tpu.memory_space<vmem>>, vector<8x8x1xf32>
      tpu.vector_store %arg10[%c0_13, %c0_14, %c0_15], %18 {strides = array<i32>} : memref<8x8x1xf32, #tpu.memory_space<vmem>>, vector<8x8x1xf32>,
      %cst_16 = arith.constant 0.000000e+00 : f32
      %20 = vector.broadcast %cst_16 : f32 to vector<8x8x1xf32>
      %c0_17 = arith.constant 0 : index
      %c0_18 = arith.constant 0 : index
      %c0_19 = arith.constant 0 : index
      %21 = vector.load %arg11[%c0_17, %c0_18, %c0_19] : memref<8x8x1xf32, #tpu.memory_space<vmem>>, vector<8x8x1xf32>
      tpu.vector_store %arg11[%c0_17, %c0_18, %c0_19], %20 {strides = array<i32>} : memref<8x8x1xf32, #tpu.memory_space<vmem>>, vector<8x8x1xf32>,
      %cst_20 = arith.constant 0.000000e+00 : f32
      %22 = vector.broadcast %cst_20 : f32 to vector<8x8x8xf32>
      %c0_21 = arith.constant 0 : index
      %c0_22 = arith.constant 0 : index
      %c0_23 = arith.constant 0 : index
      %23 = vector.load %arg12[%c0_21, %c0_22, %c0_23] : memref<8x8x8xf32, #tpu.memory_space<vmem>>, vector<8x8x8xf32>
      tpu.vector_store %arg12[%c0_21, %c0_22, %c0_23], %22 {strides = array<i32>} : memref<8x8x8xf32, #tpu.memory_space<vmem>>, vector<8x8x8xf32>,
    } else {
    }
    %c8_i32 = arith.constant 8 : i32
    %3 = arith.muli %arg1, %c8_i32 : i32
    %c8_i32_1 = arith.constant 8 : i32
    %4 = arith.muli %arg2, %c8_i32_1 : i32
    %c8_i32_2 = arith.constant 8 : i32
    %5 = arith.addi %3, %c8_i32_2 : i32
    %c1_i32 = arith.constant 1 : i32
    %6 = arith.subi %5, %c1_i32 : i32
    %7 = arith.cmpi sle, %4, %6 : i32
    %8 = arith.extui %7 : i1 to i32
    %c0_i32_3 = arith.constant 0 : i32
    %9 = arith.cmpi ne, %8, %c0_i32_3 : i32
    scf.if %9 {
      %c0 = arith.constant 0 : index
      %c0_6 = arith.constant 0 : index
      %c0_7 = arith.constant 0 : index
      %13 = vector.load %arg4[%c0, %c0_6, %c0_7] : memref<1x8x64xf32, #tpu.memory_space<vmem>>, vector<1x8x64xf32>
      %14 = vector.shape_cast %13 : vector<1x8x64xf32> to vector<8x64xf32>
      %c0_8 = arith.constant 0 : index
      %c0_9 = arith.constant 0 : index
      %c0_10 = arith.constant 0 : index
      %15 = vector.load %arg5[%c0_8, %c0_9, %c0_10] : memref<1x8x64xf32, #tpu.memory_space<vmem>>, vector<1x8x64xf32>
      %16 = vector.shape_cast %15 : vector<1x8x64xf32> to vector<8x64xf32>
      %17 = tpu.iota {dimensions = array<i32: 0>} : vector<8x8xi32>
      %18 = vector.broadcast %3 : i32 to vector<8x8xi32>
      %19 = arith.addi %18, %17 : vector<8x8xi32>
      %20 = tpu.iota {dimensions = array<i32: 1>} : vector<8x8xi32>
      %21 = vector.broadcast %4 : i32 to vector<8x8xi32>
      %22 = arith.addi %21, %20 : vector<8x8xi32>
      %23 = arith.cmpi sgt, %22, %19 : vector<8x8xi32>
      %cst = arith.constant 0xFF800000 : f32
      %cst_11 = arith.constant 0.000000e+00 : f32
      %24 = vector.broadcast %cst : f32 to vector<8x8xf32>
      %25 = vector.broadcast %cst_11 : f32 to vector<8x8xf32>
      %26 = arith.select %23, %24, %25 : vector<8x8xi1>, vector<8x8xf32>
      %c0_12 = arith.constant 0 : index
      %c0_13 = arith.constant 0 : index
      %27 = vector.load %arg9[%c0_12, %c0_13] : memref<8x64xf32, #tpu.memory_space<vmem>>, vector<8x8xf32>
      %28 = vector.extract_strided_slice %14 {offsets = [0, 0], sizes = [8, 8], strides = [1, 1]} : vector<8x64xf32> to vector<8x8xf32>
      %29 = vector.extract_strided_slice %16 {offsets = [0, 0], sizes = [8, 8], strides = [1, 1]} : vector<8x64xf32> to vector<8x8xf32>
      %cst_14 = arith.constant dense<0.000000e+00> : vector<8x8xf32>
      %30 = tpu.matmul %27, %28, %cst_14 {dimension_numbers = #tpu.dot_dimension_numbers<[1], [1], [0], [0], [0, 0, 1, 0], [], []>} : vector<8x8xf32>, vector<8x8xf32>, vector<8x8xf32> -> vector<8x8xf32>
      %cst_15 = arith.constant 0.353553385 : f32
      %31 = vector.broadcast %cst_15 : f32 to vector<8x8xf32>
      %32 = arith.mulf %30, %31 : vector<8x8xf32>
      %33 = arith.addf %32, %26 : vector<8x8xf32>
      %c0_16 = arith.constant 0 : index
      %c0_17 = arith.constant 0 : index
      %c0_18 = arith.constant 0 : index
      %34 = vector.load %arg10[%c0_16, %c0_17, %c0_18] : memref<8x8x1xf32, #tpu.memory_space<vmem>>, vector<1x8x1xf32>
      %35 = vector.shape_cast %34 : vector<1x8x1xf32> to vector<8x1xf32>
      %cst_19 = arith.constant dense<0xFF800000> : vector<8xf32>
      %36 = vector.multi_reduction <maximumf>, %33, %cst_19 [1] : vector<8x8xf32> to vector<8xf32>
      %37 = vector.shape_cast %36 : vector<8xf32> to vector<8x1xf32>
      %38 = arith.maximumf %35, %37 : vector<8x1xf32>
      %39 = arith.subf %35, %38 : vector<8x1xf32>
      %40 = math.exp %39 : vector<8x1xf32>
      %41 = vector.broadcast %38 : vector<8x1xf32> to vector<8x8xf32>
      %42 = arith.subf %33, %41 : vector<8x8xf32>
      %43 = math.exp %42 : vector<8x8xf32>
      %c0_20 = arith.constant 0 : index
      %c0_21 = arith.constant 0 : index
      %c0_22 = arith.constant 0 : index
      %44 = vector.load %arg11[%c0_20, %c0_21, %c0_22] : memref<8x8x1xf32, #tpu.memory_space<vmem>>, vector<1x8x1xf32>
      %45 = vector.shape_cast %44 : vector<1x8x1xf32> to vector<8x1xf32>
      %46 = arith.mulf %40, %45 : vector<8x1xf32>
      %cst_23 = arith.constant dense<0.000000e+00> : vector<8xf32>
      %47 = vector.multi_reduction <add>, %43, %cst_23 [1] : vector<8x8xf32> to vector<8xf32>
      %48 = vector.shape_cast %47 : vector<8xf32> to vector<8x1xf32>
      %49 = arith.addf %46, %48 : vector<8x1xf32>
      %c0_24 = arith.constant 0 : index
      %c0_25 = arith.constant 0 : index
      %c0_26 = arith.constant 0 : index
      %50 = vector.load %arg11[%c0_24, %c0_25, %c0_26] : memref<8x8x1xf32, #tpu.memory_space<vmem>>, vector<1x8x1xf32>
      %51 = vector.shape_cast %50 : vector<1x8x1xf32> to vector<8x1xf32>
      %52 = vector.shape_cast %49 : vector<8x1xf32> to vector<1x8x1xf32>
      tpu.vector_store %arg11[%c0_24, %c0_25, %c0_26], %52 {strides = array<i32>} : memref<8x8x1xf32, #tpu.memory_space<vmem>>, vector<1x8x1xf32>,
      %c0_27 = arith.constant 0 : index
      %c0_28 = arith.constant 0 : index
      %c0_29 = arith.constant 0 : index
      %53 = vector.load %arg12[%c0_27, %c0_28, %c0_29] : memref<8x8x8xf32, #tpu.memory_space<vmem>>, vector<1x8x8xf32>
      %54 = vector.shape_cast %53 : vector<1x8x8xf32> to vector<8x8xf32>
      %55 = vector.broadcast %40 : vector<8x1xf32> to vector<8x8xf32>
      %56 = arith.mulf %55, %54 : vector<8x8xf32>
      %cst_30 = arith.constant dense<0.000000e+00> : vector<8x8xf32>
      %57 = tpu.matmul %43, %29, %cst_30 {dimension_numbers = #tpu.dot_dimension_numbers<[1], [0], [0], [1], [0, 0, 1, 1], [], []>} : vector<8x8xf32>, vector<8x8xf32>, vector<8x8xf32> -> vector<8x8xf32>
      %58 = arith.addf %56, %57 : vector<8x8xf32>
      %c0_31 = arith.constant 0 : index
      %c0_32 = arith.constant 0 : index
      %c0_33 = arith.constant 0 : index
      %59 = vector.load %arg12[%c0_31, %c0_32, %c0_33] : memref<8x8x8xf32, #tpu.memory_space<vmem>>, vector<1x8x8xf32>
      %60 = vector.shape_cast %59 : vector<1x8x8xf32> to vector<8x8xf32>
      %61 = vector.shape_cast %58 : vector<8x8xf32> to vector<1x8x8xf32>
      tpu.vector_store %arg12[%c0_31, %c0_32, %c0_33], %61 {strides = array<i32>} : memref<8x8x8xf32, #tpu.memory_space<vmem>>, vector<1x8x8xf32>,
      %c0_34 = arith.constant 0 : index
      %c0_35 = arith.constant 0 : index
      %c0_36 = arith.constant 0 : index
      %62 = vector.load %arg10[%c0_34, %c0_35, %c0_36] : memref<8x8x1xf32, #tpu.memory_space<vmem>>, vector<1x8x1xf32>
      %63 = vector.shape_cast %62 : vector<1x8x1xf32> to vector<8x1xf32>
      %64 = vector.shape_cast %38 : vector<8x1xf32> to vector<1x8x1xf32>
      tpu.vector_store %arg10[%c0_34, %c0_35, %c0_36], %64 {strides = array<i32>} : memref<8x8x1xf32, #tpu.memory_space<vmem>>, vector<1x8x1xf32>,
      %c0_37 = arith.constant 0 : index
      %c8 = arith.constant 8 : index
      %65 = vector.load %arg9[%c0_37, %c8] : memref<8x64xf32, #tpu.memory_space<vmem>>, vector<8x8xf32>
      %66 = vector.extract_strided_slice %14 {offsets = [0, 8], sizes = [8, 8], strides = [1, 1]} : vector<8x64xf32> to vector<8x8xf32>
      %67 = vector.extract_strided_slice %16 {offsets = [0, 8], sizes = [8, 8], strides = [1, 1]} : vector<8x64xf32> to vector<8x8xf32>
      %cst_38 = arith.constant dense<0.000000e+00> : vector<8x8xf32>
      %68 = tpu.matmul %65, %66, %cst_38 {dimension_numbers = #tpu.dot_dimension_numbers<[1], [1], [0], [0], [0, 0, 1, 0], [], []>} : vector<8x8xf32>, vector<8x8xf32>, vector<8x8xf32> -> vector<8x8xf32>
      %cst_39 = arith.constant 0.353553385 : f32
      %69 = vector.broadcast %cst_39 : f32 to vector<8x8xf32>
      %70 = arith.mulf %68, %69 : vector<8x8xf32>
      %71 = arith.addf %70, %26 : vector<8x8xf32>
      %c1 = arith.constant 1 : index
      %c0_40 = arith.constant 0 : index
      %c0_41 = arith.constant 0 : index
      %72 = vector.load %arg10[%c1, %c0_40, %c0_41] : memref<8x8x1xf32, #tpu.memory_space<vmem>>, vector<1x8x1xf32>
      %73 = vector.shape_cast %72 : vector<1x8x1xf32> to vector<8x1xf32>
      %cst_42 = arith.constant dense<0xFF800000> : vector<8xf32>
      %74 = vector.multi_reduction <maximumf>, %71, %cst_42 [1] : vector<8x8xf32> to vector<8xf32>
      %75 = vector.shape_cast %74 : vector<8xf32> to vector<8x1xf32>
      %76 = arith.maximumf %73, %75 : vector<8x1xf32>
      %77 = arith.subf %73, %76 : vector<8x1xf32>
      %78 = math.exp %77 : vector<8x1xf32>
      %79 = vector.broadcast %76 : vector<8x1xf32> to vector<8x8xf32>
      %80 = arith.subf %71, %79 : vector<8x8xf32>
      %81 = math.exp %80 : vector<8x8xf32>
      %c1_43 = arith.constant 1 : index
      %c0_44 = arith.constant 0 : index
      %c0_45 = arith.constant 0 : index
      %82 = vector.load %arg11[%c1_43, %c0_44, %c0_45] : memref<8x8x1xf32, #tpu.memory_space<vmem>>, vector<1x8x1xf32>
      %83 = vector.shape_cast %82 : vector<1x8x1xf32> to vector<8x1xf32>
      %84 = arith.mulf %78, %83 : vector<8x1xf32>
      %cst_46 = arith.constant dense<0.000000e+00> : vector<8xf32>
      %85 = vector.multi_reduction <add>, %81, %cst_46 [1] : vector<8x8xf32> to vector<8xf32>
      %86 = vector.shape_cast %85 : vector<8xf32> to vector<8x1xf32>
      %87 = arith.addf %84, %86 : vector<8x1xf32>
      %c1_47 = arith.constant 1 : index
      %c0_48 = arith.constant 0 : index
      %c0_49 = arith.constant 0 : index
      %88 = vector.load %arg11[%c1_47, %c0_48, %c0_49] : memref<8x8x1xf32, #tpu.memory_space<vmem>>, vector<1x8x1xf32>
      %89 = vector.shape_cast %88 : vector<1x8x1xf32> to vector<8x1xf32>
      %90 = vector.shape_cast %87 : vector<8x1xf32> to vector<1x8x1xf32>
      tpu.vector_store %arg11[%c1_47, %c0_48, %c0_49], %90 {strides = array<i32>} : memref<8x8x1xf32, #tpu.memory_space<vmem>>, vector<1x8x1xf32>,
      %c1_50 = arith.constant 1 : index
      %c0_51 = arith.constant 0 : index
      %c0_52 = arith.constant 0 : index
      %91 = vector.load %arg12[%c1_50, %c0_51, %c0_52] : memref<8x8x8xf32, #tpu.memory_space<vmem>>, vector<1x8x8xf32>
      %92 = vector.shape_cast %91 : vector<1x8x8xf32> to vector<8x8xf32>
      %93 = vector.broadcast %78 : vector<8x1xf32> to vector<8x8xf32>
      %94 = arith.mulf %93, %92 : vector<8x8xf32>
      %cst_53 = arith.constant dense<0.000000e+00> : vector<8x8xf32>
      %95 = tpu.matmul %81, %67, %cst_53 {dimension_numbers = #tpu.dot_dimension_numbers<[1], [0], [0], [1], [0, 0, 1, 1], [], []>} : vector<8x8xf32>, vector<8x8xf32>, vector<8x8xf32> -> vector<8x8xf32>
      %96 = arith.addf %94, %95 : vector<8x8xf32>
      %c1_54 = arith.constant 1 : index
      %c0_55 = arith.constant 0 : index
      %c0_56 = arith.constant 0 : index
      %97 = vector.load %arg12[%c1_54, %c0_55, %c0_56] : memref<8x8x8xf32, #tpu.memory_space<vmem>>, vector<1x8x8xf32>
      %98 = vector.shape_cast %97 : vector<1x8x8xf32> to vector<8x8xf32>
      %99 = vector.shape_cast %96 : vector<8x8xf32> to vector<1x8x8xf32>
      tpu.vector_store %arg12[%c1_54, %c0_55, %c0_56], %99 {strides = array<i32>} : memref<8x8x8xf32, #tpu.memory_space<vmem>>, vector<1x8x8xf32>,
      %c1_57 = arith.constant 1 : index
      %c0_58 = arith.constant 0 : index
      %c0_59 = arith.constant 0 : index
      %100 = vector.load %arg10[%c1_57, %c0_58, %c0_59] : memref<8x8x1xf32, #tpu.memory_space<vmem>>, vector<1x8x1xf32>
      %101 = vector.shape_cast %100 : vector<1x8x1xf32> to vector<8x1xf32>
      %102 = vector.shape_cast %76 : vector<8x1xf32> to vector<1x8x1xf32>
      tpu.vector_store %arg10[%c1_57, %c0_58, %c0_59], %102 {strides = array<i32>} : memref<8x8x1xf32, #tpu.memory_space<vmem>>, vector<1x8x1xf32>,
      %c0_60 = arith.constant 0 : index
      %c16 = arith.constant 16 : index
      %103 = vector.load %arg9[%c0_60, %c16] : memref<8x64xf32, #tpu.memory_space<vmem>>, vector<8x8xf32>
      %104 = vector.extract_strided_slice %14 {offsets = [0, 16], sizes = [8, 8], strides = [1, 1]} : vector<8x64xf32> to vector<8x8xf32>
      %105 = vector.extract_strided_slice %16 {offsets = [0, 16], sizes = [8, 8], strides = [1, 1]} : vector<8x64xf32> to vector<8x8xf32>
      %cst_61 = arith.constant dense<0.000000e+00> : vector<8x8xf32>
      %106 = tpu.matmul %103, %104, %cst_61 {dimension_numbers = #tpu.dot_dimension_numbers<[1], [1], [0], [0], [0, 0, 1, 0], [], []>} : vector<8x8xf32>, vector<8x8xf32>, vector<8x8xf32> -> vector<8x8xf32>
      %cst_62 = arith.constant 0.353553385 : f32
      %107 = vector.broadcast %cst_62 : f32 to vector<8x8xf32>
      %108 = arith.mulf %106, %107 : vector<8x8xf32>
      %109 = arith.addf %108, %26 : vector<8x8xf32>
      %c2 = arith.constant 2 : index
      %c0_63 = arith.constant 0 : index
      %c0_64 = arith.constant 0 : index
      %110 = vector.load %arg10[%c2, %c0_63, %c0_64] : memref<8x8x1xf32, #tpu.memory_space<vmem>>, vector<1x8x1xf32>
      %111 = vector.shape_cast %110 : vector<1x8x1xf32> to vector<8x1xf32>
      %cst_65 = arith.constant dense<0xFF800000> : vector<8xf32>
      %112 = vector.multi_reduction <maximumf>, %109, %cst_65 [1] : vector<8x8xf32> to vector<8xf32>
      %113 = vector.shape_cast %112 : vector<8xf32> to vector<8x1xf32>
      %114 = arith.maximumf %111, %113 : vector<8x1xf32>
      %115 = arith.subf %111, %114 : vector<8x1xf32>
      %116 = math.exp %115 : vector<8x1xf32>
      %117 = vector.broadcast %114 : vector<8x1xf32> to vector<8x8xf32>
      %118 = arith.subf %109, %117 : vector<8x8xf32>
      %119 = math.exp %118 : vector<8x8xf32>
      %c2_66 = arith.constant 2 : index
      %c0_67 = arith.constant 0 : index
      %c0_68 = arith.constant 0 : index
      %120 = vector.load %arg11[%c2_66, %c0_67, %c0_68] : memref<8x8x1xf32, #tpu.memory_space<vmem>>, vector<1x8x1xf32>
      %121 = vector.shape_cast %120 : vector<1x8x1xf32> to vector<8x1xf32>
      %122 = arith.mulf %116, %121 : vector<8x1xf32>
      %cst_69 = arith.constant dense<0.000000e+00> : vector<8xf32>
      %123 = vector.multi_reduction <add>, %119, %cst_69 [1] : vector<8x8xf32> to vector<8xf32>
      %124 = vector.shape_cast %123 : vector<8xf32> to vector<8x1xf32>
      %125 = arith.addf %122, %124 : vector<8x1xf32>
      %c2_70 = arith.constant 2 : index
      %c0_71 = arith.constant 0 : index
      %c0_72 = arith.constant 0 : index
      %126 = vector.load %arg11[%c2_70, %c0_71, %c0_72] : memref<8x8x1xf32, #tpu.memory_space<vmem>>, vector<1x8x1xf32>
      %127 = vector.shape_cast %126 : vector<1x8x1xf32> to vector<8x1xf32>
      %128 = vector.shape_cast %125 : vector<8x1xf32> to vector<1x8x1xf32>
      tpu.vector_store %arg11[%c2_70, %c0_71, %c0_72], %128 {strides = array<i32>} : memref<8x8x1xf32, #tpu.memory_space<vmem>>, vector<1x8x1xf32>,
      %c2_73 = arith.constant 2 : index
      %c0_74 = arith.constant 0 : index
      %c0_75 = arith.constant 0 : index
      %129 = vector.load %arg12[%c2_73, %c0_74, %c0_75] : memref<8x8x8xf32, #tpu.memory_space<vmem>>, vector<1x8x8xf32>
      %130 = vector.shape_cast %129 : vector<1x8x8xf32> to vector<8x8xf32>
      %131 = vector.broadcast %116 : vector<8x1xf32> to vector<8x8xf32>
      %132 = arith.mulf %131, %130 : vector<8x8xf32>
      %cst_76 = arith.constant dense<0.000000e+00> : vector<8x8xf32>
      %133 = tpu.matmul %119, %105, %cst_76 {dimension_numbers = #tpu.dot_dimension_numbers<[1], [0], [0], [1], [0, 0, 1, 1], [], []>} : vector<8x8xf32>, vector<8x8xf32>, vector<8x8xf32> -> vector<8x8xf32>
      %134 = arith.addf %132, %133 : vector<8x8xf32>
      %c2_77 = arith.constant 2 : index
      %c0_78 = arith.constant 0 : index
      %c0_79 = arith.constant 0 : index
      %135 = vector.load %arg12[%c2_77, %c0_78, %c0_79] : memref<8x8x8xf32, #tpu.memory_space<vmem>>, vector<1x8x8xf32>
      %136 = vector.shape_cast %135 : vector<1x8x8xf32> to vector<8x8xf32>
      %137 = vector.shape_cast %134 : vector<8x8xf32> to vector<1x8x8xf32>
      tpu.vector_store %arg12[%c2_77, %c0_78, %c0_79], %137 {strides = array<i32>} : memref<8x8x8xf32, #tpu.memory_space<vmem>>, vector<1x8x8xf32>,
      %c2_80 = arith.constant 2 : index
      %c0_81 = arith.constant 0 : index
      %c0_82 = arith.constant 0 : index
      %138 = vector.load %arg10[%c2_80, %c0_81, %c0_82] : memref<8x8x1xf32, #tpu.memory_space<vmem>>, vector<1x8x1xf32>
      %139 = vector.shape_cast %138 : vector<1x8x1xf32> to vector<8x1xf32>
      %140 = vector.shape_cast %114 : vector<8x1xf32> to vector<1x8x1xf32>
      tpu.vector_store %arg10[%c2_80, %c0_81, %c0_82], %140 {strides = array<i32>} : memref<8x8x1xf32, #tpu.memory_space<vmem>>, vector<1x8x1xf32>,
      %c0_83 = arith.constant 0 : index
      %c24 = arith.constant 24 : index
      %141 = vector.load %arg9[%c0_83, %c24] : memref<8x64xf32, #tpu.memory_space<vmem>>, vector<8x8xf32>
      %142 = vector.extract_strided_slice %14 {offsets = [0, 24], sizes = [8, 8], strides = [1, 1]} : vector<8x64xf32> to vector<8x8xf32>
      %143 = vector.extract_strided_slice %16 {offsets = [0, 24], sizes = [8, 8], strides = [1, 1]} : vector<8x64xf32> to vector<8x8xf32>
      %cst_84 = arith.constant dense<0.000000e+00> : vector<8x8xf32>
      %144 = tpu.matmul %141, %142, %cst_84 {dimension_numbers = #tpu.dot_dimension_numbers<[1], [1], [0], [0], [0, 0, 1, 0], [], []>} : vector<8x8xf32>, vector<8x8xf32>, vector<8x8xf32> -> vector<8x8xf32>
      %cst_85 = arith.constant 0.353553385 : f32
      %145 = vector.broadcast %cst_85 : f32 to vector<8x8xf32>
      %146 = arith.mulf %144, %145 : vector<8x8xf32>
      %147 = arith.addf %146, %26 : vector<8x8xf32>
      %c3 = arith.constant 3 : index
      %c0_86 = arith.constant 0 : index
      %c0_87 = arith.constant 0 : index
      %148 = vector.load %arg10[%c3, %c0_86, %c0_87] : memref<8x8x1xf32, #tpu.memory_space<vmem>>, vector<1x8x1xf32>
      %149 = vector.shape_cast %148 : vector<1x8x1xf32> to vector<8x1xf32>
      %cst_88 = arith.constant dense<0xFF800000> : vector<8xf32>
      %150 = vector.multi_reduction <maximumf>, %147, %cst_88 [1] : vector<8x8xf32> to vector<8xf32>
      %151 = vector.shape_cast %150 : vector<8xf32> to vector<8x1xf32>
      %152 = arith.maximumf %149, %151 : vector<8x1xf32>
      %153 = arith.subf %149, %152 : vector<8x1xf32>
      %154 = math.exp %153 : vector<8x1xf32>
      %155 = vector.broadcast %152 : vector<8x1xf32> to vector<8x8xf32>
      %156 = arith.subf %147, %155 : vector<8x8xf32>
      %157 = math.exp %156 : vector<8x8xf32>
      %c3_89 = arith.constant 3 : index
      %c0_90 = arith.constant 0 : index
      %c0_91 = arith.constant 0 : index
      %158 = vector.load %arg11[%c3_89, %c0_90, %c0_91] : memref<8x8x1xf32, #tpu.memory_space<vmem>>, vector<1x8x1xf32>
      %159 = vector.shape_cast %158 : vector<1x8x1xf32> to vector<8x1xf32>
      %160 = arith.mulf %154, %159 : vector<8x1xf32>
      %cst_92 = arith.constant dense<0.000000e+00> : vector<8xf32>
      %161 = vector.multi_reduction <add>, %157, %cst_92 [1] : vector<8x8xf32> to vector<8xf32>
      %162 = vector.shape_cast %161 : vector<8xf32> to vector<8x1xf32>
      %163 = arith.addf %160, %162 : vector<8x1xf32>
      %c3_93 = arith.constant 3 : index
      %c0_94 = arith.constant 0 : index
      %c0_95 = arith.constant 0 : index
      %164 = vector.load %arg11[%c3_93, %c0_94, %c0_95] : memref<8x8x1xf32, #tpu.memory_space<vmem>>, vector<1x8x1xf32>
      %165 = vector.shape_cast %164 : vector<1x8x1xf32> to vector<8x1xf32>
      %166 = vector.shape_cast %163 : vector<8x1xf32> to vector<1x8x1xf32>
      tpu.vector_store %arg11[%c3_93, %c0_94, %c0_95], %166 {strides = array<i32>} : memref<8x8x1xf32, #tpu.memory_space<vmem>>, vector<1x8x1xf32>,
      %c3_96 = arith.constant 3 : index
      %c0_97 = arith.constant 0 : index
      %c0_98 = arith.constant 0 : index
      %167 = vector.load %arg12[%c3_96, %c0_97, %c0_98] : memref<8x8x8xf32, #tpu.memory_space<vmem>>, vector<1x8x8xf32>
      %168 = vector.shape_cast %167 : vector<1x8x8xf32> to vector<8x8xf32>
      %169 = vector.broadcast %154 : vector<8x1xf32> to vector<8x8xf32>
      %170 = arith.mulf %169, %168 : vector<8x8xf32>
      %cst_99 = arith.constant dense<0.000000e+00> : vector<8x8xf32>
      %171 = tpu.matmul %157, %143, %cst_99 {dimension_numbers = #tpu.dot_dimension_numbers<[1], [0], [0], [1], [0, 0, 1, 1], [], []>} : vector<8x8xf32>, vector<8x8xf32>, vector<8x8xf32> -> vector<8x8xf32>
      %172 = arith.addf %170, %171 : vector<8x8xf32>
      %c3_100 = arith.constant 3 : index
      %c0_101 = arith.constant 0 : index
      %c0_102 = arith.constant 0 : index
      %173 = vector.load %arg12[%c3_100, %c0_101, %c0_102] : memref<8x8x8xf32, #tpu.memory_space<vmem>>, vector<1x8x8xf32>
      %174 = vector.shape_cast %173 : vector<1x8x8xf32> to vector<8x8xf32>
      %175 = vector.shape_cast %172 : vector<8x8xf32> to vector<1x8x8xf32>
      tpu.vector_store %arg12[%c3_100, %c0_101, %c0_102], %175 {strides = array<i32>} : memref<8x8x8xf32, #tpu.memory_space<vmem>>, vector<1x8x8xf32>,
      %c3_103 = arith.constant 3 : index
      %c0_104 = arith.constant 0 : index
      %c0_105 = arith.constant 0 : index
      %176 = vector.load %arg10[%c3_103, %c0_104, %c0_105] : memref<8x8x1xf32, #tpu.memory_space<vmem>>, vector<1x8x1xf32>
      %177 = vector.shape_cast %176 : vector<1x8x1xf32> to vector<8x1xf32>
      %178 = vector.shape_cast %152 : vector<8x1xf32> to vector<1x8x1xf32>
      tpu.vector_store %arg10[%c3_103, %c0_104, %c0_105], %178 {strides = array<i32>} : memref<8x8x1xf32, #tpu.memory_space<vmem>>, vector<1x8x1xf32>,
      %c0_106 = arith.constant 0 : index
      %c32 = arith.constant 32 : index
      %179 = vector.load %arg9[%c0_106, %c32] : memref<8x64xf32, #tpu.memory_space<vmem>>, vector<8x8xf32>
      %180 = vector.extract_strided_slice %14 {offsets = [0, 32], sizes = [8, 8], strides = [1, 1]} : vector<8x64xf32> to vector<8x8xf32>
      %181 = vector.extract_strided_slice %16 {offsets = [0, 32], sizes = [8, 8], strides = [1, 1]} : vector<8x64xf32> to vector<8x8xf32>
      %cst_107 = arith.constant dense<0.000000e+00> : vector<8x8xf32>
      %182 = tpu.matmul %179, %180, %cst_107 {dimension_numbers = #tpu.dot_dimension_numbers<[1], [1], [0], [0], [0, 0, 1, 0], [], []>} : vector<8x8xf32>, vector<8x8xf32>, vector<8x8xf32> -> vector<8x8xf32>
      %cst_108 = arith.constant 0.353553385 : f32
      %183 = vector.broadcast %cst_108 : f32 to vector<8x8xf32>
      %184 = arith.mulf %182, %183 : vector<8x8xf32>
      %185 = arith.addf %184, %26 : vector<8x8xf32>
      %c4 = arith.constant 4 : index
      %c0_109 = arith.constant 0 : index
      %c0_110 = arith.constant 0 : index
      %186 = vector.load %arg10[%c4, %c0_109, %c0_110] : memref<8x8x1xf32, #tpu.memory_space<vmem>>, vector<1x8x1xf32>
      %187 = vector.shape_cast %186 : vector<1x8x1xf32> to vector<8x1xf32>
      %cst_111 = arith.constant dense<0xFF800000> : vector<8xf32>
      %188 = vector.multi_reduction <maximumf>, %185, %cst_111 [1] : vector<8x8xf32> to vector<8xf32>
      %189 = vector.shape_cast %188 : vector<8xf32> to vector<8x1xf32>
      %190 = arith.maximumf %187, %189 : vector<8x1xf32>
      %191 = arith.subf %187, %190 : vector<8x1xf32>
      %192 = math.exp %191 : vector<8x1xf32>
      %193 = vector.broadcast %190 : vector<8x1xf32> to vector<8x8xf32>
      %194 = arith.subf %185, %193 : vector<8x8xf32>
      %195 = math.exp %194 : vector<8x8xf32>
      %c4_112 = arith.constant 4 : index
      %c0_113 = arith.constant 0 : index
      %c0_114 = arith.constant 0 : index
      %196 = vector.load %arg11[%c4_112, %c0_113, %c0_114] : memref<8x8x1xf32, #tpu.memory_space<vmem>>, vector<1x8x1xf32>
      %197 = vector.shape_cast %196 : vector<1x8x1xf32> to vector<8x1xf32>
      %198 = arith.mulf %192, %197 : vector<8x1xf32>
      %cst_115 = arith.constant dense<0.000000e+00> : vector<8xf32>
      %199 = vector.multi_reduction <add>, %195, %cst_115 [1] : vector<8x8xf32> to vector<8xf32>
      %200 = vector.shape_cast %199 : vector<8xf32> to vector<8x1xf32>
      %201 = arith.addf %198, %200 : vector<8x1xf32>
      %c4_116 = arith.constant 4 : index
      %c0_117 = arith.constant 0 : index
      %c0_118 = arith.constant 0 : index
      %202 = vector.load %arg11[%c4_116, %c0_117, %c0_118] : memref<8x8x1xf32, #tpu.memory_space<vmem>>, vector<1x8x1xf32>
      %203 = vector.shape_cast %202 : vector<1x8x1xf32> to vector<8x1xf32>
      %204 = vector.shape_cast %201 : vector<8x1xf32> to vector<1x8x1xf32>
      tpu.vector_store %arg11[%c4_116, %c0_117, %c0_118], %204 {strides = array<i32>} : memref<8x8x1xf32, #tpu.memory_space<vmem>>, vector<1x8x1xf32>,
      %c4_119 = arith.constant 4 : index
      %c0_120 = arith.constant 0 : index
      %c0_121 = arith.constant 0 : index
      %205 = vector.load %arg12[%c4_119, %c0_120, %c0_121] : memref<8x8x8xf32, #tpu.memory_space<vmem>>, vector<1x8x8xf32>
      %206 = vector.shape_cast %205 : vector<1x8x8xf32> to vector<8x8xf32>
      %207 = vector.broadcast %192 : vector<8x1xf32> to vector<8x8xf32>
      %208 = arith.mulf %207, %206 : vector<8x8xf32>
      %cst_122 = arith.constant dense<0.000000e+00> : vector<8x8xf32>
      %209 = tpu.matmul %195, %181, %cst_122 {dimension_numbers = #tpu.dot_dimension_numbers<[1], [0], [0], [1], [0, 0, 1, 1], [], []>} : vector<8x8xf32>, vector<8x8xf32>, vector<8x8xf32> -> vector<8x8xf32>
      %210 = arith.addf %208, %209 : vector<8x8xf32>
      %c4_123 = arith.constant 4 : index
      %c0_124 = arith.constant 0 : index
      %c0_125 = arith.constant 0 : index
      %211 = vector.load %arg12[%c4_123, %c0_124, %c0_125] : memref<8x8x8xf32, #tpu.memory_space<vmem>>, vector<1x8x8xf32>
      %212 = vector.shape_cast %211 : vector<1x8x8xf32> to vector<8x8xf32>
      %213 = vector.shape_cast %210 : vector<8x8xf32> to vector<1x8x8xf32>
      tpu.vector_store %arg12[%c4_123, %c0_124, %c0_125], %213 {strides = array<i32>} : memref<8x8x8xf32, #tpu.memory_space<vmem>>, vector<1x8x8xf32>,
      %c4_126 = arith.constant 4 : index
      %c0_127 = arith.constant 0 : index
      %c0_128 = arith.constant 0 : index
      %214 = vector.load %arg10[%c4_126, %c0_127, %c0_128] : memref<8x8x1xf32, #tpu.memory_space<vmem>>, vector<1x8x1xf32>
      %215 = vector.shape_cast %214 : vector<1x8x1xf32> to vector<8x1xf32>
      %216 = vector.shape_cast %190 : vector<8x1xf32> to vector<1x8x1xf32>
      tpu.vector_store %arg10[%c4_126, %c0_127, %c0_128], %216 {strides = array<i32>} : memref<8x8x1xf32, #tpu.memory_space<vmem>>, vector<1x8x1xf32>,
      %c0_129 = arith.constant 0 : index
      %c40 = arith.constant 40 : index
      %217 = vector.load %arg9[%c0_129, %c40] : memref<8x64xf32, #tpu.memory_space<vmem>>, vector<8x8xf32>
      %218 = vector.extract_strided_slice %14 {offsets = [0, 40], sizes = [8, 8], strides = [1, 1]} : vector<8x64xf32> to vector<8x8xf32>
      %219 = vector.extract_strided_slice %16 {offsets = [0, 40], sizes = [8, 8], strides = [1, 1]} : vector<8x64xf32> to vector<8x8xf32>
      %cst_130 = arith.constant dense<0.000000e+00> : vector<8x8xf32>
      %220 = tpu.matmul %217, %218, %cst_130 {dimension_numbers = #tpu.dot_dimension_numbers<[1], [1], [0], [0], [0, 0, 1, 0], [], []>} : vector<8x8xf32>, vector<8x8xf32>, vector<8x8xf32> -> vector<8x8xf32>
      %cst_131 = arith.constant 0.353553385 : f32
      %221 = vector.broadcast %cst_131 : f32 to vector<8x8xf32>
      %222 = arith.mulf %220, %221 : vector<8x8xf32>
      %223 = arith.addf %222, %26 : vector<8x8xf32>
      %c5 = arith.constant 5 : index
      %c0_132 = arith.constant 0 : index
      %c0_133 = arith.constant 0 : index
      %224 = vector.load %arg10[%c5, %c0_132, %c0_133] : memref<8x8x1xf32, #tpu.memory_space<vmem>>, vector<1x8x1xf32>
      %225 = vector.shape_cast %224 : vector<1x8x1xf32> to vector<8x1xf32>
      %cst_134 = arith.constant dense<0xFF800000> : vector<8xf32>
      %226 = vector.multi_reduction <maximumf>, %223, %cst_134 [1] : vector<8x8xf32> to vector<8xf32>
      %227 = vector.shape_cast %226 : vector<8xf32> to vector<8x1xf32>
      %228 = arith.maximumf %225, %227 : vector<8x1xf32>
      %229 = arith.subf %225, %228 : vector<8x1xf32>
      %230 = math.exp %229 : vector<8x1xf32>
      %231 = vector.broadcast %228 : vector<8x1xf32> to vector<8x8xf32>
      %232 = arith.subf %223, %231 : vector<8x8xf32>
      %233 = math.exp %232 : vector<8x8xf32>
      %c5_135 = arith.constant 5 : index
      %c0_136 = arith.constant 0 : index
      %c0_137 = arith.constant 0 : index
      %234 = vector.load %arg11[%c5_135, %c0_136, %c0_137] : memref<8x8x1xf32, #tpu.memory_space<vmem>>, vector<1x8x1xf32>
      %235 = vector.shape_cast %234 : vector<1x8x1xf32> to vector<8x1xf32>
      %236 = arith.mulf %230, %235 : vector<8x1xf32>
      %cst_138 = arith.constant dense<0.000000e+00> : vector<8xf32>
      %237 = vector.multi_reduction <add>, %233, %cst_138 [1] : vector<8x8xf32> to vector<8xf32>
      %238 = vector.shape_cast %237 : vector<8xf32> to vector<8x1xf32>
      %239 = arith.addf %236, %238 : vector<8x1xf32>
      %c5_139 = arith.constant 5 : index
      %c0_140 = arith.constant 0 : index
      %c0_141 = arith.constant 0 : index
      %240 = vector.load %arg11[%c5_139, %c0_140, %c0_141] : memref<8x8x1xf32, #tpu.memory_space<vmem>>, vector<1x8x1xf32>
      %241 = vector.shape_cast %240 : vector<1x8x1xf32> to vector<8x1xf32>
      %242 = vector.shape_cast %239 : vector<8x1xf32> to vector<1x8x1xf32>
      tpu.vector_store %arg11[%c5_139, %c0_140, %c0_141], %242 {strides = array<i32>} : memref<8x8x1xf32, #tpu.memory_space<vmem>>, vector<1x8x1xf32>,
      %c5_142 = arith.constant 5 : index
      %c0_143 = arith.constant 0 : index
      %c0_144 = arith.constant 0 : index
      %243 = vector.load %arg12[%c5_142, %c0_143, %c0_144] : memref<8x8x8xf32, #tpu.memory_space<vmem>>, vector<1x8x8xf32>
      %244 = vector.shape_cast %243 : vector<1x8x8xf32> to vector<8x8xf32>
      %245 = vector.broadcast %230 : vector<8x1xf32> to vector<8x8xf32>
      %246 = arith.mulf %245, %244 : vector<8x8xf32>
      %cst_145 = arith.constant dense<0.000000e+00> : vector<8x8xf32>
      %247 = tpu.matmul %233, %219, %cst_145 {dimension_numbers = #tpu.dot_dimension_numbers<[1], [0], [0], [1], [0, 0, 1, 1], [], []>} : vector<8x8xf32>, vector<8x8xf32>, vector<8x8xf32> -> vector<8x8xf32>
      %248 = arith.addf %246, %247 : vector<8x8xf32>
      %c5_146 = arith.constant 5 : index
      %c0_147 = arith.constant 0 : index
      %c0_148 = arith.constant 0 : index
      %249 = vector.load %arg12[%c5_146, %c0_147, %c0_148] : memref<8x8x8xf32, #tpu.memory_space<vmem>>, vector<1x8x8xf32>
      %250 = vector.shape_cast %249 : vector<1x8x8xf32> to vector<8x8xf32>
      %251 = vector.shape_cast %248 : vector<8x8xf32> to vector<1x8x8xf32>
      tpu.vector_store %arg12[%c5_146, %c0_147, %c0_148], %251 {strides = array<i32>} : memref<8x8x8xf32, #tpu.memory_space<vmem>>, vector<1x8x8xf32>,
      %c5_149 = arith.constant 5 : index
      %c0_150 = arith.constant 0 : index
      %c0_151 = arith.constant 0 : index
      %252 = vector.load %arg10[%c5_149, %c0_150, %c0_151] : memref<8x8x1xf32, #tpu.memory_space<vmem>>, vector<1x8x1xf32>
      %253 = vector.shape_cast %252 : vector<1x8x1xf32> to vector<8x1xf32>
      %254 = vector.shape_cast %228 : vector<8x1xf32> to vector<1x8x1xf32>
      tpu.vector_store %arg10[%c5_149, %c0_150, %c0_151], %254 {strides = array<i32>} : memref<8x8x1xf32, #tpu.memory_space<vmem>>, vector<1x8x1xf32>,
      %c0_152 = arith.constant 0 : index
      %c48 = arith.constant 48 : index
      %255 = vector.load %arg9[%c0_152, %c48] : memref<8x64xf32, #tpu.memory_space<vmem>>, vector<8x8xf32>
      %256 = vector.extract_strided_slice %14 {offsets = [0, 48], sizes = [8, 8], strides = [1, 1]} : vector<8x64xf32> to vector<8x8xf32>
      %257 = vector.extract_strided_slice %16 {offsets = [0, 48], sizes = [8, 8], strides = [1, 1]} : vector<8x64xf32> to vector<8x8xf32>
      %cst_153 = arith.constant dense<0.000000e+00> : vector<8x8xf32>
      %258 = tpu.matmul %255, %256, %cst_153 {dimension_numbers = #tpu.dot_dimension_numbers<[1], [1], [0], [0], [0, 0, 1, 0], [], []>} : vector<8x8xf32>, vector<8x8xf32>, vector<8x8xf32> -> vector<8x8xf32>
      %cst_154 = arith.constant 0.353553385 : f32
      %259 = vector.broadcast %cst_154 : f32 to vector<8x8xf32>
      %260 = arith.mulf %258, %259 : vector<8x8xf32>
      %261 = arith.addf %260, %26 : vector<8x8xf32>
      %c6 = arith.constant 6 : index
      %c0_155 = arith.constant 0 : index
      %c0_156 = arith.constant 0 : index
      %262 = vector.load %arg10[%c6, %c0_155, %c0_156] : memref<8x8x1xf32, #tpu.memory_space<vmem>>, vector<1x8x1xf32>
      %263 = vector.shape_cast %262 : vector<1x8x1xf32> to vector<8x1xf32>
      %cst_157 = arith.constant dense<0xFF800000> : vector<8xf32>
      %264 = vector.multi_reduction <maximumf>, %261, %cst_157 [1] : vector<8x8xf32> to vector<8xf32>
      %265 = vector.shape_cast %264 : vector<8xf32> to vector<8x1xf32>
      %266 = arith.maximumf %263, %265 : vector<8x1xf32>
      %267 = arith.subf %263, %266 : vector<8x1xf32>
      %268 = math.exp %267 : vector<8x1xf32>
      %269 = vector.broadcast %266 : vector<8x1xf32> to vector<8x8xf32>
      %270 = arith.subf %261, %269 : vector<8x8xf32>
      %271 = math.exp %270 : vector<8x8xf32>
      %c6_158 = arith.constant 6 : index
      %c0_159 = arith.constant 0 : index
      %c0_160 = arith.constant 0 : index
      %272 = vector.load %arg11[%c6_158, %c0_159, %c0_160] : memref<8x8x1xf32, #tpu.memory_space<vmem>>, vector<1x8x1xf32>
      %273 = vector.shape_cast %272 : vector<1x8x1xf32> to vector<8x1xf32>
      %274 = arith.mulf %268, %273 : vector<8x1xf32>
      %cst_161 = arith.constant dense<0.000000e+00> : vector<8xf32>
      %275 = vector.multi_reduction <add>, %271, %cst_161 [1] : vector<8x8xf32> to vector<8xf32>
      %276 = vector.shape_cast %275 : vector<8xf32> to vector<8x1xf32>
      %277 = arith.addf %274, %276 : vector<8x1xf32>
      %c6_162 = arith.constant 6 : index
      %c0_163 = arith.constant 0 : index
      %c0_164 = arith.constant 0 : index
      %278 = vector.load %arg11[%c6_162, %c0_163, %c0_164] : memref<8x8x1xf32, #tpu.memory_space<vmem>>, vector<1x8x1xf32>
      %279 = vector.shape_cast %278 : vector<1x8x1xf32> to vector<8x1xf32>
      %280 = vector.shape_cast %277 : vector<8x1xf32> to vector<1x8x1xf32>
      tpu.vector_store %arg11[%c6_162, %c0_163, %c0_164], %280 {strides = array<i32>} : memref<8x8x1xf32, #tpu.memory_space<vmem>>, vector<1x8x1xf32>,
      %c6_165 = arith.constant 6 : index
      %c0_166 = arith.constant 0 : index
      %c0_167 = arith.constant 0 : index
      %281 = vector.load %arg12[%c6_165, %c0_166, %c0_167] : memref<8x8x8xf32, #tpu.memory_space<vmem>>, vector<1x8x8xf32>
      %282 = vector.shape_cast %281 : vector<1x8x8xf32> to vector<8x8xf32>
      %283 = vector.broadcast %268 : vector<8x1xf32> to vector<8x8xf32>
      %284 = arith.mulf %283, %282 : vector<8x8xf32>
      %cst_168 = arith.constant dense<0.000000e+00> : vector<8x8xf32>
      %285 = tpu.matmul %271, %257, %cst_168 {dimension_numbers = #tpu.dot_dimension_numbers<[1], [0], [0], [1], [0, 0, 1, 1], [], []>} : vector<8x8xf32>, vector<8x8xf32>, vector<8x8xf32> -> vector<8x8xf32>
      %286 = arith.addf %284, %285 : vector<8x8xf32>
      %c6_169 = arith.constant 6 : index
      %c0_170 = arith.constant 0 : index
      %c0_171 = arith.constant 0 : index
      %287 = vector.load %arg12[%c6_169, %c0_170, %c0_171] : memref<8x8x8xf32, #tpu.memory_space<vmem>>, vector<1x8x8xf32>
      %288 = vector.shape_cast %287 : vector<1x8x8xf32> to vector<8x8xf32>
      %289 = vector.shape_cast %286 : vector<8x8xf32> to vector<1x8x8xf32>
      tpu.vector_store %arg12[%c6_169, %c0_170, %c0_171], %289 {strides = array<i32>} : memref<8x8x8xf32, #tpu.memory_space<vmem>>, vector<1x8x8xf32>,
      %c6_172 = arith.constant 6 : index
      %c0_173 = arith.constant 0 : index
      %c0_174 = arith.constant 0 : index
      %290 = vector.load %arg10[%c6_172, %c0_173, %c0_174] : memref<8x8x1xf32, #tpu.memory_space<vmem>>, vector<1x8x1xf32>
      %291 = vector.shape_cast %290 : vector<1x8x1xf32> to vector<8x1xf32>
      %292 = vector.shape_cast %266 : vector<8x1xf32> to vector<1x8x1xf32>
      tpu.vector_store %arg10[%c6_172, %c0_173, %c0_174], %292 {strides = array<i32>} : memref<8x8x1xf32, #tpu.memory_space<vmem>>, vector<1x8x1xf32>,
      %c0_175 = arith.constant 0 : index
      %c56 = arith.constant 56 : index
      %293 = vector.load %arg9[%c0_175, %c56] : memref<8x64xf32, #tpu.memory_space<vmem>>, vector<8x8xf32>
      %294 = vector.extract_strided_slice %14 {offsets = [0, 56], sizes = [8, 8], strides = [1, 1]} : vector<8x64xf32> to vector<8x8xf32>
      %295 = vector.extract_strided_slice %16 {offsets = [0, 56], sizes = [8, 8], strides = [1, 1]} : vector<8x64xf32> to vector<8x8xf32>
      %cst_176 = arith.constant dense<0.000000e+00> : vector<8x8xf32>
      %296 = tpu.matmul %293, %294, %cst_176 {dimension_numbers = #tpu.dot_dimension_numbers<[1], [1], [0], [0], [0, 0, 1, 0], [], []>} : vector<8x8xf32>, vector<8x8xf32>, vector<8x8xf32> -> vector<8x8xf32>
      %cst_177 = arith.constant 0.353553385 : f32
      %297 = vector.broadcast %cst_177 : f32 to vector<8x8xf32>
      %298 = arith.mulf %296, %297 : vector<8x8xf32>
      %299 = arith.addf %298, %26 : vector<8x8xf32>
      %c7 = arith.constant 7 : index
      %c0_178 = arith.constant 0 : index
      %c0_179 = arith.constant 0 : index
      %300 = vector.load %arg10[%c7, %c0_178, %c0_179] : memref<8x8x1xf32, #tpu.memory_space<vmem>>, vector<1x8x1xf32>
      %301 = vector.shape_cast %300 : vector<1x8x1xf32> to vector<8x1xf32>
      %cst_180 = arith.constant dense<0xFF800000> : vector<8xf32>
      %302 = vector.multi_reduction <maximumf>, %299, %cst_180 [1] : vector<8x8xf32> to vector<8xf32>
      %303 = vector.shape_cast %302 : vector<8xf32> to vector<8x1xf32>
      %304 = arith.maximumf %301, %303 : vector<8x1xf32>
      %305 = arith.subf %301, %304 : vector<8x1xf32>
      %306 = math.exp %305 : vector<8x1xf32>
      %307 = vector.broadcast %304 : vector<8x1xf32> to vector<8x8xf32>
      %308 = arith.subf %299, %307 : vector<8x8xf32>
      %309 = math.exp %308 : vector<8x8xf32>
      %c7_181 = arith.constant 7 : index
      %c0_182 = arith.constant 0 : index
      %c0_183 = arith.constant 0 : index
      %310 = vector.load %arg11[%c7_181, %c0_182, %c0_183] : memref<8x8x1xf32, #tpu.memory_space<vmem>>, vector<1x8x1xf32>
      %311 = vector.shape_cast %310 : vector<1x8x1xf32> to vector<8x1xf32>
      %312 = arith.mulf %306, %311 : vector<8x1xf32>
      %cst_184 = arith.constant dense<0.000000e+00> : vector<8xf32>
      %313 = vector.multi_reduction <add>, %309, %cst_184 [1] : vector<8x8xf32> to vector<8xf32>
      %314 = vector.shape_cast %313 : vector<8xf32> to vector<8x1xf32>
      %315 = arith.addf %312, %314 : vector<8x1xf32>
      %c7_185 = arith.constant 7 : index
      %c0_186 = arith.constant 0 : index
      %c0_187 = arith.constant 0 : index
      %316 = vector.load %arg11[%c7_185, %c0_186, %c0_187] : memref<8x8x1xf32, #tpu.memory_space<vmem>>, vector<1x8x1xf32>
      %317 = vector.shape_cast %316 : vector<1x8x1xf32> to vector<8x1xf32>
      %318 = vector.shape_cast %315 : vector<8x1xf32> to vector<1x8x1xf32>
      tpu.vector_store %arg11[%c7_185, %c0_186, %c0_187], %318 {strides = array<i32>} : memref<8x8x1xf32, #tpu.memory_space<vmem>>, vector<1x8x1xf32>,
      %c7_188 = arith.constant 7 : index
      %c0_189 = arith.constant 0 : index
      %c0_190 = arith.constant 0 : index
      %319 = vector.load %arg12[%c7_188, %c0_189, %c0_190] : memref<8x8x8xf32, #tpu.memory_space<vmem>>, vector<1x8x8xf32>
      %320 = vector.shape_cast %319 : vector<1x8x8xf32> to vector<8x8xf32>
      %321 = vector.broadcast %306 : vector<8x1xf32> to vector<8x8xf32>
      %322 = arith.mulf %321, %320 : vector<8x8xf32>
      %cst_191 = arith.constant dense<0.000000e+00> : vector<8x8xf32>
      %323 = tpu.matmul %309, %295, %cst_191 {dimension_numbers = #tpu.dot_dimension_numbers<[1], [0], [0], [1], [0, 0, 1, 1], [], []>} : vector<8x8xf32>, vector<8x8xf32>, vector<8x8xf32> -> vector<8x8xf32>
      %324 = arith.addf %322, %323 : vector<8x8xf32>
      %c7_192 = arith.constant 7 : index
      %c0_193 = arith.constant 0 : index
      %c0_194 = arith.constant 0 : index
      %325 = vector.load %arg12[%c7_192, %c0_193, %c0_194] : memref<8x8x8xf32, #tpu.memory_space<vmem>>, vector<1x8x8xf32>
      %326 = vector.shape_cast %325 : vector<1x8x8xf32> to vector<8x8xf32>
      %327 = vector.shape_cast %324 : vector<8x8xf32> to vector<1x8x8xf32>
      tpu.vector_store %arg12[%c7_192, %c0_193, %c0_194], %327 {strides = array<i32>} : memref<8x8x8xf32, #tpu.memory_space<vmem>>, vector<1x8x8xf32>,
      %c7_195 = arith.constant 7 : index
      %c0_196 = arith.constant 0 : index
      %c0_197 = arith.constant 0 : index
      %328 = vector.load %arg10[%c7_195, %c0_196, %c0_197] : memref<8x8x1xf32, #tpu.memory_space<vmem>>, vector<1x8x1xf32>
      %329 = vector.shape_cast %328 : vector<1x8x1xf32> to vector<8x1xf32>
      %330 = vector.shape_cast %304 : vector<8x1xf32> to vector<1x8x1xf32>
      tpu.vector_store %arg10[%c7_195, %c0_196, %c0_197], %330 {strides = array<i32>} : memref<8x8x1xf32, #tpu.memory_space<vmem>>, vector<1x8x1xf32>,
    } else {
    }
    %c0_i32_4 = arith.constant 0 : i32
    %10 = arith.cmpi eq, %arg2, %c0_i32_4 : i32
    %11 = arith.extui %10 : i1 to i32
    %c0_i32_5 = arith.constant 0 : i32
    %12 = arith.cmpi ne, %11, %c0_i32_5 : i32
    scf.if %12 {
      %c0 = arith.constant 0 : index
      %c0_6 = arith.constant 0 : index
      %c0_7 = arith.constant 0 : index
      %13 = vector.load %arg11[%c0, %c0_6, %c0_7] : memref<8x8x1xf32, #tpu.memory_space<vmem>>, vector<1x8x1xf32>
      %14 = vector.shape_cast %13 : vector<1x8x1xf32> to vector<8x1xf32>
      %15 = tpu.reciprocal %14 {approx = true} : vector<8x1xf32> -> vector<8x1xf32>
      %c0_8 = arith.constant 0 : index
      %c0_9 = arith.constant 0 : index
      %c0_10 = arith.constant 0 : index
      %16 = vector.load %arg12[%c0_8, %c0_9, %c0_10] : memref<8x8x8xf32, #tpu.memory_space<vmem>>, vector<1x8x8xf32>
      %17 = vector.shape_cast %16 : vector<1x8x8xf32> to vector<8x8xf32>
      %18 = vector.broadcast %15 : vector<8x1xf32> to vector<8x8xf32>
      %19 = arith.mulf %17, %18 : vector<8x8xf32>
      %c1 = arith.constant 1 : index
      %c0_11 = arith.constant 0 : index
      %c0_12 = arith.constant 0 : index
      %20 = vector.load %arg11[%c1, %c0_11, %c0_12] : memref<8x8x1xf32, #tpu.memory_space<vmem>>, vector<1x8x1xf32>
      %21 = vector.shape_cast %20 : vector<1x8x1xf32> to vector<8x1xf32>
      %22 = tpu.reciprocal %21 {approx = true} : vector<8x1xf32> -> vector<8x1xf32>
      %c1_13 = arith.constant 1 : index
      %c0_14 = arith.constant 0 : index
      %c0_15 = arith.constant 0 : index
      %23 = vector.load %arg12[%c1_13, %c0_14, %c0_15] : memref<8x8x8xf32, #tpu.memory_space<vmem>>, vector<1x8x8xf32>
      %24 = vector.shape_cast %23 : vector<1x8x8xf32> to vector<8x8xf32>
      %25 = vector.broadcast %22 : vector<8x1xf32> to vector<8x8xf32>
      %26 = arith.mulf %24, %25 : vector<8x8xf32>
      %c2 = arith.constant 2 : index
      %c0_16 = arith.constant 0 : index
      %c0_17 = arith.constant 0 : index
      %27 = vector.load %arg11[%c2, %c0_16, %c0_17] : memref<8x8x1xf32, #tpu.memory_space<vmem>>, vector<1x8x1xf32>
      %28 = vector.shape_cast %27 : vector<1x8x1xf32> to vector<8x1xf32>
      %29 = tpu.reciprocal %28 {approx = true} : vector<8x1xf32> -> vector<8x1xf32>
      %c2_18 = arith.constant 2 : index
      %c0_19 = arith.constant 0 : index
      %c0_20 = arith.constant 0 : index
      %30 = vector.load %arg12[%c2_18, %c0_19, %c0_20] : memref<8x8x8xf32, #tpu.memory_space<vmem>>, vector<1x8x8xf32>
      %31 = vector.shape_cast %30 : vector<1x8x8xf32> to vector<8x8xf32>
      %32 = vector.broadcast %29 : vector<8x1xf32> to vector<8x8xf32>
      %33 = arith.mulf %31, %32 : vector<8x8xf32>
      %c3 = arith.constant 3 : index
      %c0_21 = arith.constant 0 : index
      %c0_22 = arith.constant 0 : index
      %34 = vector.load %arg11[%c3, %c0_21, %c0_22] : memref<8x8x1xf32, #tpu.memory_space<vmem>>, vector<1x8x1xf32>
      %35 = vector.shape_cast %34 : vector<1x8x1xf32> to vector<8x1xf32>
      %36 = tpu.reciprocal %35 {approx = true} : vector<8x1xf32> -> vector<8x1xf32>
      %c3_23 = arith.constant 3 : index
      %c0_24 = arith.constant 0 : index
      %c0_25 = arith.constant 0 : index
      %37 = vector.load %arg12[%c3_23, %c0_24, %c0_25] : memref<8x8x8xf32, #tpu.memory_space<vmem>>, vector<1x8x8xf32>
      %38 = vector.shape_cast %37 : vector<1x8x8xf32> to vector<8x8xf32>
      %39 = vector.broadcast %36 : vector<8x1xf32> to vector<8x8xf32>
      %40 = arith.mulf %38, %39 : vector<8x8xf32>
      %c4 = arith.constant 4 : index
      %c0_26 = arith.constant 0 : index
      %c0_27 = arith.constant 0 : index
      %41 = vector.load %arg11[%c4, %c0_26, %c0_27] : memref<8x8x1xf32, #tpu.memory_space<vmem>>, vector<1x8x1xf32>
      %42 = vector.shape_cast %41 : vector<1x8x1xf32> to vector<8x1xf32>
      %43 = tpu.reciprocal %42 {approx = true} : vector<8x1xf32> -> vector<8x1xf32>
      %c4_28 = arith.constant 4 : index
      %c0_29 = arith.constant 0 : index
      %c0_30 = arith.constant 0 : index
      %44 = vector.load %arg12[%c4_28, %c0_29, %c0_30] : memref<8x8x8xf32, #tpu.memory_space<vmem>>, vector<1x8x8xf32>
      %45 = vector.shape_cast %44 : vector<1x8x8xf32> to vector<8x8xf32>
      %46 = vector.broadcast %43 : vector<8x1xf32> to vector<8x8xf32>
      %47 = arith.mulf %45, %46 : vector<8x8xf32>
      %c5 = arith.constant 5 : index
      %c0_31 = arith.constant 0 : index
      %c0_32 = arith.constant 0 : index
      %48 = vector.load %arg11[%c5, %c0_31, %c0_32] : memref<8x8x1xf32, #tpu.memory_space<vmem>>, vector<1x8x1xf32>
      %49 = vector.shape_cast %48 : vector<1x8x1xf32> to vector<8x1xf32>
      %50 = tpu.reciprocal %49 {approx = true} : vector<8x1xf32> -> vector<8x1xf32>
      %c5_33 = arith.constant 5 : index
      %c0_34 = arith.constant 0 : index
      %c0_35 = arith.constant 0 : index
      %51 = vector.load %arg12[%c5_33, %c0_34, %c0_35] : memref<8x8x8xf32, #tpu.memory_space<vmem>>, vector<1x8x8xf32>
      %52 = vector.shape_cast %51 : vector<1x8x8xf32> to vector<8x8xf32>
      %53 = vector.broadcast %50 : vector<8x1xf32> to vector<8x8xf32>
      %54 = arith.mulf %52, %53 : vector<8x8xf32>
      %c6 = arith.constant 6 : index
      %c0_36 = arith.constant 0 : index
      %c0_37 = arith.constant 0 : index
      %55 = vector.load %arg11[%c6, %c0_36, %c0_37] : memref<8x8x1xf32, #tpu.memory_space<vmem>>, vector<1x8x1xf32>
      %56 = vector.shape_cast %55 : vector<1x8x1xf32> to vector<8x1xf32>
      %57 = tpu.reciprocal %56 {approx = true} : vector<8x1xf32> -> vector<8x1xf32>
      %c6_38 = arith.constant 6 : index
      %c0_39 = arith.constant 0 : index
      %c0_40 = arith.constant 0 : index
      %58 = vector.load %arg12[%c6_38, %c0_39, %c0_40] : memref<8x8x8xf32, #tpu.memory_space<vmem>>, vector<1x8x8xf32>
      %59 = vector.shape_cast %58 : vector<1x8x8xf32> to vector<8x8xf32>
      %60 = vector.broadcast %57 : vector<8x1xf32> to vector<8x8xf32>
      %61 = arith.mulf %59, %60 : vector<8x8xf32>
      %c7 = arith.constant 7 : index
      %c0_41 = arith.constant 0 : index
      %c0_42 = arith.constant 0 : index
      %62 = vector.load %arg11[%c7, %c0_41, %c0_42] : memref<8x8x1xf32, #tpu.memory_space<vmem>>, vector<1x8x1xf32>
      %63 = vector.shape_cast %62 : vector<1x8x1xf32> to vector<8x1xf32>
      %64 = tpu.reciprocal %63 {approx = true} : vector<8x1xf32> -> vector<8x1xf32>
      %c7_43 = arith.constant 7 : index
      %c0_44 = arith.constant 0 : index
      %c0_45 = arith.constant 0 : index
      %65 = vector.load %arg12[%c7_43, %c0_44, %c0_45] : memref<8x8x8xf32, #tpu.memory_space<vmem>>, vector<1x8x8xf32>
      %66 = vector.shape_cast %65 : vector<1x8x8xf32> to vector<8x8xf32>
      %67 = vector.broadcast %64 : vector<8x1xf32> to vector<8x8xf32>
      %68 = arith.mulf %66, %67 : vector<8x8xf32>
      %69 = tpu.concatenate %19, %26, %33, %40, %47, %54, %61, %68 in 1 : vector<8x8xf32>, vector<8x8xf32>, vector<8x8xf32>, vector<8x8xf32>, vector<8x8xf32>, vector<8x8xf32>, vector<8x8xf32>, vector<8x8xf32> -> vector<8x64xf32>
      %c0_46 = arith.constant 0 : index
      %c0_47 = arith.constant 0 : index
      %70 = vector.load %arg7[%c0_46, %c0_47] : memref<64x64xf32, #tpu.memory_space<vmem>>, vector<64x64xf32>
      %cst = arith.constant dense<0.000000e+00> : vector<8x64xf32>
      %71 = tpu.matmul %69, %70, %cst {dimension_numbers = #tpu.dot_dimension_numbers<[1], [0], [0], [1], [0, 0, 1, 1], [], []>} : vector<8x64xf32>, vector<64x64xf32>, vector<8x64xf32> -> vector<8x64xf32>
      %c0_48 = arith.constant 0 : index
      %c0_49 = arith.constant 0 : index
      %c0_50 = arith.constant 0 : index
      %72 = vector.load %arg8[%c0_48, %c0_49, %c0_50] : memref<1x8x64xf32, #tpu.memory_space<vmem>>, vector<1x8x64xf32>
      %73 = vector.shape_cast %72 : vector<1x8x64xf32> to vector<8x64xf32>
      %74 = vector.shape_cast %71 : vector<8x64xf32> to vector<1x8x64xf32>
      tpu.vector_store %arg8[%c0_48, %c0_49, %c0_50], %74 {strides = array<i32>} : memref<1x8x64xf32, #tpu.memory_space<vmem>>, vector<1x8x64xf32>,
    } else {
    }
    return
  }
  func.func @transform_0(%arg0: i32, %arg1: i32, %arg2: i32) -> (i32, i32, i32) {
    %c0_i32 = arith.constant 0 : i32
    %c0_i32_0 = arith.constant 0 : i32
    return %arg0, %arg1, %c0_i32 : i32, i32, i32
  }
  func.func @transform_1(%arg0: i32, %arg1: i32, %arg2: i32) -> (i32, i32, i32) {
    %c0_i32 = arith.constant 0 : i32
    %c0_i32_0 = arith.constant 0 : i32
    return %arg0, %arg2, %c0_i32 : i32, i32, i32
  }
  func.func @transform_2(%arg0: i32, %arg1: i32, %arg2: i32) -> (i32, i32, i32) {
    %c0_i32 = arith.constant 0 : i32
    %c0_i32_0 = arith.constant 0 : i32
    return %arg0, %arg2, %c0_i32 : i32, i32, i32
  }
  func.func @transform_3(%arg0: i32, %arg1: i32, %arg2: i32) -> (i32, i32) {
    %c0_i32 = arith.constant 0 : i32
    %c0_i32_0 = arith.constant 0 : i32
    %c0_i32_1 = arith.constant 0 : i32
    return %c0_i32, %c0_i32_0 : i32, i32
  }
  func.func @transform_4(%arg0: i32, %arg1: i32, %arg2: i32) -> (i32, i32) {
    %c0_i32 = arith.constant 0 : i32
    %c0_i32_0 = arith.constant 0 : i32
    %c0_i32_1 = arith.constant 0 : i32
    return %c0_i32, %c0_i32_0 : i32, i32
  }
  func.func @transform_5(%arg0: i32, %arg1: i32, %arg2: i32) -> (i32, i32, i32) {
    %c0_i32 = arith.constant 0 : i32
    %c0_i32_0 = arith.constant 0 : i32
    return %arg0, %arg1, %c0_i32 : i32, i32, i32
  }
}

</mosaic_0001>

<llo_original>
// kernel: tpu_custom_call.1
$region0: #{tpu_custom_call.1}
  #allocation0 [shape = 'u32[]', space=smem, size = 0x4, offset = 0x4, fixed_abs, tag = 'smem constant byte address 0x4 - core index']
  #allocation1 [shape = 'u32[144,128]{1,0:T(1,128)}', space=vmem, size = 0x12000, scoped, tag = 'internal scratch']
  #allocation2 [shape = 'f32[8,64]{1,0:T(8,128)}', space=vmem, size = 0x1000, scoped, tag = 'scratch operand']
  #allocation3 [shape = 'f32[8,8,1]{2,1,0:T(8,128)}', space=vmem, size = 0x8000, scoped, tag = 'scratch operand']
  #allocation4 [shape = 'f32[8,8,1]{2,1,0:T(8,128)}', space=vmem, size = 0x8000, scoped, tag = 'scratch operand']
  #allocation5 [shape = 'f32[8,8,8]{2,1,0:T(8,128)}', space=vmem, size = 0x8000, scoped, tag = 'scratch operand']
  %s0 = inlined_call_operand.hbm [shape: f32[2,8,64], index: 0, kind: input, shape index: {}]
  %s1 = inlined_call_operand.hbm [shape: f32[2,8,64], index: 1, kind: input, shape index: {}]
  %s2 = inlined_call_operand.hbm [shape: f32[2,8,64], index: 2, kind: input, shape index: {}]
  %s3 = inlined_call_operand.hbm [shape: f32[64,64], index: 3, kind: input, shape index: {}]
  %s4 = inlined_call_operand.hbm [shape: f32[64,64], index: 4, kind: input, shape index: {}]
  %s5 = inlined_call_operand.hbm [shape: f32[2,8,64], index: 5, kind: output, shape index: {}]
  %s6 = sld [smem:[#allocation0]]
  $region85: #{tpu_custom_call.1} parent=0
    _
  %s8 = ssub.s32 1, %s6
  %s9 = scalar_select 0, %s8, %s6
  $region1: #{tpu_custom_call.1} parent=0
    #allocation6 [shape = 'u8[8192]{0}', space=vmem, size = 0x2000, scoped, tag = 'input window, operand 0']
    #allocation7 [shape = 's32[2]{0}', space=sflag, size = 0x8, scoped, tag = 'scoped memory for tpu_custom_call.1']
    #allocation8 [shape = 's32[2]{0}', space=sflag, size = 0x8, scoped, tag = 'scoped memory for tpu_custom_call.1']
    #allocation9 [shape = 'u8[8192]{0}', space=vmem, size = 0x2000, scoped, tag = 'input window, operand 1']
    #allocation10 [shape = 's32[2]{0}', space=sflag, size = 0x8, scoped, tag = 'scoped memory for tpu_custom_call.1']
    #allocation11 [shape = 'u8[8192]{0}', space=vmem, size = 0x2000, scoped, tag = 'input window, operand 2']
    #allocation12 [shape = 'u8[32768]{0}', space=vmem, size = 0x8000, scoped, tag = 'input window, operand 3, single buffered']
    #allocation13 [shape = 's32[1]{0}', space=sflag, size = 0x4, scoped, tag = 'scoped memory for tpu_custom_call.1']
    #allocation14 [shape = 'u8[32768]{0}', space=vmem, size = 0x8000, scoped, tag = 'input window, operand 4, single buffered']
    #allocation15 [shape = 'u8[8192]{0}', space=vmem, size = 0x2000, scoped, tag = 'output window, operand 0']
    %10 = vsyncpa [#allocation7], 0
    %s11 = scalar_lea.sflag [#allocation7], 1
    %12 = vsyncpa %s11, 0
    %13 = vsyncpa [#allocation10], 0
    %s14 = scalar_lea.sflag [#allocation10], 1
    %15 = vsyncpa %s14, 0
    %16 = vsyncpa [#allocation13], 0
    %17 = vsyncpa [#allocation8], 0
    %s18 = scalar_lea.sflag [#allocation8], 1
    %19 = vsyncpa %s18, 0
    loop: start=0, step=1, limit=4
    $region2: #{tpu_custom_call.1} parent=1 // loop_pre_header
      _
    $region3: #{tpu_custom_call.1} parent=1 // loop_header
      %s21 = sphi 0, %s25
      %p22 = scmp.ge.s32.totalorder %s21, 4
      %s28 = sphi 0, %s47
      %s29 = sphi 0, %s43
      %s30 = sphi 0, %s39
      %s31 = sphi 0, %s28
      %s32 = sphi 0, %s29
      %s33 = sphi 0, %s30
      %s34 = sphi 0, %s31
      %s35 = sphi 0, %s32
      %s36 = sphi 0, %s33
      %s52 = sphi 0, %s54
      %s55 = sphi 0, %s52
      %s56 = sphi 0, %s55
      %s72 = sphi 0, %s56
      %s80 = sphi 0, %s82
      %s83 = sphi 0, %s80
      %s84 = sphi 0, %s83
      %s100 = sphi 0, %s84
      %s108 = sphi 0, %s110
      %s111 = sphi 0, %s108
      %s112 = sphi 0, %s111
      %s128 = sphi 0, %s112
      %s132 = sphi 0, %s132
      %s134 = sphi 0, %s132
      %s135 = sphi 0, %s134
      %s149 = sphi 0, %s135
      %s153 = sphi 0, %s153
      %s155 = sphi 0, %s153
      %s156 = sphi 0, %s155
      %s170 = sphi 0, %s156
      %s178 = sphi 0, %s180
      %s181 = sphi 0, %s178
      %s182 = sphi 0, %s181
      %s198 = sphi 0, %s182
    $region4: #{tpu_custom_call.1} parent=1 // loop_header_branch
      %24 = sbr.rel (%p22) target = $region8
    $region5: #{tpu_custom_call.1} parent=1 // loop_body
      %s26 = ssub.s32 %s21, 1
      %s27 = ssub.s32 %s21, 2
      %s37 = sadd.s32 1, %s30
      %p38 = scmp.ge.s32.totalorder %s37, 1
      %s39 = scalar_select %p38, 0, %s37
      %s40 = sadd.s32 1, %s29
      %s41 = scalar_select %p38, %s40, %s29
      %p42 = scmp.ge.s32.totalorder %s41, 1
      %s43 = scalar_select %p42, 0, %s41
      %s44 = sadd.s32 1, %s28
      %s45 = scalar_select %p42, %s44, %s28
      %p46 = scmp.ge.s32.totalorder %s45, 2
      %s47 = scalar_select %p46, 0, %s45
      %s48 = ssub.s32 %s28, %s47
      %s49 = ssub.s32 %s29, %s43
      %s50 = sor.u32 %s48, %s49
      %p51 = scmp.eq.s32.totalorder %s50, 0
      %s53 = sadd.s32 %s52, 1
      %s54 = scalar_select %p51, %s52, %s53
      %p57 = pneg %p51
      %p58 = scmp.eq.s32.totalorder %s21, 1
      %p59 = por %p57, %p58
      %p60 = scmp.ne.s32.totalorder %s52, %s55
      %p61 = scmp.eq.s32.totalorder %s21, 0
      %p62 = por %p60, %p61
      %p63 = scmp.ne.s32.totalorder %s52, %s55
      %p64 = scmp.eq.s32.totalorder %s26, 1
      %p65 = por %p63, %p64
      %p66 = scmp.ne.s32.totalorder %s55, %s56
      %p67 = scmp.eq.s32.totalorder %s26, 0
      %p68 = por %p66, %p67
      %p69 = scmp.ne.s32.totalorder %s55, %s56
      %p70 = scmp.eq.s32.totalorder %s27, 1
      %p71 = por %p69, %p70
      %p73 = scmp.ne.s32.totalorder %s56, %s72
      %p74 = scmp.eq.s32.totalorder %s27, 0
      %p75 = por %p73, %p74
      %s76 = ssub.s32 %s28, %s47
      %s77 = ssub.s32 %s30, %s39
      %s78 = sor.u32 %s76, %s77
      %p79 = scmp.eq.s32.totalorder %s78, 0
      %s81 = sadd.s32 %s80, 1
      %s82 = scalar_select %p79, %s80, %s81
      %p85 = pneg %p79
      %p86 = scmp.eq.s32.totalorder %s21, 1
      %p87 = por %p85, %p86
      %p88 = scmp.ne.s32.totalorder %s80, %s83
      %p89 = scmp.eq.s32.totalorder %s21, 0
      %p90 = por %p88, %p89
      %p91 = scmp.ne.s32.totalorder %s80, %s83
      %p92 = scmp.eq.s32.totalorder %s26, 1
      %p93 = por %p91, %p92
      %p94 = scmp.ne.s32.totalorder %s83, %s84
      %p95 = scmp.eq.s32.totalorder %s26, 0
      %p96 = por %p94, %p95
      %p97 = scmp.ne.s32.totalorder %s83, %s84
      %p98 = scmp.eq.s32.totalorder %s27, 1
      %p99 = por %p97, %p98
      %p101 = scmp.ne.s32.totalorder %s84, %s100
      %p102 = scmp.eq.s32.totalorder %s27, 0
      %p103 = por %p101, %p102
      %s104 = ssub.s32 %s28, %s47
      %s105 = ssub.s32 %s30, %s39
      %s106 = sor.u32 %s104, %s105
      %p107 = scmp.eq.s32.totalorder %s106, 0
      %s109 = sadd.s32 %s108, 1
      %s110 = scalar_select %p107, %s108, %s109
      %p113 = pneg %p107
      %p114 = scmp.eq.s32.totalorder %s21, 1
      %p115 = por %p113, %p114
      %p116 = scmp.ne.s32.totalorder %s108, %s111
      %p117 = scmp.eq.s32.totalorder %s21, 0
      %p118 = por %p116, %p117
      %p119 = scmp.ne.s32.totalorder %s108, %s111
      %p120 = scmp.eq.s32.totalorder %s26, 1
      %p121 = por %p119, %p120
      %p122 = scmp.ne.s32.totalorder %s111, %s112
      %p123 = scmp.eq.s32.totalorder %s26, 0
      %p124 = por %p122, %p123
      %p125 = scmp.ne.s32.totalorder %s111, %s112
      %p126 = scmp.eq.s32.totalorder %s27, 1
      %p127 = por %p125, %p126
      %p129 = scmp.ne.s32.totalorder %s112, %s128
      %p130 = scmp.eq.s32.totalorder %s27, 0
      %p131 = por %p129, %p130
      %s133 = sadd.s32 %s132, 1
      %p136 = scmp.eq.s32.totalorder %s21, 1
      %p137 = scmp.ne.s32.totalorder %s132, %s134
      %p138 = scmp.eq.s32.totalorder %s21, 0
      %p139 = por %p137, %p138
      %p140 = scmp.ne.s32.totalorder %s132, %s134
      %p141 = scmp.eq.s32.totalorder %s26, 1
      %p142 = por %p140, %p141
      %p143 = scmp.ne.s32.totalorder %s134, %s135
      %p144 = scmp.eq.s32.totalorder %s26, 0
      %p145 = por %p143, %p144
      %p146 = scmp.ne.s32.totalorder %s134, %s135
      %p147 = scmp.eq.s32.totalorder %s27, 1
      %p148 = por %p146, %p147
      %p150 = scmp.ne.s32.totalorder %s135, %s149
      %p151 = scmp.eq.s32.totalorder %s27, 0
      %p152 = por %p150, %p151
      %s154 = sadd.s32 %s153, 1
      %p157 = scmp.eq.s32.totalorder %s21, 1
      %p158 = scmp.ne.s32.totalorder %s153, %s155
      %p159 = scmp.eq.s32.totalorder %s21, 0
      %p160 = por %p158, %p159
      %p161 = scmp.ne.s32.totalorder %s153, %s155
      %p162 = scmp.eq.s32.totalorder %s26, 1
      %p163 = por %p161, %p162
      %p164 = scmp.ne.s32.totalorder %s155, %s156
      %p165 = scmp.eq.s32.totalorder %s26, 0
      %p166 = por %p164, %p165
      %p167 = scmp.ne.s32.totalorder %s155, %s156
      %p168 = scmp.eq.s32.totalorder %s27, 1
      %p169 = por %p167, %p168
      %p171 = scmp.ne.s32.totalorder %s156, %s170
      %p172 = scmp.eq.s32.totalorder %s27, 0
      %p173 = por %p171, %p172
      %s174 = ssub.s32 %s28, %s47
      %s175 = ssub.s32 %s29, %s43
      %s176 = sor.u32 %s174, %s175
      %p177 = scmp.eq.s32.totalorder %s176, 0
      %s179 = sadd.s32 %s178, 1
      %s180 = scalar_select %p177, %s178, %s179
      %p183 = pneg %p177
      %p184 = scmp.eq.s32.totalorder %s21, 1
      %p185 = por %p183, %p184
      %p186 = scmp.ne.s32.totalorder %s178, %s181
      %p187 = scmp.eq.s32.totalorder %s21, 0
      %p188 = por %p186, %p187
      %p189 = scmp.ne.s32.totalorder %s178, %s181
      %p190 = scmp.eq.s32.totalorder %s26, 1
      %p191 = por %p189, %p190
      %p192 = scmp.ne.s32.totalorder %s181, %s182
      %p193 = scmp.eq.s32.totalorder %s26, 0
      %p194 = por %p192, %p193
      %p195 = scmp.ne.s32.totalorder %s181, %s182
      %p196 = scmp.eq.s32.totalorder %s27, 1
      %p197 = por %p195, %p196
      %p199 = scmp.ne.s32.totalorder %s182, %s198
      %p200 = scmp.eq.s32.totalorder %s27, 0
      %p201 = por %p199, %p200
      %p202 = scmp.le.s32.totalorder 1, %s21
      %p203 = scmp.lt.s32.totalorder %s21, 3
      %p204 = pnand %p202, %p203
      %p205 = pneg %p204
      // Predicated region
      $region9: #{tpu_custom_call.1} parent=5 // pred_check
        _
      $region10: #{tpu_custom_call.1} parent=5 // pred_check_branch
        %207 = sbr.rel (%p204) target = $region12
      $region11: #{tpu_custom_call.1} parent=5 // pred_region
        %s208 = ssub.s32 %s21, 1
        // Predicated region
        $region13: #{tpu_custom_call.1} parent=11 // pred_check
          %p209 = pneg %p145
        $region14: #{tpu_custom_call.1} parent=11 // pred_check_branch
          %211 = sbr.rel (%p209) target = $region16
        $region15: #{tpu_custom_call.1} parent=11 // pred_region
          %s213 = ssub.s32 1024, 1024
          %214 = vsyncadd [#allocation13], %s213
          %s215 = sshll.u32 [#allocation12], 4
          %s216 = int_to_ptr.vmem [resolvable:$true] %s215
          %221 = dma.hbm_to_vmem [thread:$0]  %s3, 1024, %s216, [#allocation13], 128, 128, 8
        $region16: #{tpu_custom_call.1} parent=11 // pred_fallthru
          _
        // Predicated region
        $region17: #{tpu_custom_call.1} parent=11 // pred_check
          %p222 = pneg %p166
        $region18: #{tpu_custom_call.1} parent=11 // pred_check_branch
          %224 = sbr.rel (%p222) target = $region20
        $region19: #{tpu_custom_call.1} parent=11 // pred_region
          %s226 = ssub.s32 1024, 1024
          %227 = vsyncadd [#allocation13], %s226
          %s228 = sshll.u32 [#allocation14], 4
          %s229 = int_to_ptr.vmem [resolvable:$true] %s228
          %234 = dma.hbm_to_vmem [thread:$0]  %s4, 1024, %s229, [#allocation13], 128, 128, 8
        $region20: #{tpu_custom_call.1} parent=11 // pred_fallthru
          _
      $region12: #{tpu_custom_call.1} parent=5 // pred_fallthru
        _
      %p235 = scmp.lt.s32.totalorder %s21, 2
      // Predicated region
      $region21: #{tpu_custom_call.1} parent=5 // pred_check
        %p236 = pneg %p235
      $region22: #{tpu_custom_call.1} parent=5 // pred_check_branch
        %238 = sbr.rel (%p236) target = $region24
      $region23: #{tpu_custom_call.1} parent=5 // pred_region
        // Predicated region
        $region25: #{tpu_custom_call.1} parent=23 // pred_check
          %p239 = pneg %p62
        $region26: #{tpu_custom_call.1} parent=23 // pred_check_branch
          %241 = sbr.rel (%p239) target = $region28
        $region27: #{tpu_custom_call.1} parent=23 // pred_region
          %s242 = sand.u32 %s52, 1
          %s243 = scalar_lea.sflag [#allocation7], %s242
          %s244 = sand.u32 %s52, 1
          %s245 = smul.addr %s244, 8
          %s246 = scalar_lea.vmem [#allocation6], %s245
          %s248 = ssub.s32 128, 128
          %249 = vsyncadd %s243, %s248
          %s250 = sadd.s32 %s29, %s28
          %s251 = smul.addr %s250, 128
          %s252 = scalar_lea.hbm %s0, %s251
          %s254 = sshll.u32 %s246, 4
          %s255 = int_to_ptr.vmem [resolvable:$true] %s254
          %257 = dma.hbm_to_vmem [thread:$0]  %s252, 128, %s255, %s243
        $region28: #{tpu_custom_call.1} parent=23 // pred_fallthru
          _
        // Predicated region
        $region29: #{tpu_custom_call.1} parent=23 // pred_check
          %p258 = pneg %p90
        $region30: #{tpu_custom_call.1} parent=23 // pred_check_branch
          %260 = sbr.rel (%p258) target = $region32
        $region31: #{tpu_custom_call.1} parent=23 // pred_region
          %s261 = sand.u32 %s21, 1
          %s262 = scalar_lea.sflag [#allocation10], %s261
          %s263 = sand.u32 %s80, 1
          %s264 = smul.addr %s263, 8
          %s265 = scalar_lea.vmem [#allocation9], %s264
          %s267 = ssub.s32 128, 128
          %268 = vsyncadd %s262, %s267
          %s269 = sadd.s32 %s30, %s28
          %s270 = smul.addr %s269, 128
          %s271 = scalar_lea.hbm %s1, %s270
          %s273 = sshll.u32 %s265, 4
          %s274 = int_to_ptr.vmem [resolvable:$true] %s273
          %276 = dma.hbm_to_vmem [thread:$0]  %s271, 128, %s274, %s262
        $region32: #{tpu_custom_call.1} parent=23 // pred_fallthru
          _
        // Predicated region
        $region33: #{tpu_custom_call.1} parent=23 // pred_check
          %p277 = pneg %p118
        $region34: #{tpu_custom_call.1} parent=23 // pred_check_branch
          %279 = sbr.rel (%p277) target = $region36
        $region35: #{tpu_custom_call.1} parent=23 // pred_region
          %s280 = sand.u32 %s21, 1
          %s281 = scalar_lea.sflag [#allocation10], %s280
          %s282 = sand.u32 %s108, 1
          %s283 = smul.addr %s282, 8
          %s284 = scalar_lea.vmem [#allocation11], %s283
          %s286 = ssub.s32 128, 128
          %287 = vsyncadd %s281, %s286
          %s288 = sadd.s32 %s30, %s28
          %s289 = smul.addr %s288, 128
          %s290 = scalar_lea.hbm %s2, %s289
          %s292 = sshll.u32 %s284, 4
          %s293 = int_to_ptr.vmem [resolvable:$true] %s292
          %295 = dma.hbm_to_vmem [thread:$0]  %s290, 128, %s293, %s281
        $region36: #{tpu_custom_call.1} parent=23 // pred_fallthru
          _
      $region24: #{tpu_custom_call.1} parent=5 // pred_fallthru
        _
      %p296 = scmp.le.s32.totalorder 1, %s21
      %p297 = scmp.lt.s32.totalorder %s21, 3
      %p298 = pnand %p296, %p297
      %p299 = pneg %p298
      // Predicated region
      $region37: #{tpu_custom_call.1} parent=5 // pred_check
        _
      $region38: #{tpu_custom_call.1} parent=5 // pred_check_branch
        %301 = sbr.rel (%p298) target = $region40
      $region39: #{tpu_custom_call.1} parent=5 // pred_region
        %s302 = ssub.s32 %s21, 1
        %s303 = sand.u32 %s55, 1
        %s304 = scalar_lea.sflag [#allocation7], %s303
        %s305 = sand.u32 %s55, 1
        %s306 = smul.addr %s305, 8
        %s307 = scalar_lea.vmem [#allocation6], %s306
        // Predicated region
        $region41: #{tpu_custom_call.1} parent=39 // pred_check
          %p308 = pneg %p68
        $region42: #{tpu_custom_call.1} parent=39 // pred_check_branch
          %310 = sbr.rel (%p308) target = $region44
        $region43: #{tpu_custom_call.1} parent=39 // pred_region
          %311 = dma.done %s304, 128
        $region44: #{tpu_custom_call.1} parent=39 // pred_fallthru
          _
        %s312 = sand.u32 %s26, 1
        %s313 = scalar_lea.sflag [#allocation10], %s312
        %s314 = sand.u32 %s83, 1
        %s315 = smul.addr %s314, 8
        %s316 = scalar_lea.vmem [#allocation9], %s315
        // Predicated region
        $region45: #{tpu_custom_call.1} parent=39 // pred_check
          %p317 = pneg %p96
        $region46: #{tpu_custom_call.1} parent=39 // pred_check_branch
          %319 = sbr.rel (%p317) target = $region48
        $region47: #{tpu_custom_call.1} parent=39 // pred_region
          %320 = dma.done %s313, 128
        $region48: #{tpu_custom_call.1} parent=39 // pred_fallthru
          _
        %s321 = sand.u32 %s26, 1
        %s322 = scalar_lea.sflag [#allocation10], %s321
        %s323 = sand.u32 %s111, 1
        %s324 = smul.addr %s323, 8
        %s325 = scalar_lea.vmem [#allocation11], %s324
        // Predicated region
        $region49: #{tpu_custom_call.1} parent=39 // pred_check
          %p326 = pneg %p124
        $region50: #{tpu_custom_call.1} parent=39 // pred_check_branch
          %328 = sbr.rel (%p326) target = $region52
        $region51: #{tpu_custom_call.1} parent=39 // pred_region
          %329 = dma.done %s322, 128
        $region52: #{tpu_custom_call.1} parent=39 // pred_fallthru
          _
        // Predicated region
        $region53: #{tpu_custom_call.1} parent=39 // pred_check
          %p330 = pneg %p145
        $region54: #{tpu_custom_call.1} parent=39 // pred_check_branch
          %332 = sbr.rel (%p330) target = $region56
        $region55: #{tpu_custom_call.1} parent=39 // pred_region
          %333 = dma.done [#allocation13], 1024
        $region56: #{tpu_custom_call.1} parent=39 // pred_fallthru
          _
        // Predicated region
        $region57: #{tpu_custom_call.1} parent=39 // pred_check
          %p334 = pneg %p166
        $region58: #{tpu_custom_call.1} parent=39 // pred_check_branch
          %336 = sbr.rel (%p334) target = $region60
        $region59: #{tpu_custom_call.1} parent=39 // pred_region
          %337 = dma.done [#allocation13], 1024
        $region60: #{tpu_custom_call.1} parent=39 // pred_fallthru
          _
        %s338 = sand.u32 %s55, 1
        %s339 = scalar_lea.sflag [#allocation7], %s338
        %s340 = sand.u32 %s55, 1
        %s341 = smul.addr %s340, 8
        %s342 = scalar_lea.vmem [#allocation6], %s341
        %p343 = pneg %p68
        %p344 = pneg %p65
        %s345 = sand.u32 %s26, 1
        %s346 = scalar_lea.sflag [#allocation10], %s345
        %s347 = sand.u32 %s83, 1
        %s348 = smul.addr %s347, 8
        %s349 = scalar_lea.vmem [#allocation9], %s348
        %p350 = pneg %p96
        %p351 = pneg %p93
        %s352 = sand.u32 %s26, 1
        %s353 = scalar_lea.sflag [#allocation10], %s352
        %s354 = sand.u32 %s111, 1
        %s355 = smul.addr %s354, 8
        %s356 = scalar_lea.vmem [#allocation11], %s355
        %p357 = pneg %p124
        %p358 = pneg %p121
        %p359 = pneg %p145
        %p360 = pneg %p142
        %p361 = pneg %p166
        %p362 = pneg %p163
        %p363 = pneg %p194
        %p364 = pneg %p191
        %s365 = sand.u32 %s181, 1
        %s366 = scalar_lea.sflag [#allocation8], %s365
        %s367 = sand.u32 %s181, 1
        %s368 = smul.addr %s367, 8
        %s369 = scalar_lea.vmem [#allocation15], %s368
        %p370 = scmp.eq.s32.totalorder %s33, 0
        // Predicated region
        $region61: #{tpu_custom_call.1} parent=39 // pred_check
          %p371 = pneg %p370
        $region62: #{tpu_custom_call.1} parent=39 // pred_check_branch
          %373 = sbr.rel (%p371) target = $region64
        $region63: #{tpu_custom_call.1} parent=39 // pred_region
          %v374 = vld [vmem:[%s307] sm:$0xff]
          %v375 = vld [vmem:[#allocation12] sm:$0xff]
          %v376 = vld [vmem:[#allocation12 + $0x8] sm:$0xff]
          %v377 = vld [vmem:[#allocation12 + $0x10] sm:$0xff]
          %v378 = vld [vmem:[#allocation12 + $0x18] sm:$0xff]
          %v379 = vld [vmem:[#allocation12 + $0x20] sm:$0xff]
          %v380 = vld [vmem:[#allocation12 + $0x28] sm:$0xff]
          %v381 = vld [vmem:[#allocation12 + $0x30] sm:$0xff]
          %v382 = vld [vmem:[#allocation12 + $0x38] sm:$0xff]
          %vm383 = vcmask 523264
          %v385 = vsel %vm383, %v374, 0
          %387 = vmatprep.subr.mxu0 0.0
          %388 = vmatpush1.msra.mxu0 %v375
          %389 = vmatprep.subr.mxu0 0.0
          %390 = vmatpush1.msra.mxu0 %v376
          %391 = vmatprep.subr.mxu0 0.0
          %392 = vmatpush1.msra.mxu0 %v377
          %393 = vmatprep.subr.mxu0 0.0
          %394 = vmatpush1.msra.mxu0 %v378
          %395 = vmatprep.subr.mxu0 0.0
          %396 = vmatpush1.msra.mxu0 %v379
          %397 = vmatprep.subr.mxu0 0.0
          %398 = vmatpush1.msra.mxu0 %v380
          %399 = vmatprep.subr.mxu0 0.0
          %400 = vmatpush1.msra.mxu0 %v381
          %401 = vmatprep.subr.mxu0 0.0
          %402 = vmatpush1.msra.mxu0 %v382
          %403 = vmatprep.subr.mxu0 0.0
          %404 = vmatpush1.msra.mxu0 0.0
          %405 = vmatprep.subr.mxu0 0.0
          %406 = vmatpush1.msra.mxu0 0.0
          %407 = vmatprep.subr.mxu0 0.0
          %408 = vmatpush1.msra.mxu0 0.0
          %409 = vmatprep.subr.mxu0 0.0
          %410 = vmatpush1.msra.mxu0 0.0
          %411 = vmatprep.subr.mxu0 0.0
          %412 = vmatpush1.msra.mxu0 0.0
          %413 = vmatprep.subr.mxu0 0.0
          %414 = vmatpush1.msra.mxu0 0.0
          %415 = vmatprep.subr.mxu0 0.0
          %416 = vmatpush1.msra.mxu0 0.0
          %417 = vmatprep.subr.mxu0 0.0
          %418 = vmatpush1.msra.mxu0 0.0
          %419 = vmatprep.subr.mxu0 0.0
          %420 = vmatpush1.msra.mxu0 0.0
          %421 = vmatprep.subr.mxu0 0.0
          %422 = vmatpush1.msra.mxu0 0.0
          %423 = vmatprep.subr.mxu0 0.0
          %424 = vmatpush1.msra.mxu0 0.0
          %425 = vmatprep.subr.mxu0 0.0
          %426 = vmatpush1.msra.mxu0 0.0
          %427 = vmatprep.subr.mxu0 0.0
          %428 = vmatpush1.msra.mxu0 0.0
          %429 = vmatprep.subr.mxu0 0.0
          %430 = vmatpush1.msra.mxu0 0.0
          %431 = vmatprep.subr.mxu0 0.0
          %432 = vmatpush1.msra.mxu0 0.0
          %433 = vmatprep.subr.mxu0 0.0
          %434 = vmatpush1.msra.mxu0 0.0
          %435 = vmatprep.subr.mxu0 0.0
          %436 = vmatpush1.msra.mxu0 0.0
          %437 = vmatprep.subr.mxu0 0.0
          %438 = vmatpush1.msra.mxu0 0.0
          %439 = vmatprep.subr.mxu0 0.0
          %440 = vmatpush1.msra.mxu0 0.0
          %441 = vmatprep.subr.mxu0 0.0
          %442 = vmatpush1.msra.mxu0 0.0
          %443 = vmatprep.subr.mxu0 0.0
          %444 = vmatpush1.msra.mxu0 0.0
          %445 = vmatprep.subr.mxu0 0.0
          %446 = vmatpush1.msra.mxu0 0.0
          %447 = vmatprep.subr.mxu0 0.0
          %448 = vmatpush1.msra.mxu0 0.0
          %449 = vmatprep.subr.mxu0 0.0
          %450 = vmatpush1.msra.mxu0 0.0
          %451 = vmatprep.mubr.f32.mxu0 0.0
          %452 = vmatmul.mubr.f32.gmra.mrb[0].mxu0 %v385
          %v453 = vpop.f32.mrb[0].mxu0
          %v454 = vadd.f32 0.0, %v453
          %v455 = vpop.f32.mrb[0].mxu0
          %456 = vdwg.mxu0
          %457 = vst.msk [vmem:[#allocation2] sm:$0xff] %vm383, %v454
          %vm458 = vcmask 7168
          %459 = vst.msk [vmem:[#allocation3] sm:$0xff] %vm458, -inf
          %460 = vst.msk [vmem:[#allocation3 + $0x8] sm:$0xff] %vm458, -inf
          %461 = vst.msk [vmem:[#allocation3 + $0x10] sm:$0xff] %vm458, -inf
          %462 = vst.msk [vmem:[#allocation3 + $0x18] sm:$0xff] %vm458, -inf
          %463 = vst.msk [vmem:[#allocation3 + $0x20] sm:$0xff] %vm458, -inf
          %464 = vst.msk [vmem:[#allocation3 + $0x28] sm:$0xff] %vm458, -inf
          %465 = vst.msk [vmem:[#allocation3 + $0x30] sm:$0xff] %vm458, -inf
          %466 = vst.msk [vmem:[#allocation3 + $0x38] sm:$0xff] %vm458, -inf
          %467 = vst.msk [vmem:[#allocation4] sm:$0xff] %vm458, 0.0
          %468 = vst.msk [vmem:[#allocation4 + $0x8] sm:$0xff] %vm458, 0.0
          %469 = vst.msk [vmem:[#allocation4 + $0x10] sm:$0xff] %vm458, 0.0
          %470 = vst.msk [vmem:[#allocation4 + $0x18] sm:$0xff] %vm458, 0.0
          %471 = vst.msk [vmem:[#allocation4 + $0x20] sm:$0xff] %vm458, 0.0
          %472 = vst.msk [vmem:[#allocation4 + $0x28] sm:$0xff] %vm458, 0.0
          %473 = vst.msk [vmem:[#allocation4 + $0x30] sm:$0xff] %vm458, 0.0
          %474 = vst.msk [vmem:[#allocation4 + $0x38] sm:$0xff] %vm458, 0.0
          %vm475 = vcmask 64512
          %476 = vst.msk [vmem:[#allocation5] sm:$0xff] %vm475, 0.0
          %477 = vst.msk [vmem:[#allocation5 + $0x8] sm:$0xff] %vm475, 0.0
          %478 = vst.msk [vmem:[#allocation5 + $0x10] sm:$0xff] %vm475, 0.0
          %479 = vst.msk [vmem:[#allocation5 + $0x18] sm:$0xff] %vm475, 0.0
          %480 = vst.msk [vmem:[#allocation5 + $0x20] sm:$0xff] %vm475, 0.0
          %481 = vst.msk [vmem:[#allocation5 + $0x28] sm:$0xff] %vm475, 0.0
          %482 = vst.msk [vmem:[#allocation5 + $0x30] sm:$0xff] %vm475, 0.0
          %483 = vst.msk [vmem:[#allocation5 + $0x38] sm:$0xff] %vm475, 0.0
        $region64: #{tpu_custom_call.1} parent=39 // pred_fallthru
          _
        %s484 = smul.u32 %s32, 8
        %s485 = smul.u32 %s33, 8
        %s486 = sadd.s32 %s484, 7
        %p487 = scmp.le.s32.totalorder %s485, %s486
        // Predicated region
        $region65: #{tpu_custom_call.1} parent=39 // pred_check
          %p488 = pneg %p487
        $region66: #{tpu_custom_call.1} parent=39 // pred_check_branch
          %490 = sbr.rel (%p488) target = $region68
        $region67: #{tpu_custom_call.1} parent=39 // pred_region
          %v491 = vld [vmem:[%s316] sm:$0xff]
          %v492 = vld [vmem:[%s325] sm:$0xff]
          %v493 = vlaneseq
          %v494 = vshrl.u32 %v493, 7
          %v495 = vstv %s484
          %v496 = vadd.s32 %v495, %v494
          %v497 = vlaneseq
          %v498 = vand.u32 %v497, 127
          %v499 = vstv %s485
          %v500 = vadd.s32 %v499, %v498
          %vm501 = vcmp.gt.s32.totalorder %v500, %v496
          %v502 = vsel %vm501, -inf, 0.0
          %v503 = vld [vmem:[#allocation2] sm:$0xff]
          %vm504 = vcmask 64512
          %v506 = vsel %vm504, %v503, 0
          %v509 = vsel %vm504, %v491, 0
          %511 = vmatprep.subr.mxu0 0.0
          %512 = vmatpush1.xpose.msra.mxu0 %v509
          %513 = vmatprep.subr.mxu0 0.0
          %514 = vmatpush1.xpose.msra.mxu0 0.0
          %515 = vmatprep.subr.mxu0 0.0
          %516 = vmatpush1.xpose.msra.mxu0 0.0
          %517 = vmatprep.subr.mxu0 0.0
          %518 = vmatpush1.xpose.msra.mxu0 0.0
          %519 = vmatprep.subr.mxu0 0.0
          %520 = vmatpush1.xpose.msra.mxu0 0.0
          %521 = vmatprep.subr.mxu0 0.0
          %522 = vmatpush1.xpose.msra.mxu0 0.0
          %523 = vmatprep.subr.mxu0 0.0
          %524 = vmatpush1.xpose.msra.mxu0 0.0
          %525 = vmatprep.subr.mxu0 0.0
          %526 = vmatpush1.xpose.msra.mxu0 0.0
          %527 = vmatprep.subr.mxu0 0.0
          %528 = vmatpush1.xpose.msra.mxu0 0.0
          %529 = vmatprep.subr.mxu0 0.0
          %530 = vmatpush1.xpose.msra.mxu0 0.0
          %531 = vmatprep.subr.mxu0 0.0
          %532 = vmatpush1.xpose.msra.mxu0 0.0
          %533 = vmatprep.subr.mxu0 0.0
          %534 = vmatpush1.xpose.msra.mxu0 0.0
          %535 = vmatprep.subr.mxu0 0.0
          %536 = vmatpush1.xpose.msra.mxu0 0.0
          %537 = vmatprep.subr.mxu0 0.0
          %538 = vmatpush1.xpose.msra.mxu0 0.0
          %539 = vmatprep.subr.mxu0 0.0
          %540 = vmatpush1.xpose.msra.mxu0 0.0
          %541 = vmatprep.subr.mxu0 0.0
          %542 = vmatpush1.xpose.msra.mxu0 0.0
          %543 = vmatprep.subr.mxu0 0.0
          %544 = vmatpush1.xpose.msra.mxu0 0.0
          %545 = vmatprep.subr.mxu0 0.0
          %546 = vmatpush1.xpose.msra.mxu0 0.0
          %547 = vmatprep.subr.mxu0 0.0
          %548 = vmatpush1.xpose.msra.mxu0 0.0
          %549 = vmatprep.subr.mxu0 0.0
          %550 = vmatpush1.xpose.msra.mxu0 0.0
          %551 = vmatprep.subr.mxu0 0.0
          %552 = vmatpush1.xpose.msra.mxu0 0.0
          %553 = vmatprep.subr.mxu0 0.0
          %554 = vmatpush1.xpose.msra.mxu0 0.0
          %555 = vmatprep.subr.mxu0 0.0
          %556 = vmatpush1.xpose.msra.mxu0 0.0
          %557 = vmatprep.subr.mxu0 0.0
          %558 = vmatpush1.xpose.msra.mxu0 0.0
          %559 = vmatprep.subr.mxu0 0.0
          %560 = vmatpush1.xpose.msra.mxu0 0.0
          %561 = vmatprep.subr.mxu0 0.0
          %562 = vmatpush1.xpose.msra.mxu0 0.0
          %563 = vmatprep.subr.mxu0 0.0
          %564 = vmatpush1.xpose.msra.mxu0 0.0
          %565 = vmatprep.subr.mxu0 0.0
          %566 = vmatpush1.xpose.msra.mxu0 0.0
          %567 = vmatprep.subr.mxu0 0.0
          %568 = vmatpush1.xpose.msra.mxu0 0.0
          %569 = vmatprep.subr.mxu0 0.0
          %570 = vmatpush1.xpose.msra.mxu0 0.0
          %571 = vmatprep.subr.mxu0 0.0
          %572 = vmatpush1.xpose.msra.mxu0 0.0
          %573 = vmatprep.subr.mxu0 0.0
          %574 = vmatpush1.xpose.msra.mxu0 0.0
          %575 = vmatprep.mubr.f32.mxu0 0.0
          %576 = vmatmul.mubr.f32.gmra.mrb[0].mxu0 %v506
          %v577 = vpop.f32.mrb[0].mxu0
          %v578 = vadd.f32 0.0, %v577
          %v579 = vpop.f32.mrb[0].mxu0
          %580 = vdwg.mxu0
          %v581 = vmul.f32 %v578, 0.35355338
          %v582 = vadd.f32 %v581, %v502
          %v583 = vld [vmem:[#allocation3] sm:$0xff]
          %v584 = vsel %vm504, %v582, -inf
          %585 = vmax.xlane.f32.xlu0 %v584
          %v586 = vpop.xlane.xlu0 %585
          %v587 = vmax.f32 %v583, %v586
          %v588 = vsub.f32 %v583, %v587
          %v589 = vmul.f32 %v588, 1.442695
          %v590 = vpow.pop %v589
          %592 = vset.pattern.permute.xlu0 0
          %593 = vperm.xlu0 %592, %v587
          %v594 = vpop.permute.xlu0 %593
          %v596 = vsub.f32 %v582, %v594
          %v597 = vmul.f32 %v596, 1.442695
          %v598 = vpow.pop %v597
          %v599 = vld [vmem:[#allocation4] sm:$0xff]
          %v600 = vmul.f32 %v590, %v599
          %v601 = vsel %vm504, %v598, 0.0
          %602 = vadd.xlane.f32.xlu0 %v601
          %v603 = vpop.xlane.xlu0 %602
          %v604 = vadd.f32 %v600, %v603
          %vm605 = vcmask 7168
          %606 = vst.msk [vmem:[#allocation4] sm:$0xff] %vm605, %v604
          %v607 = vld [vmem:[#allocation5] sm:$0xff]
          %609 = vset.pattern.permute.xlu0 0
          %610 = vperm.xlu0 %609, %v590
          %v611 = vpop.permute.xlu0 %610
          %v613 = vmul.f32 %v611, %v607
          %v615 = vsel %vm504, %v598, 0
          %617 = vmatprep.subr.mxu0 0.0
          %618 = vmatpush1.msra.mxu0 %v492
          %619 = vmatprep.subr.mxu0 0.0
          %620 = vmatpush1.msra.mxu0 0.0
          %621 = vmatprep.subr.mxu0 0.0
          %622 = vmatpush1.msra.mxu0 0.0
          %623 = vmatprep.subr.mxu0 0.0
          %624 = vmatpush1.msra.mxu0 0.0
          %625 = vmatprep.subr.mxu0 0.0
          %626 = vmatpush1.msra.mxu0 0.0
          %627 = vmatprep.subr.mxu0 0.0
          %628 = vmatpush1.msra.mxu0 0.0
          %629 = vmatprep.subr.mxu0 0.0
          %630 = vmatpush1.msra.mxu0 0.0
          %631 = vmatprep.subr.mxu0 0.0
          %632 = vmatpush1.msra.mxu0 0.0
          %633 = vmatprep.subr.mxu0 0.0
          %634 = vmatpush1.msra.mxu0 0.0
          %635 = vmatprep.subr.mxu0 0.0
          %636 = vmatpush1.msra.mxu0 0.0
          %637 = vmatprep.subr.mxu0 0.0
          %638 = vmatpush1.msra.mxu0 0.0
          %639 = vmatprep.subr.mxu0 0.0
          %640 = vmatpush1.msra.mxu0 0.0
          %641 = vmatprep.subr.mxu0 0.0
          %642 = vmatpush1.msra.mxu0 0.0
          %643 = vmatprep.subr.mxu0 0.0
          %644 = vmatpush1.msra.mxu0 0.0
          %645 = vmatprep.subr.mxu0 0.0
          %646 = vmatpush1.msra.mxu0 0.0
          %647 = vmatprep.subr.mxu0 0.0
          %648 = vmatpush1.msra.mxu0 0.0
          %649 = vmatprep.subr.mxu0 0.0
          %650 = vmatpush1.msra.mxu0 0.0
          %651 = vmatprep.subr.mxu0 0.0
          %652 = vmatpush1.msra.mxu0 0.0
          %653 = vmatprep.subr.mxu0 0.0
          %654 = vmatpush1.msra.mxu0 0.0
          %655 = vmatprep.subr.mxu0 0.0
          %656 = vmatpush1.msra.mxu0 0.0
          %657 = vmatprep.subr.mxu0 0.0
          %658 = vmatpush1.msra.mxu0 0.0
          %659 = vmatprep.subr.mxu0 0.0
          %660 = vmatpush1.msra.mxu0 0.0
          %661 = vmatprep.subr.mxu0 0.0
          %662 = vmatpush1.msra.mxu0 0.0
          %663 = vmatprep.subr.mxu0 0.0
          %664 = vmatpush1.msra.mxu0 0.0
          %665 = vmatprep.subr.mxu0 0.0
          %666 = vmatpush1.msra.mxu0 0.0
          %667 = vmatprep.subr.mxu0 0.0
          %668 = vmatpush1.msra.mxu0 0.0
          %669 = vmatprep.subr.mxu0 0.0
          %670 = vmatpush1.msra.mxu0 0.0
          %671 = vmatprep.subr.mxu0 0.0
          %672 = vmatpush1.msra.mxu0 0.0
          %673 = vmatprep.subr.mxu0 0.0
          %674 = vmatpush1.msra.mxu0 0.0
          %675 = vmatprep.subr.mxu0 0.0
          %676 = vmatpush1.msra.mxu0 0.0
          %677 = vmatprep.subr.mxu0 0.0
          %678 = vmatpush1.msra.mxu0 0.0
          %679 = vmatprep.subr.mxu0 0.0
          %680 = vmatpush1.msra.mxu0 0.0
          %681 = vmatprep.mubr.f32.mxu0 0.0
          %682 = vmatmul.mubr.f32.gmra.mrb[0].mxu0 %v615
          %v683 = vpop.f32.mrb[0].mxu0
          %v684 = vadd.f32 0.0, %v683
          %v685 = vpop.f32.mrb[0].mxu0
          %686 = vdwg.mxu0
          %v687 = vadd.f32 %v613, %v684
          %688 = vst.msk [vmem:[#allocation5] sm:$0xff] %vm504, %v687
          %689 = vst.msk [vmem:[#allocation3] sm:$0xff] %vm605, %v587
          %v690 = vld [vmem:[#allocation2] sm:$0xff]
          %692 = vrot.lane.b32.xlu0 %v690, 120
          %v693 = vpop.permute.xlu0 %692
          %694 = vrot.lane.b32.xlu0 %v491, 120
          %v695 = vpop.permute.xlu0 %694
          %v696 = vsel %vm504, %v693, 0
          %v698 = vsel %vm504, %v695, 0
          %700 = vmatprep.subr.mxu0 0.0
          %701 = vmatpush1.xpose.msra.mxu0 %v698
          %702 = vmatprep.subr.mxu0 0.0
          %703 = vmatpush1.xpose.msra.mxu0 0.0
          %704 = vmatprep.subr.mxu0 0.0
          %705 = vmatpush1.xpose.msra.mxu0 0.0
          %706 = vmatprep.subr.mxu0 0.0
          %707 = vmatpush1.xpose.msra.mxu0 0.0
          %708 = vmatprep.subr.mxu0 0.0
          %709 = vmatpush1.xpose.msra.mxu0 0.0
          %710 = vmatprep.subr.mxu0 0.0
          %711 = vmatpush1.xpose.msra.mxu0 0.0
          %712 = vmatprep.subr.mxu0 0.0
          %713 = vmatpush1.xpose.msra.mxu0 0.0
          %714 = vmatprep.subr.mxu0 0.0
          %715 = vmatpush1.xpose.msra.mxu0 0.0
          %716 = vmatprep.subr.mxu0 0.0
          %717 = vmatpush1.xpose.msra.mxu0 0.0
          %718 = vmatprep.subr.mxu0 0.0
          %719 = vmatpush1.xpose.msra.mxu0 0.0
          %720 = vmatprep.subr.mxu0 0.0
          %721 = vmatpush1.xpose.msra.mxu0 0.0
          %722 = vmatprep.subr.mxu0 0.0
          %723 = vmatpush1.xpose.msra.mxu0 0.0
          %724 = vmatprep.subr.mxu0 0.0
          %725 = vmatpush1.xpose.msra.mxu0 0.0
          %726 = vmatprep.subr.mxu0 0.0
          %727 = vmatpush1.xpose.msra.mxu0 0.0
          %728 = vmatprep.subr.mxu0 0.0
          %729 = vmatpush1.xpose.msra.mxu0 0.0
          %730 = vmatprep.subr.mxu0 0.0
          %731 = vmatpush1.xpose.msra.mxu0 0.0
          %732 = vmatprep.subr.mxu0 0.0
          %733 = vmatpush1.xpose.msra.mxu0 0.0
          %734 = vmatprep.subr.mxu0 0.0
          %735 = vmatpush1.xpose.msra.mxu0 0.0
          %736 = vmatprep.subr.mxu0 0.0
          %737 = vmatpush1.xpose.msra.mxu0 0.0
          %738 = vmatprep.subr.mxu0 0.0
          %739 = vmatpush1.xpose.msra.mxu0 0.0
          %740 = vmatprep.subr.mxu0 0.0
          %741 = vmatpush1.xpose.msra.mxu0 0.0
          %742 = vmatprep.subr.mxu0 0.0
          %743 = vmatpush1.xpose.msra.mxu0 0.0
          %744 = vmatprep.subr.mxu0 0.0
          %745 = vmatpush1.xpose.msra.mxu0 0.0
          %746 = vmatprep.subr.mxu0 0.0
          %747 = vmatpush1.xpose.msra.mxu0 0.0
          %748 = vmatprep.subr.mxu0 0.0
          %749 = vmatpush1.xpose.msra.mxu0 0.0
          %750 = vmatprep.subr.mxu0 0.0
          %751 = vmatpush1.xpose.msra.mxu0 0.0
          %752 = vmatprep.subr.mxu0 0.0
          %753 = vmatpush1.xpose.msra.mxu0 0.0
          %754 = vmatprep.subr.mxu0 0.0
          %755 = vmatpush1.xpose.msra.mxu0 0.0
          %756 = vmatprep.subr.mxu0 0.0
          %757 = vmatpush1.xpose.msra.mxu0 0.0
          %758 = vmatprep.subr.mxu0 0.0
          %759 = vmatpush1.xpose.msra.mxu0 0.0
          %760 = vmatprep.subr.mxu0 0.0
          %761 = vmatpush1.xpose.msra.mxu0 0.0
          %762 = vmatprep.subr.mxu0 0.0
          %763 = vmatpush1.xpose.msra.mxu0 0.0
          %764 = vmatprep.mubr.f32.mxu0 0.0
          %765 = vmatmul.mubr.f32.gmra.mrb[0].mxu0 %v696
          %v766 = vpop.f32.mrb[0].mxu0
          %v767 = vadd.f32 0.0, %v766
          %v768 = vpop.f32.mrb[0].mxu0
          %769 = vdwg.mxu0
          %v770 = vmul.f32 %v767, 0.35355338
          %v771 = vadd.f32 %v770, %v502
          %s772 = scalar_lea.vmem [#allocation3], 8
          %v773 = vld [vmem:[%s772] sm:$0xff]
          %v774 = vsel %vm504, %v771, -inf
          %775 = vmax.xlane.f32.xlu0 %v774
          %v776 = vpop.xlane.xlu0 %775
          %v777 = vmax.f32 %v773, %v776
          %v778 = vsub.f32 %v773, %v777
          %v779 = vmul.f32 %v778, 1.442695
          %v780 = vpow.pop %v779
          %782 = vset.pattern.permute.xlu0 0
          %783 = vperm.xlu0 %782, %v777
          %v784 = vpop.permute.xlu0 %783
          %v786 = vsub.f32 %v771, %v784
          %v787 = vmul.f32 %v786, 1.442695
          %v788 = vpow.pop %v787
          %s789 = scalar_lea.vmem [#allocation4], 8
          %v790 = vld [vmem:[%s789] sm:$0xff]
          %v791 = vmul.f32 %v780, %v790
          %v792 = vsel %vm504, %v788, 0.0
          %793 = vadd.xlane.f32.xlu0 %v792
          %v794 = vpop.xlane.xlu0 %793
          %v795 = vadd.f32 %v791, %v794
          %796 = vst.msk [vmem:[%s789] sm:$0xff] %vm605, %v795
          %s797 = scalar_lea.vmem [#allocation5], 8
          %v798 = vld [vmem:[%s797] sm:$0xff]
          %800 = vset.pattern.permute.xlu0 0
          %801 = vperm.xlu0 %800, %v780
          %v802 = vpop.permute.xlu0 %801
          %v804 = vmul.f32 %v802, %v798
          %806 = vrot.lane.b32.xlu0 %v492, 120
          %v807 = vpop.permute.xlu0 %806
          %v810 = vsel %vm504, %v788, 0
          %812 = vmatprep.subr.mxu0 0.0
          %813 = vmatpush1.msra.mxu0 %v807
          %814 = vmatprep.subr.mxu0 0.0
          %815 = vmatpush1.msra.mxu0 0.0
          %816 = vmatprep.subr.mxu0 0.0
          %817 = vmatpush1.msra.mxu0 0.0
          %818 = vmatprep.subr.mxu0 0.0
          %819 = vmatpush1.msra.mxu0 0.0
          %820 = vmatprep.subr.mxu0 0.0
          %821 = vmatpush1.msra.mxu0 0.0
          %822 = vmatprep.subr.mxu0 0.0
          %823 = vmatpush1.msra.mxu0 0.0
          %824 = vmatprep.subr.mxu0 0.0
          %825 = vmatpush1.msra.mxu0 0.0
          %826 = vmatprep.subr.mxu0 0.0
          %827 = vmatpush1.msra.mxu0 0.0
          %828 = vmatprep.subr.mxu0 0.0
          %829 = vmatpush1.msra.mxu0 0.0
          %830 = vmatprep.subr.mxu0 0.0
          %831 = vmatpush1.msra.mxu0 0.0
          %832 = vmatprep.subr.mxu0 0.0
          %833 = vmatpush1.msra.mxu0 0.0
          %834 = vmatprep.subr.mxu0 0.0
          %835 = vmatpush1.msra.mxu0 0.0
          %836 = vmatprep.subr.mxu0 0.0
          %837 = vmatpush1.msra.mxu0 0.0
          %838 = vmatprep.subr.mxu0 0.0
          %839 = vmatpush1.msra.mxu0 0.0
          %840 = vmatprep.subr.mxu0 0.0
          %841 = vmatpush1.msra.mxu0 0.0
          %842 = vmatprep.subr.mxu0 0.0
          %843 = vmatpush1.msra.mxu0 0.0
          %844 = vmatprep.subr.mxu0 0.0
          %845 = vmatpush1.msra.mxu0 0.0
          %846 = vmatprep.subr.mxu0 0.0
          %847 = vmatpush1.msra.mxu0 0.0
          %848 = vmatprep.subr.mxu0 0.0
          %849 = vmatpush1.msra.mxu0 0.0
          %850 = vmatprep.subr.mxu0 0.0
          %851 = vmatpush1.msra.mxu0 0.0
          %852 = vmatprep.subr.mxu0 0.0
          %853 = vmatpush1.msra.mxu0 0.0
          %854 = vmatprep.subr.mxu0 0.0
          %855 = vmatpush1.msra.mxu0 0.0
          %856 = vmatprep.subr.mxu0 0.0
          %857 = vmatpush1.msra.mxu0 0.0
          %858 = vmatprep.subr.mxu0 0.0
          %859 = vmatpush1.msra.mxu0 0.0
          %860 = vmatprep.subr.mxu0 0.0
          %861 = vmatpush1.msra.mxu0 0.0
          %862 = vmatprep.subr.mxu0 0.0
          %863 = vmatpush1.msra.mxu0 0.0
          %864 = vmatprep.subr.mxu0 0.0
          %865 = vmatpush1.msra.mxu0 0.0
          %866 = vmatprep.subr.mxu0 0.0
          %867 = vmatpush1.msra.mxu0 0.0
          %868 = vmatprep.subr.mxu0 0.0
          %869 = vmatpush1.msra.mxu0 0.0
          %870 = vmatprep.subr.mxu0 0.0
          %871 = vmatpush1.msra.mxu0 0.0
          %872 = vmatprep.subr.mxu0 0.0
          %873 = vmatpush1.msra.mxu0 0.0
          %874 = vmatprep.subr.mxu0 0.0
          %875 = vmatpush1.msra.mxu0 0.0
          %876 = vmatprep.mubr.f32.mxu0 0.0
          %877 = vmatmul.mubr.f32.gmra.mrb[0].mxu0 %v810
          %v878 = vpop.f32.mrb[0].mxu0
          %v879 = vadd.f32 0.0, %v878
          %v880 = vpop.f32.mrb[0].mxu0
          %881 = vdwg.mxu0
          %v882 = vadd.f32 %v804, %v879
          %883 = vst.msk [vmem:[%s797] sm:$0xff] %vm504, %v882
          %884 = vst.msk [vmem:[%s772] sm:$0xff] %vm605, %v777
          %v885 = vld [vmem:[#allocation2] sm:$0xff]
          %887 = vrot.lane.b32.xlu0 %v885, 112
          %v888 = vpop.permute.xlu0 %887
          %889 = vrot.lane.b32.xlu0 %v491, 112
          %v890 = vpop.permute.xlu0 %889
          %v891 = vsel %vm504, %v888, 0
          %v893 = vsel %vm504, %v890, 0
          %895 = vmatprep.subr.mxu0 0.0
          %896 = vmatpush1.xpose.msra.mxu0 %v893
          %897 = vmatprep.subr.mxu0 0.0
          %898 = vmatpush1.xpose.msra.mxu0 0.0
          %899 = vmatprep.subr.mxu0 0.0
          %900 = vmatpush1.xpose.msra.mxu0 0.0
          %901 = vmatprep.subr.mxu0 0.0
          %902 = vmatpush1.xpose.msra.mxu0 0.0
          %903 = vmatprep.subr.mxu0 0.0
          %904 = vmatpush1.xpose.msra.mxu0 0.0
          %905 = vmatprep.subr.mxu0 0.0
          %906 = vmatpush1.xpose.msra.mxu0 0.0
          %907 = vmatprep.subr.mxu0 0.0
          %908 = vmatpush1.xpose.msra.mxu0 0.0
          %909 = vmatprep.subr.mxu0 0.0
          %910 = vmatpush1.xpose.msra.mxu0 0.0
          %911 = vmatprep.subr.mxu0 0.0
          %912 = vmatpush1.xpose.msra.mxu0 0.0
          %913 = vmatprep.subr.mxu0 0.0
          %914 = vmatpush1.xpose.msra.mxu0 0.0
          %915 = vmatprep.subr.mxu0 0.0
          %916 = vmatpush1.xpose.msra.mxu0 0.0
          %917 = vmatprep.subr.mxu0 0.0
          %918 = vmatpush1.xpose.msra.mxu0 0.0
          %919 = vmatprep.subr.mxu0 0.0
          %920 = vmatpush1.xpose.msra.mxu0 0.0
          %921 = vmatprep.subr.mxu0 0.0
          %922 = vmatpush1.xpose.msra.mxu0 0.0
          %923 = vmatprep.subr.mxu0 0.0
          %924 = vmatpush1.xpose.msra.mxu0 0.0
          %925 = vmatprep.subr.mxu0 0.0
          %926 = vmatpush1.xpose.msra.mxu0 0.0
          %927 = vmatprep.subr.mxu0 0.0
          %928 = vmatpush1.xpose.msra.mxu0 0.0
          %929 = vmatprep.subr.mxu0 0.0
          %930 = vmatpush1.xpose.msra.mxu0 0.0
          %931 = vmatprep.subr.mxu0 0.0
          %932 = vmatpush1.xpose.msra.mxu0 0.0
          %933 = vmatprep.subr.mxu0 0.0
          %934 = vmatpush1.xpose.msra.mxu0 0.0
          %935 = vmatprep.subr.mxu0 0.0
          %936 = vmatpush1.xpose.msra.mxu0 0.0
          %937 = vmatprep.subr.mxu0 0.0
          %938 = vmatpush1.xpose.msra.mxu0 0.0
          %939 = vmatprep.subr.mxu0 0.0
          %940 = vmatpush1.xpose.msra.mxu0 0.0
          %941 = vmatprep.subr.mxu0 0.0
          %942 = vmatpush1.xpose.msra.mxu0 0.0
          %943 = vmatprep.subr.mxu0 0.0
          %944 = vmatpush1.xpose.msra.mxu0 0.0
          %945 = vmatprep.subr.mxu0 0.0
          %946 = vmatpush1.xpose.msra.mxu0 0.0
          %947 = vmatprep.subr.mxu0 0.0
          %948 = vmatpush1.xpose.msra.mxu0 0.0
          %949 = vmatprep.subr.mxu0 0.0
          %950 = vmatpush1.xpose.msra.mxu0 0.0
          %951 = vmatprep.subr.mxu0 0.0
          %952 = vmatpush1.xpose.msra.mxu0 0.0
          %953 = vmatprep.subr.mxu0 0.0
          %954 = vmatpush1.xpose.msra.mxu0 0.0
          %955 = vmatprep.subr.mxu0 0.0
          %956 = vmatpush1.xpose.msra.mxu0 0.0
          %957 = vmatprep.subr.mxu0 0.0
          %958 = vmatpush1.xpose.msra.mxu0 0.0
          %959 = vmatprep.mubr.f32.mxu0 0.0
          %960 = vmatmul.mubr.f32.gmra.mrb[0].mxu0 %v891
          %v961 = vpop.f32.mrb[0].mxu0
          %v962 = vadd.f32 0.0, %v961
          %v963 = vpop.f32.mrb[0].mxu0
          %964 = vdwg.mxu0
          %v965 = vmul.f32 %v962, 0.35355338
          %v966 = vadd.f32 %v965, %v502
          %s967 = scalar_lea.vmem [#allocation3], 16
          %v968 = vld [vmem:[%s967] sm:$0xff]
          %v969 = vsel %vm504, %v966, -inf
          %970 = vmax.xlane.f32.xlu0 %v969
          %v971 = vpop.xlane.xlu0 %970
          %v972 = vmax.f32 %v968, %v971
          %v973 = vsub.f32 %v968, %v972
          %v974 = vmul.f32 %v973, 1.442695
          %v975 = vpow.pop %v974
          %977 = vset.pattern.permute.xlu0 0
          %978 = vperm.xlu0 %977, %v972
          %v979 = vpop.permute.xlu0 %978
          %v981 = vsub.f32 %v966, %v979
          %v982 = vmul.f32 %v981, 1.442695
          %v983 = vpow.pop %v982
          %s984 = scalar_lea.vmem [#allocation4], 16
          %v985 = vld [vmem:[%s984] sm:$0xff]
          %v986 = vmul.f32 %v975, %v985
          %v987 = vsel %vm504, %v983, 0.0
          %988 = vadd.xlane.f32.xlu0 %v987
          %v989 = vpop.xlane.xlu0 %988
          %v990 = vadd.f32 %v986, %v989
          %991 = vst.msk [vmem:[%s984] sm:$0xff] %vm605, %v990
          %s992 = scalar_lea.vmem [#allocation5], 16
          %v993 = vld [vmem:[%s992] sm:$0xff]
          %995 = vset.pattern.permute.xlu0 0
          %996 = vperm.xlu0 %995, %v975
          %v997 = vpop.permute.xlu0 %996
          %v999 = vmul.f32 %v997, %v993
          %1000 = vrot.lane.b32.xlu0 %v492, 112
          %v1001 = vpop.permute.xlu0 %1000
          %v1004 = vsel %vm504, %v983, 0
          %1006 = vmatprep.subr.mxu0 0.0
          %1007 = vmatpush1.msra.mxu0 %v1001
          %1008 = vmatprep.subr.mxu0 0.0
          %1009 = vmatpush1.msra.mxu0 0.0
          %1010 = vmatprep.subr.mxu0 0.0
          %1011 = vmatpush1.msra.mxu0 0.0
          %1012 = vmatprep.subr.mxu0 0.0
          %1013 = vmatpush1.msra.mxu0 0.0
          %1014 = vmatprep.subr.mxu0 0.0
          %1015 = vmatpush1.msra.mxu0 0.0
          %1016 = vmatprep.subr.mxu0 0.0
          %1017 = vmatpush1.msra.mxu0 0.0
          %1018 = vmatprep.subr.mxu0 0.0
          %1019 = vmatpush1.msra.mxu0 0.0
          %1020 = vmatprep.subr.mxu0 0.0
          %1021 = vmatpush1.msra.mxu0 0.0
          %1022 = vmatprep.subr.mxu0 0.0
          %1023 = vmatpush1.msra.mxu0 0.0
          %1024 = vmatprep.subr.mxu0 0.0
          %1025 = vmatpush1.msra.mxu0 0.0
          %1026 = vmatprep.subr.mxu0 0.0
          %1027 = vmatpush1.msra.mxu0 0.0
          %1028 = vmatprep.subr.mxu0 0.0
          %1029 = vmatpush1.msra.mxu0 0.0
          %1030 = vmatprep.subr.mxu0 0.0
          %1031 = vmatpush1.msra.mxu0 0.0
          %1032 = vmatprep.subr.mxu0 0.0
          %1033 = vmatpush1.msra.mxu0 0.0
          %1034 = vmatprep.subr.mxu0 0.0
          %1035 = vmatpush1.msra.mxu0 0.0
          %1036 = vmatprep.subr.mxu0 0.0
          %1037 = vmatpush1.msra.mxu0 0.0
          %1038 = vmatprep.subr.mxu0 0.0
          %1039 = vmatpush1.msra.mxu0 0.0
          %1040 = vmatprep.subr.mxu0 0.0
          %1041 = vmatpush1.msra.mxu0 0.0
          %1042 = vmatprep.subr.mxu0 0.0
          %1043 = vmatpush1.msra.mxu0 0.0
          %1044 = vmatprep.subr.mxu0 0.0
          %1045 = vmatpush1.msra.mxu0 0.0
          %1046 = vmatprep.subr.mxu0 0.0
          %1047 = vmatpush1.msra.mxu0 0.0
          %1048 = vmatprep.subr.mxu0 0.0
          %1049 = vmatpush1.msra.mxu0 0.0
          %1050 = vmatprep.subr.mxu0 0.0
          %1051 = vmatpush1.msra.mxu0 0.0
          %1052 = vmatprep.subr.mxu0 0.0
          %1053 = vmatpush1.msra.mxu0 0.0
          %1054 = vmatprep.subr.mxu0 0.0
          %1055 = vmatpush1.msra.mxu0 0.0
          %1056 = vmatprep.subr.mxu0 0.0
          %1057 = vmatpush1.msra.mxu0 0.0
          %1058 = vmatprep.subr.mxu0 0.0
          %1059 = vmatpush1.msra.mxu0 0.0
          %1060 = vmatprep.subr.mxu0 0.0
          %1061 = vmatpush1.msra.mxu0 0.0
          %1062 = vmatprep.subr.mxu0 0.0
          %1063 = vmatpush1.msra.mxu0 0.0
          %1064 = vmatprep.subr.mxu0 0.0
          %1065 = vmatpush1.msra.mxu0 0.0
          %1066 = vmatprep.subr.mxu0 0.0
          %1067 = vmatpush1.msra.mxu0 0.0
          %1068 = vmatprep.subr.mxu0 0.0
          %1069 = vmatpush1.msra.mxu0 0.0
          %1070 = vmatprep.mubr.f32.mxu0 0.0
          %1071 = vmatmul.mubr.f32.gmra.mrb[0].mxu0 %v1004
          %v1072 = vpop.f32.mrb[0].mxu0
          %v1073 = vadd.f32 0.0, %v1072
          %v1074 = vpop.f32.mrb[0].mxu0
          %1075 = vdwg.mxu0
          %v1076 = vadd.f32 %v999, %v1073
          %1077 = vst.msk [vmem:[%s992] sm:$0xff] %vm504, %v1076
          %1078 = vst.msk [vmem:[%s967] sm:$0xff] %vm605, %v972
          %v1079 = vld [vmem:[#allocation2] sm:$0xff]
          %1081 = vrot.lane.b32.xlu0 %v1079, 104
          %v1082 = vpop.permute.xlu0 %1081
          %1083 = vrot.lane.b32.xlu0 %v491, 104
          %v1084 = vpop.permute.xlu0 %1083
          %v1085 = vsel %vm504, %v1082, 0
          %v1087 = vsel %vm504, %v1084, 0
          %1089 = vmatprep.subr.mxu0 0.0
          %1090 = vmatpush1.xpose.msra.mxu0 %v1087
          %1091 = vmatprep.subr.mxu0 0.0
          %1092 = vmatpush1.xpose.msra.mxu0 0.0
          %1093 = vmatprep.subr.mxu0 0.0
          %1094 = vmatpush1.xpose.msra.mxu0 0.0
          %1095 = vmatprep.subr.mxu0 0.0
          %1096 = vmatpush1.xpose.msra.mxu0 0.0
          %1097 = vmatprep.subr.mxu0 0.0
          %1098 = vmatpush1.xpose.msra.mxu0 0.0
          %1099 = vmatprep.subr.mxu0 0.0
          %1100 = vmatpush1.xpose.msra.mxu0 0.0
          %1101 = vmatprep.subr.mxu0 0.0
          %1102 = vmatpush1.xpose.msra.mxu0 0.0
          %1103 = vmatprep.subr.mxu0 0.0
          %1104 = vmatpush1.xpose.msra.mxu0 0.0
          %1105 = vmatprep.subr.mxu0 0.0
          %1106 = vmatpush1.xpose.msra.mxu0 0.0
          %1107 = vmatprep.subr.mxu0 0.0
          %1108 = vmatpush1.xpose.msra.mxu0 0.0
          %1109 = vmatprep.subr.mxu0 0.0
          %1110 = vmatpush1.xpose.msra.mxu0 0.0
          %1111 = vmatprep.subr.mxu0 0.0
          %1112 = vmatpush1.xpose.msra.mxu0 0.0
          %1113 = vmatprep.subr.mxu0 0.0
          %1114 = vmatpush1.xpose.msra.mxu0 0.0
          %1115 = vmatprep.subr.mxu0 0.0
          %1116 = vmatpush1.xpose.msra.mxu0 0.0
          %1117 = vmatprep.subr.mxu0 0.0
          %1118 = vmatpush1.xpose.msra.mxu0 0.0
          %1119 = vmatprep.subr.mxu0 0.0
          %1120 = vmatpush1.xpose.msra.mxu0 0.0
          %1121 = vmatprep.subr.mxu0 0.0
          %1122 = vmatpush1.xpose.msra.mxu0 0.0
          %1123 = vmatprep.subr.mxu0 0.0
          %1124 = vmatpush1.xpose.msra.mxu0 0.0
          %1125 = vmatprep.subr.mxu0 0.0
          %1126 = vmatpush1.xpose.msra.mxu0 0.0
          %1127 = vmatprep.subr.mxu0 0.0
          %1128 = vmatpush1.xpose.msra.mxu0 0.0
          %1129 = vmatprep.subr.mxu0 0.0
          %1130 = vmatpush1.xpose.msra.mxu0 0.0
          %1131 = vmatprep.subr.mxu0 0.0
          %1132 = vmatpush1.xpose.msra.mxu0 0.0
          %1133 = vmatprep.subr.mxu0 0.0
          %1134 = vmatpush1.xpose.msra.mxu0 0.0
          %1135 = vmatprep.subr.mxu0 0.0
          %1136 = vmatpush1.xpose.msra.mxu0 0.0
          %1137 = vmatprep.subr.mxu0 0.0
          %1138 = vmatpush1.xpose.msra.mxu0 0.0
          %1139 = vmatprep.subr.mxu0 0.0
          %1140 = vmatpush1.xpose.msra.mxu0 0.0
          %1141 = vmatprep.subr.mxu0 0.0
          %1142 = vmatpush1.xpose.msra.mxu0 0.0
          %1143 = vmatprep.subr.mxu0 0.0
          %1144 = vmatpush1.xpose.msra.mxu0 0.0
          %1145 = vmatprep.subr.mxu0 0.0
          %1146 = vmatpush1.xpose.msra.mxu0 0.0
          %1147 = vmatprep.subr.mxu0 0.0
          %1148 = vmatpush1.xpose.msra.mxu0 0.0
          %1149 = vmatprep.subr.mxu0 0.0
          %1150 = vmatpush1.xpose.msra.mxu0 0.0
          %1151 = vmatprep.subr.mxu0 0.0
          %1152 = vmatpush1.xpose.msra.mxu0 0.0
          %1153 = vmatprep.mubr.f32.mxu0 0.0
          %1154 = vmatmul.mubr.f32.gmra.mrb[0].mxu0 %v1085
          %v1155 = vpop.f32.mrb[0].mxu0
          %v1156 = vadd.f32 0.0, %v1155
          %v1157 = vpop.f32.mrb[0].mxu0
          %1158 = vdwg.mxu0
          %v1159 = vmul.f32 %v1156, 0.35355338
          %v1160 = vadd.f32 %v1159, %v502
          %s1161 = scalar_lea.vmem [#allocation3], 24
          %v1162 = vld [vmem:[%s1161] sm:$0xff]
          %v1163 = vsel %vm504, %v1160, -inf
          %1164 = vmax.xlane.f32.xlu0 %v1163
          %v1165 = vpop.xlane.xlu0 %1164
          %v1166 = vmax.f32 %v1162, %v1165
          %v1167 = vsub.f32 %v1162, %v1166
          %v1168 = vmul.f32 %v1167, 1.442695
          %v1169 = vpow.pop %v1168
          %1171 = vset.pattern.permute.xlu0 0
          %1172 = vperm.xlu0 %1171, %v1166
          %v1173 = vpop.permute.xlu0 %1172
          %v1175 = vsub.f32 %v1160, %v1173
          %v1176 = vmul.f32 %v1175, 1.442695
          %v1177 = vpow.pop %v1176
          %s1178 = scalar_lea.vmem [#allocation4], 24
          %v1179 = vld [vmem:[%s1178] sm:$0xff]
          %v1180 = vmul.f32 %v1169, %v1179
          %v1181 = vsel %vm504, %v1177, 0.0
          %1182 = vadd.xlane.f32.xlu0 %v1181
          %v1183 = vpop.xlane.xlu0 %1182
          %v1184 = vadd.f32 %v1180, %v1183
          %1185 = vst.msk [vmem:[%s1178] sm:$0xff] %vm605, %v1184
          %s1186 = scalar_lea.vmem [#allocation5], 24
          %v1187 = vld [vmem:[%s1186] sm:$0xff]
          %1189 = vset.pattern.permute.xlu0 0
          %1190 = vperm.xlu0 %1189, %v1169
          %v1191 = vpop.permute.xlu0 %1190
          %v1193 = vmul.f32 %v1191, %v1187
          %1194 = vrot.lane.b32.xlu0 %v492, 104
          %v1195 = vpop.permute.xlu0 %1194
          %v1198 = vsel %vm504, %v1177, 0
          %1200 = vmatprep.subr.mxu0 0.0
          %1201 = vmatpush1.msra.mxu0 %v1195
          %1202 = vmatprep.subr.mxu0 0.0
          %1203 = vmatpush1.msra.mxu0 0.0
          %1204 = vmatprep.subr.mxu0 0.0
          %1205 = vmatpush1.msra.mxu0 0.0
          %1206 = vmatprep.subr.mxu0 0.0
          %1207 = vmatpush1.msra.mxu0 0.0
          %1208 = vmatprep.subr.mxu0 0.0
          %1209 = vmatpush1.msra.mxu0 0.0
          %1210 = vmatprep.subr.mxu0 0.0
          %1211 = vmatpush1.msra.mxu0 0.0
          %1212 = vmatprep.subr.mxu0 0.0
          %1213 = vmatpush1.msra.mxu0 0.0
          %1214 = vmatprep.subr.mxu0 0.0
          %1215 = vmatpush1.msra.mxu0 0.0
          %1216 = vmatprep.subr.mxu0 0.0
          %1217 = vmatpush1.msra.mxu0 0.0
          %1218 = vmatprep.subr.mxu0 0.0
          %1219 = vmatpush1.msra.mxu0 0.0
          %1220 = vmatprep.subr.mxu0 0.0
          %1221 = vmatpush1.msra.mxu0 0.0
          %1222 = vmatprep.subr.mxu0 0.0
          %1223 = vmatpush1.msra.mxu0 0.0
          %1224 = vmatprep.subr.mxu0 0.0
          %1225 = vmatpush1.msra.mxu0 0.0
          %1226 = vmatprep.subr.mxu0 0.0
          %1227 = vmatpush1.msra.mxu0 0.0
          %1228 = vmatprep.subr.mxu0 0.0
          %1229 = vmatpush1.msra.mxu0 0.0
          %1230 = vmatprep.subr.mxu0 0.0
          %1231 = vmatpush1.msra.mxu0 0.0
          %1232 = vmatprep.subr.mxu0 0.0
          %1233 = vmatpush1.msra.mxu0 0.0
          %1234 = vmatprep.subr.mxu0 0.0
          %1235 = vmatpush1.msra.mxu0 0.0
          %1236 = vmatprep.subr.mxu0 0.0
          %1237 = vmatpush1.msra.mxu0 0.0
          %1238 = vmatprep.subr.mxu0 0.0
          %1239 = vmatpush1.msra.mxu0 0.0
          %1240 = vmatprep.subr.mxu0 0.0
          %1241 = vmatpush1.msra.mxu0 0.0
          %1242 = vmatprep.subr.mxu0 0.0
          %1243 = vmatpush1.msra.mxu0 0.0
          %1244 = vmatprep.subr.mxu0 0.0
          %1245 = vmatpush1.msra.mxu0 0.0
          %1246 = vmatprep.subr.mxu0 0.0
          %1247 = vmatpush1.msra.mxu0 0.0
          %1248 = vmatprep.subr.mxu0 0.0
          %1249 = vmatpush1.msra.mxu0 0.0
          %1250 = vmatprep.subr.mxu0 0.0
          %1251 = vmatpush1.msra.mxu0 0.0
          %1252 = vmatprep.subr.mxu0 0.0
          %1253 = vmatpush1.msra.mxu0 0.0
          %1254 = vmatprep.subr.mxu0 0.0
          %1255 = vmatpush1.msra.mxu0 0.0
          %1256 = vmatprep.subr.mxu0 0.0
          %1257 = vmatpush1.msra.mxu0 0.0
          %1258 = vmatprep.subr.mxu0 0.0
          %1259 = vmatpush1.msra.mxu0 0.0
          %1260 = vmatprep.subr.mxu0 0.0
          %1261 = vmatpush1.msra.mxu0 0.0
          %1262 = vmatprep.subr.mxu0 0.0
          %1263 = vmatpush1.msra.mxu0 0.0
          %1264 = vmatprep.mubr.f32.mxu0 0.0
          %1265 = vmatmul.mubr.f32.gmra.mrb[0].mxu0 %v1198
          %v1266 = vpop.f32.mrb[0].mxu0
          %v1267 = vadd.f32 0.0, %v1266
          %v1268 = vpop.f32.mrb[0].mxu0
          %1269 = vdwg.mxu0
          %v1270 = vadd.f32 %v1193, %v1267
          %1271 = vst.msk [vmem:[%s1186] sm:$0xff] %vm504, %v1270
          %1272 = vst.msk [vmem:[%s1161] sm:$0xff] %vm605, %v1166
          %v1273 = vld [vmem:[#allocation2] sm:$0xff]
          %1275 = vrot.lane.b32.xlu0 %v1273, 96
          %v1276 = vpop.permute.xlu0 %1275
          %1277 = vrot.lane.b32.xlu0 %v491, 96
          %v1278 = vpop.permute.xlu0 %1277
          %v1279 = vsel %vm504, %v1276, 0
          %v1281 = vsel %vm504, %v1278, 0
          %1283 = vmatprep.subr.mxu0 0.0
          %1284 = vmatpush1.xpose.msra.mxu0 %v1281
          %1285 = vmatprep.subr.mxu0 0.0
          %1286 = vmatpush1.xpose.msra.mxu0 0.0
          %1287 = vmatprep.subr.mxu0 0.0
          %1288 = vmatpush1.xpose.msra.mxu0 0.0
          %1289 = vmatprep.subr.mxu0 0.0
          %1290 = vmatpush1.xpose.msra.mxu0 0.0
          %1291 = vmatprep.subr.mxu0 0.0
          %1292 = vmatpush1.xpose.msra.mxu0 0.0
          %1293 = vmatprep.subr.mxu0 0.0
          %1294 = vmatpush1.xpose.msra.mxu0 0.0
          %1295 = vmatprep.subr.mxu0 0.0
          %1296 = vmatpush1.xpose.msra.mxu0 0.0
          %1297 = vmatprep.subr.mxu0 0.0
          %1298 = vmatpush1.xpose.msra.mxu0 0.0
          %1299 = vmatprep.subr.mxu0 0.0
          %1300 = vmatpush1.xpose.msra.mxu0 0.0
          %1301 = vmatprep.subr.mxu0 0.0
          %1302 = vmatpush1.xpose.msra.mxu0 0.0
          %1303 = vmatprep.subr.mxu0 0.0
          %1304 = vmatpush1.xpose.msra.mxu0 0.0
          %1305 = vmatprep.subr.mxu0 0.0
          %1306 = vmatpush1.xpose.msra.mxu0 0.0
          %1307 = vmatprep.subr.mxu0 0.0
          %1308 = vmatpush1.xpose.msra.mxu0 0.0
          %1309 = vmatprep.subr.mxu0 0.0
          %1310 = vmatpush1.xpose.msra.mxu0 0.0
          %1311 = vmatprep.subr.mxu0 0.0
          %1312 = vmatpush1.xpose.msra.mxu0 0.0
          %1313 = vmatprep.subr.mxu0 0.0
          %1314 = vmatpush1.xpose.msra.mxu0 0.0
          %1315 = vmatprep.subr.mxu0 0.0
          %1316 = vmatpush1.xpose.msra.mxu0 0.0
          %1317 = vmatprep.subr.mxu0 0.0
          %1318 = vmatpush1.xpose.msra.mxu0 0.0
          %1319 = vmatprep.subr.mxu0 0.0
          %1320 = vmatpush1.xpose.msra.mxu0 0.0
          %1321 = vmatprep.subr.mxu0 0.0
          %1322 = vmatpush1.xpose.msra.mxu0 0.0
          %1323 = vmatprep.subr.mxu0 0.0
          %1324 = vmatpush1.xpose.msra.mxu0 0.0
          %1325 = vmatprep.subr.mxu0 0.0
          %1326 = vmatpush1.xpose.msra.mxu0 0.0
          %1327 = vmatprep.subr.mxu0 0.0
          %1328 = vmatpush1.xpose.msra.mxu0 0.0
          %1329 = vmatprep.subr.mxu0 0.0
          %1330 = vmatpush1.xpose.msra.mxu0 0.0
          %1331 = vmatprep.subr.mxu0 0.0
          %1332 = vmatpush1.xpose.msra.mxu0 0.0
          %1333 = vmatprep.subr.mxu0 0.0
          %1334 = vmatpush1.xpose.msra.mxu0 0.0
          %1335 = vmatprep.subr.mxu0 0.0
          %1336 = vmatpush1.xpose.msra.mxu0 0.0
          %1337 = vmatprep.subr.mxu0 0.0
          %1338 = vmatpush1.xpose.msra.mxu0 0.0
          %1339 = vmatprep.subr.mxu0 0.0
          %1340 = vmatpush1.xpose.msra.mxu0 0.0
          %1341 = vmatprep.subr.mxu0 0.0
          %1342 = vmatpush1.xpose.msra.mxu0 0.0
          %1343 = vmatprep.subr.mxu0 0.0
          %1344 = vmatpush1.xpose.msra.mxu0 0.0
          %1345 = vmatprep.subr.mxu0 0.0
          %1346 = vmatpush1.xpose.msra.mxu0 0.0
          %1347 = vmatprep.mubr.f32.mxu0 0.0
          %1348 = vmatmul.mubr.f32.gmra.mrb[0].mxu0 %v1279
          %v1349 = vpop.f32.mrb[0].mxu0
          %v1350 = vadd.f32 0.0, %v1349
          %v1351 = vpop.f32.mrb[0].mxu0
          %1352 = vdwg.mxu0
          %v1353 = vmul.f32 %v1350, 0.35355338
          %v1354 = vadd.f32 %v1353, %v502
          %s1355 = scalar_lea.vmem [#allocation3], 32
          %v1356 = vld [vmem:[%s1355] sm:$0xff]
          %v1357 = vsel %vm504, %v1354, -inf
          %1358 = vmax.xlane.f32.xlu0 %v1357
          %v1359 = vpop.xlane.xlu0 %1358
          %v1360 = vmax.f32 %v1356, %v1359
          %v1361 = vsub.f32 %v1356, %v1360
          %v1362 = vmul.f32 %v1361, 1.442695
          %v1363 = vpow.pop %v1362
          %1365 = vset.pattern.permute.xlu0 0
          %1366 = vperm.xlu0 %1365, %v1360
          %v1367 = vpop.permute.xlu0 %1366
          %v1369 = vsub.f32 %v1354, %v1367
          %v1370 = vmul.f32 %v1369, 1.442695
          %v1371 = vpow.pop %v1370
          %s1372 = scalar_lea.vmem [#allocation4], 32
          %v1373 = vld [vmem:[%s1372] sm:$0xff]
          %v1374 = vmul.f32 %v1363, %v1373
          %v1375 = vsel %vm504, %v1371, 0.0
          %1376 = vadd.xlane.f32.xlu0 %v1375
          %v1377 = vpop.xlane.xlu0 %1376
          %v1378 = vadd.f32 %v1374, %v1377
          %1379 = vst.msk [vmem:[%s1372] sm:$0xff] %vm605, %v1378
          %s1380 = scalar_lea.vmem [#allocation5], 32
          %v1381 = vld [vmem:[%s1380] sm:$0xff]
          %1383 = vset.pattern.permute.xlu0 0
          %1384 = vperm.xlu0 %1383, %v1363
          %v1385 = vpop.permute.xlu0 %1384
          %v1387 = vmul.f32 %v1385, %v1381
          %1388 = vrot.lane.b32.xlu0 %v492, 96
          %v1389 = vpop.permute.xlu0 %1388
          %v1392 = vsel %vm504, %v1371, 0
          %1394 = vmatprep.subr.mxu0 0.0
          %1395 = vmatpush1.msra.mxu0 %v1389
          %1396 = vmatprep.subr.mxu0 0.0
          %1397 = vmatpush1.msra.mxu0 0.0
          %1398 = vmatprep.subr.mxu0 0.0
          %1399 = vmatpush1.msra.mxu0 0.0
          %1400 = vmatprep.subr.mxu0 0.0
          %1401 = vmatpush1.msra.mxu0 0.0
          %1402 = vmatprep.subr.mxu0 0.0
          %1403 = vmatpush1.msra.mxu0 0.0
          %1404 = vmatprep.subr.mxu0 0.0
          %1405 = vmatpush1.msra.mxu0 0.0
          %1406 = vmatprep.subr.mxu0 0.0
          %1407 = vmatpush1.msra.mxu0 0.0
          %1408 = vmatprep.subr.mxu0 0.0
          %1409 = vmatpush1.msra.mxu0 0.0
          %1410 = vmatprep.subr.mxu0 0.0
          %1411 = vmatpush1.msra.mxu0 0.0
          %1412 = vmatprep.subr.mxu0 0.0
          %1413 = vmatpush1.msra.mxu0 0.0
          %1414 = vmatprep.subr.mxu0 0.0
          %1415 = vmatpush1.msra.mxu0 0.0
          %1416 = vmatprep.subr.mxu0 0.0
          %1417 = vmatpush1.msra.mxu0 0.0
          %1418 = vmatprep.subr.mxu0 0.0
          %1419 = vmatpush1.msra.mxu0 0.0
          %1420 = vmatprep.subr.mxu0 0.0
          %1421 = vmatpush1.msra.mxu0 0.0
          %1422 = vmatprep.subr.mxu0 0.0
          %1423 = vmatpush1.msra.mxu0 0.0
          %1424 = vmatprep.subr.mxu0 0.0
          %1425 = vmatpush1.msra.mxu0 0.0
          %1426 = vmatprep.subr.mxu0 0.0
          %1427 = vmatpush1.msra.mxu0 0.0
          %1428 = vmatprep.subr.mxu0 0.0
          %1429 = vmatpush1.msra.mxu0 0.0
          %1430 = vmatprep.subr.mxu0 0.0
          %1431 = vmatpush1.msra.mxu0 0.0
          %1432 = vmatprep.subr.mxu0 0.0
          %1433 = vmatpush1.msra.mxu0 0.0
          %1434 = vmatprep.subr.mxu0 0.0
          %1435 = vmatpush1.msra.mxu0 0.0
          %1436 = vmatprep.subr.mxu0 0.0
          %1437 = vmatpush1.msra.mxu0 0.0
          %1438 = vmatprep.subr.mxu0 0.0
          %1439 = vmatpush1.msra.mxu0 0.0
          %1440 = vmatprep.subr.mxu0 0.0
          %1441 = vmatpush1.msra.mxu0 0.0
          %1442 = vmatprep.subr.mxu0 0.0
          %1443 = vmatpush1.msra.mxu0 0.0
          %1444 = vmatprep.subr.mxu0 0.0
          %1445 = vmatpush1.msra.mxu0 0.0
          %1446 = vmatprep.subr.mxu0 0.0
          %1447 = vmatpush1.msra.mxu0 0.0
          %1448 = vmatprep.subr.mxu0 0.0
          %1449 = vmatpush1.msra.mxu0 0.0
          %1450 = vmatprep.subr.mxu0 0.0
          %1451 = vmatpush1.msra.mxu0 0.0
          %1452 = vmatprep.subr.mxu0 0.0
          %1453 = vmatpush1.msra.mxu0 0.0
          %1454 = vmatprep.subr.mxu0 0.0
          %1455 = vmatpush1.msra.mxu0 0.0
          %1456 = vmatprep.subr.mxu0 0.0
          %1457 = vmatpush1.msra.mxu0 0.0
          %1458 = vmatprep.mubr.f32.mxu0 0.0
          %1459 = vmatmul.mubr.f32.gmra.mrb[0].mxu0 %v1392
          %v1460 = vpop.f32.mrb[0].mxu0
          %v1461 = vadd.f32 0.0, %v1460
          %v1462 = vpop.f32.mrb[0].mxu0
          %1463 = vdwg.mxu0
          %v1464 = vadd.f32 %v1387, %v1461
          %1465 = vst.msk [vmem:[%s1380] sm:$0xff] %vm504, %v1464
          %1466 = vst.msk [vmem:[%s1355] sm:$0xff] %vm605, %v1360
          %v1467 = vld [vmem:[#allocation2] sm:$0xff]
          %1469 = vrot.lane.b32.xlu0 %v1467, 88
          %v1470 = vpop.permute.xlu0 %1469
          %1471 = vrot.lane.b32.xlu0 %v491, 88
          %v1472 = vpop.permute.xlu0 %1471
          %v1473 = vsel %vm504, %v1470, 0
          %v1475 = vsel %vm504, %v1472, 0
          %1477 = vmatprep.subr.mxu0 0.0
          %1478 = vmatpush1.xpose.msra.mxu0 %v1475
          %1479 = vmatprep.subr.mxu0 0.0
          %1480 = vmatpush1.xpose.msra.mxu0 0.0
          %1481 = vmatprep.subr.mxu0 0.0
          %1482 = vmatpush1.xpose.msra.mxu0 0.0
          %1483 = vmatprep.subr.mxu0 0.0
          %1484 = vmatpush1.xpose.msra.mxu0 0.0
          %1485 = vmatprep.subr.mxu0 0.0
          %1486 = vmatpush1.xpose.msra.mxu0 0.0
          %1487 = vmatprep.subr.mxu0 0.0
          %1488 = vmatpush1.xpose.msra.mxu0 0.0
          %1489 = vmatprep.subr.mxu0 0.0
          %1490 = vmatpush1.xpose.msra.mxu0 0.0
          %1491 = vmatprep.subr.mxu0 0.0
          %1492 = vmatpush1.xpose.msra.mxu0 0.0
          %1493 = vmatprep.subr.mxu0 0.0
          %1494 = vmatpush1.xpose.msra.mxu0 0.0
          %1495 = vmatprep.subr.mxu0 0.0
          %1496 = vmatpush1.xpose.msra.mxu0 0.0
          %1497 = vmatprep.subr.mxu0 0.0
          %1498 = vmatpush1.xpose.msra.mxu0 0.0
          %1499 = vmatprep.subr.mxu0 0.0
          %1500 = vmatpush1.xpose.msra.mxu0 0.0
          %1501 = vmatprep.subr.mxu0 0.0
          %1502 = vmatpush1.xpose.msra.mxu0 0.0
          %1503 = vmatprep.subr.mxu0 0.0
          %1504 = vmatpush1.xpose.msra.mxu0 0.0
          %1505 = vmatprep.subr.mxu0 0.0
          %1506 = vmatpush1.xpose.msra.mxu0 0.0
          %1507 = vmatprep.subr.mxu0 0.0
          %1508 = vmatpush1.xpose.msra.mxu0 0.0
          %1509 = vmatprep.subr.mxu0 0.0
          %1510 = vmatpush1.xpose.msra.mxu0 0.0
          %1511 = vmatprep.subr.mxu0 0.0
          %1512 = vmatpush1.xpose.msra.mxu0 0.0
          %1513 = vmatprep.subr.mxu0 0.0
          %1514 = vmatpush1.xpose.msra.mxu0 0.0
          %1515 = vmatprep.subr.mxu0 0.0
          %1516 = vmatpush1.xpose.msra.mxu0 0.0
          %1517 = vmatprep.subr.mxu0 0.0
          %1518 = vmatpush1.xpose.msra.mxu0 0.0
          %1519 = vmatprep.subr.mxu0 0.0
          %1520 = vmatpush1.xpose.msra.mxu0 0.0
          %1521 = vmatprep.subr.mxu0 0.0
          %1522 = vmatpush1.xpose.msra.mxu0 0.0
          %1523 = vmatprep.subr.mxu0 0.0
          %1524 = vmatpush1.xpose.msra.mxu0 0.0
          %1525 = vmatprep.subr.mxu0 0.0
          %1526 = vmatpush1.xpose.msra.mxu0 0.0
          %1527 = vmatprep.subr.mxu0 0.0
          %1528 = vmatpush1.xpose.msra.mxu0 0.0
          %1529 = vmatprep.subr.mxu0 0.0
          %1530 = vmatpush1.xpose.msra.mxu0 0.0
          %1531 = vmatprep.subr.mxu0 0.0
          %1532 = vmatpush1.xpose.msra.mxu0 0.0
          %1533 = vmatprep.subr.mxu0 0.0
          %1534 = vmatpush1.xpose.msra.mxu0 0.0
          %1535 = vmatprep.subr.mxu0 0.0
          %1536 = vmatpush1.xpose.msra.mxu0 0.0
          %1537 = vmatprep.subr.mxu0 0.0
          %1538 = vmatpush1.xpose.msra.mxu0 0.0
          %1539 = vmatprep.subr.mxu0 0.0
          %1540 = vmatpush1.xpose.msra.mxu0 0.0
          %1541 = vmatprep.mubr.f32.mxu0 0.0
          %1542 = vmatmul.mubr.f32.gmra.mrb[0].mxu0 %v1473
          %v1543 = vpop.f32.mrb[0].mxu0
          %v1544 = vadd.f32 0.0, %v1543
          %v1545 = vpop.f32.mrb[0].mxu0
          %1546 = vdwg.mxu0
          %v1547 = vmul.f32 %v1544, 0.35355338
          %v1548 = vadd.f32 %v1547, %v502
          %s1549 = scalar_lea.vmem [#allocation3], 40
          %v1550 = vld [vmem:[%s1549] sm:$0xff]
          %v1551 = vsel %vm504, %v1548, -inf
          %1552 = vmax.xlane.f32.xlu0 %v1551
          %v1553 = vpop.xlane.xlu0 %1552
          %v1554 = vmax.f32 %v1550, %v1553
          %v1555 = vsub.f32 %v1550, %v1554
          %v1556 = vmul.f32 %v1555, 1.442695
          %v1557 = vpow.pop %v1556
          %1559 = vset.pattern.permute.xlu0 0
          %1560 = vperm.xlu0 %1559, %v1554
          %v1561 = vpop.permute.xlu0 %1560
          %v1563 = vsub.f32 %v1548, %v1561
          %v1564 = vmul.f32 %v1563, 1.442695
          %v1565 = vpow.pop %v1564
          %s1566 = scalar_lea.vmem [#allocation4], 40
          %v1567 = vld [vmem:[%s1566] sm:$0xff]
          %v1568 = vmul.f32 %v1557, %v1567
          %v1569 = vsel %vm504, %v1565, 0.0
          %1570 = vadd.xlane.f32.xlu0 %v1569
          %v1571 = vpop.xlane.xlu0 %1570
          %v1572 = vadd.f32 %v1568, %v1571
          %1573 = vst.msk [vmem:[%s1566] sm:$0xff] %vm605, %v1572
          %s1574 = scalar_lea.vmem [#allocation5], 40
          %v1575 = vld [vmem:[%s1574] sm:$0xff]
          %1577 = vset.pattern.permute.xlu0 0
          %1578 = vperm.xlu0 %1577, %v1557
          %v1579 = vpop.permute.xlu0 %1578
          %v1581 = vmul.f32 %v1579, %v1575
          %1582 = vrot.lane.b32.xlu0 %v492, 88
          %v1583 = vpop.permute.xlu0 %1582
          %v1586 = vsel %vm504, %v1565, 0
          %1588 = vmatprep.subr.mxu0 0.0
          %1589 = vmatpush1.msra.mxu0 %v1583
          %1590 = vmatprep.subr.mxu0 0.0
          %1591 = vmatpush1.msra.mxu0 0.0
          %1592 = vmatprep.subr.mxu0 0.0
          %1593 = vmatpush1.msra.mxu0 0.0
          %1594 = vmatprep.subr.mxu0 0.0
          %1595 = vmatpush1.msra.mxu0 0.0
          %1596 = vmatprep.subr.mxu0 0.0
          %1597 = vmatpush1.msra.mxu0 0.0
          %1598 = vmatprep.subr.mxu0 0.0
          %1599 = vmatpush1.msra.mxu0 0.0
          %1600 = vmatprep.subr.mxu0 0.0
          %1601 = vmatpush1.msra.mxu0 0.0
          %1602 = vmatprep.subr.mxu0 0.0
          %1603 = vmatpush1.msra.mxu0 0.0
          %1604 = vmatprep.subr.mxu0 0.0
          %1605 = vmatpush1.msra.mxu0 0.0
          %1606 = vmatprep.subr.mxu0 0.0
          %1607 = vmatpush1.msra.mxu0 0.0
          %1608 = vmatprep.subr.mxu0 0.0
          %1609 = vmatpush1.msra.mxu0 0.0
          %1610 = vmatprep.subr.mxu0 0.0
          %1611 = vmatpush1.msra.mxu0 0.0
          %1612 = vmatprep.subr.mxu0 0.0
          %1613 = vmatpush1.msra.mxu0 0.0
          %1614 = vmatprep.subr.mxu0 0.0
          %1615 = vmatpush1.msra.mxu0 0.0
          %1616 = vmatprep.subr.mxu0 0.0
          %1617 = vmatpush1.msra.mxu0 0.0
          %1618 = vmatprep.subr.mxu0 0.0
          %1619 = vmatpush1.msra.mxu0 0.0
          %1620 = vmatprep.subr.mxu0 0.0
          %1621 = vmatpush1.msra.mxu0 0.0
          %1622 = vmatprep.subr.mxu0 0.0
          %1623 = vmatpush1.msra.mxu0 0.0
          %1624 = vmatprep.subr.mxu0 0.0
          %1625 = vmatpush1.msra.mxu0 0.0
          %1626 = vmatprep.subr.mxu0 0.0
          %1627 = vmatpush1.msra.mxu0 0.0
          %1628 = vmatprep.subr.mxu0 0.0
          %1629 = vmatpush1.msra.mxu0 0.0
          %1630 = vmatprep.subr.mxu0 0.0
          %1631 = vmatpush1.msra.mxu0 0.0
          %1632 = vmatprep.subr.mxu0 0.0
          %1633 = vmatpush1.msra.mxu0 0.0
          %1634 = vmatprep.subr.mxu0 0.0
          %1635 = vmatpush1.msra.mxu0 0.0
          %1636 = vmatprep.subr.mxu0 0.0
          %1637 = vmatpush1.msra.mxu0 0.0
          %1638 = vmatprep.subr.mxu0 0.0
          %1639 = vmatpush1.msra.mxu0 0.0
          %1640 = vmatprep.subr.mxu0 0.0
          %1641 = vmatpush1.msra.mxu0 0.0
          %1642 = vmatprep.subr.mxu0 0.0
          %1643 = vmatpush1.msra.mxu0 0.0
          %1644 = vmatprep.subr.mxu0 0.0
          %1645 = vmatpush1.msra.mxu0 0.0
          %1646 = vmatprep.subr.mxu0 0.0
          %1647 = vmatpush1.msra.mxu0 0.0
          %1648 = vmatprep.subr.mxu0 0.0
          %1649 = vmatpush1.msra.mxu0 0.0
          %1650 = vmatprep.subr.mxu0 0.0
          %1651 = vmatpush1.msra.mxu0 0.0
          %1652 = vmatprep.mubr.f32.mxu0 0.0
          %1653 = vmatmul.mubr.f32.gmra.mrb[0].mxu0 %v1586
          %v1654 = vpop.f32.mrb[0].mxu0
          %v1655 = vadd.f32 0.0, %v1654
          %v1656 = vpop.f32.mrb[0].mxu0
          %1657 = vdwg.mxu0
          %v1658 = vadd.f32 %v1581, %v1655
          %1659 = vst.msk [vmem:[%s1574] sm:$0xff] %vm504, %v1658
          %1660 = vst.msk [vmem:[%s1549] sm:$0xff] %vm605, %v1554
          %v1661 = vld [vmem:[#allocation2] sm:$0xff]
          %1663 = vrot.lane.b32.xlu0 %v1661, 80
          %v1664 = vpop.permute.xlu0 %1663
          %1665 = vrot.lane.b32.xlu0 %v491, 80
          %v1666 = vpop.permute.xlu0 %1665
          %v1667 = vsel %vm504, %v1664, 0
          %v1669 = vsel %vm504, %v1666, 0
          %1671 = vmatprep.subr.mxu0 0.0
          %1672 = vmatpush1.xpose.msra.mxu0 %v1669
          %1673 = vmatprep.subr.mxu0 0.0
          %1674 = vmatpush1.xpose.msra.mxu0 0.0
          %1675 = vmatprep.subr.mxu0 0.0
          %1676 = vmatpush1.xpose.msra.mxu0 0.0
          %1677 = vmatprep.subr.mxu0 0.0
          %1678 = vmatpush1.xpose.msra.mxu0 0.0
          %1679 = vmatprep.subr.mxu0 0.0
          %1680 = vmatpush1.xpose.msra.mxu0 0.0
          %1681 = vmatprep.subr.mxu0 0.0
          %1682 = vmatpush1.xpose.msra.mxu0 0.0
          %1683 = vmatprep.subr.mxu0 0.0
          %1684 = vmatpush1.xpose.msra.mxu0 0.0
          %1685 = vmatprep.subr.mxu0 0.0
          %1686 = vmatpush1.xpose.msra.mxu0 0.0
          %1687 = vmatprep.subr.mxu0 0.0
          %1688 = vmatpush1.xpose.msra.mxu0 0.0
          %1689 = vmatprep.subr.mxu0 0.0
          %1690 = vmatpush1.xpose.msra.mxu0 0.0
          %1691 = vmatprep.subr.mxu0 0.0
          %1692 = vmatpush1.xpose.msra.mxu0 0.0
          %1693 = vmatprep.subr.mxu0 0.0
          %1694 = vmatpush1.xpose.msra.mxu0 0.0
          %1695 = vmatprep.subr.mxu0 0.0
          %1696 = vmatpush1.xpose.msra.mxu0 0.0
          %1697 = vmatprep.subr.mxu0 0.0
          %1698 = vmatpush1.xpose.msra.mxu0 0.0
          %1699 = vmatprep.subr.mxu0 0.0
          %1700 = vmatpush1.xpose.msra.mxu0 0.0
          %1701 = vmatprep.subr.mxu0 0.0
          %1702 = vmatpush1.xpose.msra.mxu0 0.0
          %1703 = vmatprep.subr.mxu0 0.0
          %1704 = vmatpush1.xpose.msra.mxu0 0.0
          %1705 = vmatprep.subr.mxu0 0.0
          %1706 = vmatpush1.xpose.msra.mxu0 0.0
          %1707 = vmatprep.subr.mxu0 0.0
          %1708 = vmatpush1.xpose.msra.mxu0 0.0
          %1709 = vmatprep.subr.mxu0 0.0
          %1710 = vmatpush1.xpose.msra.mxu0 0.0
          %1711 = vmatprep.subr.mxu0 0.0
          %1712 = vmatpush1.xpose.msra.mxu0 0.0
          %1713 = vmatprep.subr.mxu0 0.0
          %1714 = vmatpush1.xpose.msra.mxu0 0.0
          %1715 = vmatprep.subr.mxu0 0.0
          %1716 = vmatpush1.xpose.msra.mxu0 0.0
          %1717 = vmatprep.subr.mxu0 0.0
          %1718 = vmatpush1.xpose.msra.mxu0 0.0
          %1719 = vmatprep.subr.mxu0 0.0
          %1720 = vmatpush1.xpose.msra.mxu0 0.0
          %1721 = vmatprep.subr.mxu0 0.0
          %1722 = vmatpush1.xpose.msra.mxu0 0.0
          %1723 = vmatprep.subr.mxu0 0.0
          %1724 = vmatpush1.xpose.msra.mxu0 0.0
          %1725 = vmatprep.subr.mxu0 0.0
          %1726 = vmatpush1.xpose.msra.mxu0 0.0
          %1727 = vmatprep.subr.mxu0 0.0
          %1728 = vmatpush1.xpose.msra.mxu0 0.0
          %1729 = vmatprep.subr.mxu0 0.0
          %1730 = vmatpush1.xpose.msra.mxu0 0.0
          %1731 = vmatprep.subr.mxu0 0.0
          %1732 = vmatpush1.xpose.msra.mxu0 0.0
          %1733 = vmatprep.subr.mxu0 0.0
          %1734 = vmatpush1.xpose.msra.mxu0 0.0
          %1735 = vmatprep.mubr.f32.mxu0 0.0
          %1736 = vmatmul.mubr.f32.gmra.mrb[0].mxu0 %v1667
          %v1737 = vpop.f32.mrb[0].mxu0
          %v1738 = vadd.f32 0.0, %v1737
          %v1739 = vpop.f32.mrb[0].mxu0
          %1740 = vdwg.mxu0
          %v1741 = vmul.f32 %v1738, 0.35355338
          %v1742 = vadd.f32 %v1741, %v502
          %s1743 = scalar_lea.vmem [#allocation3], 48
          %v1744 = vld [vmem:[%s1743] sm:$0xff]
          %v1745 = vsel %vm504, %v1742, -inf
          %1746 = vmax.xlane.f32.xlu0 %v1745
          %v1747 = vpop.xlane.xlu0 %1746
          %v1748 = vmax.f32 %v1744, %v1747
          %v1749 = vsub.f32 %v1744, %v1748
          %v1750 = vmul.f32 %v1749, 1.442695
          %v1751 = vpow.pop %v1750
          %1753 = vset.pattern.permute.xlu0 0
          %1754 = vperm.xlu0 %1753, %v1748
          %v1755 = vpop.permute.xlu0 %1754
          %v1757 = vsub.f32 %v1742, %v1755
          %v1758 = vmul.f32 %v1757, 1.442695
          %v1759 = vpow.pop %v1758
          %s1760 = scalar_lea.vmem [#allocation4], 48
          %v1761 = vld [vmem:[%s1760] sm:$0xff]
          %v1762 = vmul.f32 %v1751, %v1761
          %v1763 = vsel %vm504, %v1759, 0.0
          %1764 = vadd.xlane.f32.xlu0 %v1763
          %v1765 = vpop.xlane.xlu0 %1764
          %v1766 = vadd.f32 %v1762, %v1765
          %1767 = vst.msk [vmem:[%s1760] sm:$0xff] %vm605, %v1766
          %s1768 = scalar_lea.vmem [#allocation5], 48
          %v1769 = vld [vmem:[%s1768] sm:$0xff]
          %1771 = vset.pattern.permute.xlu0 0
          %1772 = vperm.xlu0 %1771, %v1751
          %v1773 = vpop.permute.xlu0 %1772
          %v1775 = vmul.f32 %v1773, %v1769
          %1776 = vrot.lane.b32.xlu0 %v492, 80
          %v1777 = vpop.permute.xlu0 %1776
          %v1780 = vsel %vm504, %v1759, 0
          %1782 = vmatprep.subr.mxu0 0.0
          %1783 = vmatpush1.msra.mxu0 %v1777
          %1784 = vmatprep.subr.mxu0 0.0
          %1785 = vmatpush1.msra.mxu0 0.0
          %1786 = vmatprep.subr.mxu0 0.0
          %1787 = vmatpush1.msra.mxu0 0.0
          %1788 = vmatprep.subr.mxu0 0.0
          %1789 = vmatpush1.msra.mxu0 0.0
          %1790 = vmatprep.subr.mxu0 0.0
          %1791 = vmatpush1.msra.mxu0 0.0
          %1792 = vmatprep.subr.mxu0 0.0
          %1793 = vmatpush1.msra.mxu0 0.0
          %1794 = vmatprep.subr.mxu0 0.0
          %1795 = vmatpush1.msra.mxu0 0.0
          %1796 = vmatprep.subr.mxu0 0.0
          %1797 = vmatpush1.msra.mxu0 0.0
          %1798 = vmatprep.subr.mxu0 0.0
          %1799 = vmatpush1.msra.mxu0 0.0
          %1800 = vmatprep.subr.mxu0 0.0
          %1801 = vmatpush1.msra.mxu0 0.0
          %1802 = vmatprep.subr.mxu0 0.0
          %1803 = vmatpush1.msra.mxu0 0.0
          %1804 = vmatprep.subr.mxu0 0.0
          %1805 = vmatpush1.msra.mxu0 0.0
          %1806 = vmatprep.subr.mxu0 0.0
          %1807 = vmatpush1.msra.mxu0 0.0
          %1808 = vmatprep.subr.mxu0 0.0
          %1809 = vmatpush1.msra.mxu0 0.0
          %1810 = vmatprep.subr.mxu0 0.0
          %1811 = vmatpush1.msra.mxu0 0.0
          %1812 = vmatprep.subr.mxu0 0.0
          %1813 = vmatpush1.msra.mxu0 0.0
          %1814 = vmatprep.subr.mxu0 0.0
          %1815 = vmatpush1.msra.mxu0 0.0
          %1816 = vmatprep.subr.mxu0 0.0
          %1817 = vmatpush1.msra.mxu0 0.0
          %1818 = vmatprep.subr.mxu0 0.0
          %1819 = vmatpush1.msra.mxu0 0.0
          %1820 = vmatprep.subr.mxu0 0.0
          %1821 = vmatpush1.msra.mxu0 0.0
          %1822 = vmatprep.subr.mxu0 0.0
          %1823 = vmatpush1.msra.mxu0 0.0
          %1824 = vmatprep.subr.mxu0 0.0
          %1825 = vmatpush1.msra.mxu0 0.0
          %1826 = vmatprep.subr.mxu0 0.0
          %1827 = vmatpush1.msra.mxu0 0.0
          %1828 = vmatprep.subr.mxu0 0.0
          %1829 = vmatpush1.msra.mxu0 0.0
          %1830 = vmatprep.subr.mxu0 0.0
          %1831 = vmatpush1.msra.mxu0 0.0
          %1832 = vmatprep.subr.mxu0 0.0
          %1833 = vmatpush1.msra.mxu0 0.0
          %1834 = vmatprep.subr.mxu0 0.0
          %1835 = vmatpush1.msra.mxu0 0.0
          %1836 = vmatprep.subr.mxu0 0.0
          %1837 = vmatpush1.msra.mxu0 0.0
          %1838 = vmatprep.subr.mxu0 0.0
          %1839 = vmatpush1.msra.mxu0 0.0
          %1840 = vmatprep.subr.mxu0 0.0
          %1841 = vmatpush1.msra.mxu0 0.0
          %1842 = vmatprep.subr.mxu0 0.0
          %1843 = vmatpush1.msra.mxu0 0.0
          %1844 = vmatprep.subr.mxu0 0.0
          %1845 = vmatpush1.msra.mxu0 0.0
          %1846 = vmatprep.mubr.f32.mxu0 0.0
          %1847 = vmatmul.mubr.f32.gmra.mrb[0].mxu0 %v1780
          %v1848 = vpop.f32.mrb[0].mxu0
          %v1849 = vadd.f32 0.0, %v1848
          %v1850 = vpop.f32.mrb[0].mxu0
          %1851 = vdwg.mxu0
          %v1852 = vadd.f32 %v1775, %v1849
          %1853 = vst.msk [vmem:[%s1768] sm:$0xff] %vm504, %v1852
          %1854 = vst.msk [vmem:[%s1743] sm:$0xff] %vm605, %v1748
          %v1855 = vld [vmem:[#allocation2] sm:$0xff]
          %1857 = vrot.lane.b32.xlu0 %v1855, 72
          %v1858 = vpop.permute.xlu0 %1857
          %1859 = vrot.lane.b32.xlu0 %v491, 72
          %v1860 = vpop.permute.xlu0 %1859
          %v1861 = vsel %vm504, %v1858, 0
          %v1863 = vsel %vm504, %v1860, 0
          %1865 = vmatprep.subr.mxu0 0.0
          %1866 = vmatpush1.xpose.msra.mxu0 %v1863
          %1867 = vmatprep.subr.mxu0 0.0
          %1868 = vmatpush1.xpose.msra.mxu0 0.0
          %1869 = vmatprep.subr.mxu0 0.0
          %1870 = vmatpush1.xpose.msra.mxu0 0.0
          %1871 = vmatprep.subr.mxu0 0.0
          %1872 = vmatpush1.xpose.msra.mxu0 0.0
          %1873 = vmatprep.subr.mxu0 0.0
          %1874 = vmatpush1.xpose.msra.mxu0 0.0
          %1875 = vmatprep.subr.mxu0 0.0
          %1876 = vmatpush1.xpose.msra.mxu0 0.0
          %1877 = vmatprep.subr.mxu0 0.0
          %1878 = vmatpush1.xpose.msra.mxu0 0.0
          %1879 = vmatprep.subr.mxu0 0.0
          %1880 = vmatpush1.xpose.msra.mxu0 0.0
          %1881 = vmatprep.subr.mxu0 0.0
          %1882 = vmatpush1.xpose.msra.mxu0 0.0
          %1883 = vmatprep.subr.mxu0 0.0
          %1884 = vmatpush1.xpose.msra.mxu0 0.0
          %1885 = vmatprep.subr.mxu0 0.0
          %1886 = vmatpush1.xpose.msra.mxu0 0.0
          %1887 = vmatprep.subr.mxu0 0.0
          %1888 = vmatpush1.xpose.msra.mxu0 0.0
          %1889 = vmatprep.subr.mxu0 0.0
          %1890 = vmatpush1.xpose.msra.mxu0 0.0
          %1891 = vmatprep.subr.mxu0 0.0
          %1892 = vmatpush1.xpose.msra.mxu0 0.0
          %1893 = vmatprep.subr.mxu0 0.0
          %1894 = vmatpush1.xpose.msra.mxu0 0.0
          %1895 = vmatprep.subr.mxu0 0.0
          %1896 = vmatpush1.xpose.msra.mxu0 0.0
          %1897 = vmatprep.subr.mxu0 0.0
          %1898 = vmatpush1.xpose.msra.mxu0 0.0
          %1899 = vmatprep.subr.mxu0 0.0
          %1900 = vmatpush1.xpose.msra.mxu0 0.0
          %1901 = vmatprep.subr.mxu0 0.0
          %1902 = vmatpush1.xpose.msra.mxu0 0.0
          %1903 = vmatprep.subr.mxu0 0.0
          %1904 = vmatpush1.xpose.msra.mxu0 0.0
          %1905 = vmatprep.subr.mxu0 0.0
          %1906 = vmatpush1.xpose.msra.mxu0 0.0
          %1907 = vmatprep.subr.mxu0 0.0
          %1908 = vmatpush1.xpose.msra.mxu0 0.0
          %1909 = vmatprep.subr.mxu0 0.0
          %1910 = vmatpush1.xpose.msra.mxu0 0.0
          %1911 = vmatprep.subr.mxu0 0.0
          %1912 = vmatpush1.xpose.msra.mxu0 0.0
          %1913 = vmatprep.subr.mxu0 0.0
          %1914 = vmatpush1.xpose.msra.mxu0 0.0
          %1915 = vmatprep.subr.mxu0 0.0
          %1916 = vmatpush1.xpose.msra.mxu0 0.0
          %1917 = vmatprep.subr.mxu0 0.0
          %1918 = vmatpush1.xpose.msra.mxu0 0.0
          %1919 = vmatprep.subr.mxu0 0.0
          %1920 = vmatpush1.xpose.msra.mxu0 0.0
          %1921 = vmatprep.subr.mxu0 0.0
          %1922 = vmatpush1.xpose.msra.mxu0 0.0
          %1923 = vmatprep.subr.mxu0 0.0
          %1924 = vmatpush1.xpose.msra.mxu0 0.0
          %1925 = vmatprep.subr.mxu0 0.0
          %1926 = vmatpush1.xpose.msra.mxu0 0.0
          %1927 = vmatprep.subr.mxu0 0.0
          %1928 = vmatpush1.xpose.msra.mxu0 0.0
          %1929 = vmatprep.mubr.f32.mxu0 0.0
          %1930 = vmatmul.mubr.f32.gmra.mrb[0].mxu0 %v1861
          %v1931 = vpop.f32.mrb[0].mxu0
          %v1932 = vadd.f32 0.0, %v1931
          %v1933 = vpop.f32.mrb[0].mxu0
          %1934 = vdwg.mxu0
          %v1935 = vmul.f32 %v1932, 0.35355338
          %v1936 = vadd.f32 %v1935, %v502
          %s1937 = scalar_lea.vmem [#allocation3], 56
          %v1938 = vld [vmem:[%s1937] sm:$0xff]
          %v1939 = vsel %vm504, %v1936, -inf
          %1940 = vmax.xlane.f32.xlu0 %v1939
          %v1941 = vpop.xlane.xlu0 %1940
          %v1942 = vmax.f32 %v1938, %v1941
          %v1943 = vsub.f32 %v1938, %v1942
          %v1944 = vmul.f32 %v1943, 1.442695
          %v1945 = vpow.pop %v1944
          %1947 = vset.pattern.permute.xlu0 0
          %1948 = vperm.xlu0 %1947, %v1942
          %v1949 = vpop.permute.xlu0 %1948
          %v1951 = vsub.f32 %v1936, %v1949
          %v1952 = vmul.f32 %v1951, 1.442695
          %v1953 = vpow.pop %v1952
          %s1954 = scalar_lea.vmem [#allocation4], 56
          %v1955 = vld [vmem:[%s1954] sm:$0xff]
          %v1956 = vmul.f32 %v1945, %v1955
          %v1957 = vsel %vm504, %v1953, 0.0
          %1958 = vadd.xlane.f32.xlu0 %v1957
          %v1959 = vpop.xlane.xlu0 %1958
          %v1960 = vadd.f32 %v1956, %v1959
          %1961 = vst.msk [vmem:[%s1954] sm:$0xff] %vm605, %v1960
          %s1962 = scalar_lea.vmem [#allocation5], 56
          %v1963 = vld [vmem:[%s1962] sm:$0xff]
          %1965 = vset.pattern.permute.xlu0 0
          %1966 = vperm.xlu0 %1965, %v1945
          %v1967 = vpop.permute.xlu0 %1966
          %v1969 = vmul.f32 %v1967, %v1963
          %1970 = vrot.lane.b32.xlu0 %v492, 72
          %v1971 = vpop.permute.xlu0 %1970
          %v1974 = vsel %vm504, %v1953, 0
          %1976 = vmatprep.subr.mxu0 0.0
          %1977 = vmatpush1.msra.mxu0 %v1971
          %1978 = vmatprep.subr.mxu0 0.0
          %1979 = vmatpush1.msra.mxu0 0.0
          %1980 = vmatprep.subr.mxu0 0.0
          %1981 = vmatpush1.msra.mxu0 0.0
          %1982 = vmatprep.subr.mxu0 0.0
          %1983 = vmatpush1.msra.mxu0 0.0
          %1984 = vmatprep.subr.mxu0 0.0
          %1985 = vmatpush1.msra.mxu0 0.0
          %1986 = vmatprep.subr.mxu0 0.0
          %1987 = vmatpush1.msra.mxu0 0.0
          %1988 = vmatprep.subr.mxu0 0.0
          %1989 = vmatpush1.msra.mxu0 0.0
          %1990 = vmatprep.subr.mxu0 0.0
          %1991 = vmatpush1.msra.mxu0 0.0
          %1992 = vmatprep.subr.mxu0 0.0
          %1993 = vmatpush1.msra.mxu0 0.0
          %1994 = vmatprep.subr.mxu0 0.0
          %1995 = vmatpush1.msra.mxu0 0.0
          %1996 = vmatprep.subr.mxu0 0.0
          %1997 = vmatpush1.msra.mxu0 0.0
          %1998 = vmatprep.subr.mxu0 0.0
          %1999 = vmatpush1.msra.mxu0 0.0
          %2000 = vmatprep.subr.mxu0 0.0
          %2001 = vmatpush1.msra.mxu0 0.0
          %2002 = vmatprep.subr.mxu0 0.0
          %2003 = vmatpush1.msra.mxu0 0.0
          %2004 = vmatprep.subr.mxu0 0.0
          %2005 = vmatpush1.msra.mxu0 0.0
          %2006 = vmatprep.subr.mxu0 0.0
          %2007 = vmatpush1.msra.mxu0 0.0
          %2008 = vmatprep.subr.mxu0 0.0
          %2009 = vmatpush1.msra.mxu0 0.0
          %2010 = vmatprep.subr.mxu0 0.0
          %2011 = vmatpush1.msra.mxu0 0.0
          %2012 = vmatprep.subr.mxu0 0.0
          %2013 = vmatpush1.msra.mxu0 0.0
          %2014 = vmatprep.subr.mxu0 0.0
          %2015 = vmatpush1.msra.mxu0 0.0
          %2016 = vmatprep.subr.mxu0 0.0
          %2017 = vmatpush1.msra.mxu0 0.0
          %2018 = vmatprep.subr.mxu0 0.0
          %2019 = vmatpush1.msra.mxu0 0.0
          %2020 = vmatprep.subr.mxu0 0.0
          %2021 = vmatpush1.msra.mxu0 0.0
          %2022 = vmatprep.subr.mxu0 0.0
          %2023 = vmatpush1.msra.mxu0 0.0
          %2024 = vmatprep.subr.mxu0 0.0
          %2025 = vmatpush1.msra.mxu0 0.0
          %2026 = vmatprep.subr.mxu0 0.0
          %2027 = vmatpush1.msra.mxu0 0.0
          %2028 = vmatprep.subr.mxu0 0.0
          %2029 = vmatpush1.msra.mxu0 0.0
          %2030 = vmatprep.subr.mxu0 0.0
          %2031 = vmatpush1.msra.mxu0 0.0
          %2032 = vmatprep.subr.mxu0 0.0
          %2033 = vmatpush1.msra.mxu0 0.0
          %2034 = vmatprep.subr.mxu0 0.0
          %2035 = vmatpush1.msra.mxu0 0.0
          %2036 = vmatprep.subr.mxu0 0.0
          %2037 = vmatpush1.msra.mxu0 0.0
          %2038 = vmatprep.subr.mxu0 0.0
          %2039 = vmatpush1.msra.mxu0 0.0
          %2040 = vmatprep.mubr.f32.mxu0 0.0
          %2041 = vmatmul.mubr.f32.gmra.mrb[0].mxu0 %v1974
          %v2042 = vpop.f32.mrb[0].mxu0
          %v2043 = vadd.f32 0.0, %v2042
          %v2044 = vpop.f32.mrb[0].mxu0
          %2045 = vdwg.mxu0
          %v2046 = vadd.f32 %v1969, %v2043
          %2047 = vst.msk [vmem:[%s1962] sm:$0xff] %vm504, %v2046
          %2048 = vst.msk [vmem:[%s1937] sm:$0xff] %vm605, %v1942
        $region68: #{tpu_custom_call.1} parent=39 // pred_fallthru
          _
        // Predicated region
        $region69: #{tpu_custom_call.1} parent=39 // pred_check
          %p2049 = pneg %p370
        $region70: #{tpu_custom_call.1} parent=39 // pred_check_branch
          %2051 = sbr.rel (%p2049) target = $region72
        $region71: #{tpu_custom_call.1} parent=39 // pred_region
          %v2052 = vld [vmem:[#allocation4] sm:$0xff]
          %v2053 = vrcp.pop %v2052
          %v2054 = vld [vmem:[#allocation5] sm:$0xff]
          %2056 = vset.pattern.permute.xlu0 0
          %2057 = vperm.xlu0 %2056, %v2053
          %v2058 = vpop.permute.xlu0 %2057
          %v2060 = vmul.f32 %v2054, %v2058
          %s2061 = scalar_lea.vmem [#allocation4], 8
          %v2062 = vld [vmem:[%s2061] sm:$0xff]
          %v2063 = vrcp.pop %v2062
          %s2064 = scalar_lea.vmem [#allocation5], 8
          %v2065 = vld [vmem:[%s2064] sm:$0xff]
          %2067 = vset.pattern.permute.xlu0 0
          %2068 = vperm.xlu0 %2067, %v2063
          %v2069 = vpop.permute.xlu0 %2068
          %v2071 = vmul.f32 %v2065, %v2069
          %s2072 = scalar_lea.vmem [#allocation4], 16
          %v2073 = vld [vmem:[%s2072] sm:$0xff]
          %v2074 = vrcp.pop %v2073
          %s2075 = scalar_lea.vmem [#allocation5], 16
          %v2076 = vld [vmem:[%s2075] sm:$0xff]
          %2078 = vset.pattern.permute.xlu0 0
          %2079 = vperm.xlu0 %2078, %v2074
          %v2080 = vpop.permute.xlu0 %2079
          %v2082 = vmul.f32 %v2076, %v2080
          %s2083 = scalar_lea.vmem [#allocation4], 24
          %v2084 = vld [vmem:[%s2083] sm:$0xff]
          %v2085 = vrcp.pop %v2084
          %s2086 = scalar_lea.vmem [#allocation5], 24
          %v2087 = vld [vmem:[%s2086] sm:$0xff]
          %2089 = vset.pattern.permute.xlu0 0
          %2090 = vperm.xlu0 %2089, %v2085
          %v2091 = vpop.permute.xlu0 %2090
          %v2093 = vmul.f32 %v2087, %v2091
          %s2094 = scalar_lea.vmem [#allocation4], 32
          %v2095 = vld [vmem:[%s2094] sm:$0xff]
          %v2096 = vrcp.pop %v2095
          %s2097 = scalar_lea.vmem [#allocation5], 32
          %v2098 = vld [vmem:[%s2097] sm:$0xff]
          %2100 = vset.pattern.permute.xlu0 0
          %2101 = vperm.xlu0 %2100, %v2096
          %v2102 = vpop.permute.xlu0 %2101
          %v2104 = vmul.f32 %v2098, %v2102
          %s2105 = scalar_lea.vmem [#allocation4], 40
          %v2106 = vld [vmem:[%s2105] sm:$0xff]
          %v2107 = vrcp.pop %v2106
          %s2108 = scalar_lea.vmem [#allocation5], 40
          %v2109 = vld [vmem:[%s2108] sm:$0xff]
          %2111 = vset.pattern.permute.xlu0 0
          %2112 = vperm.xlu0 %2111, %v2107
          %v2113 = vpop.permute.xlu0 %2112
          %v2115 = vmul.f32 %v2109, %v2113
          %s2116 = scalar_lea.vmem [#allocation4], 48
          %v2117 = vld [vmem:[%s2116] sm:$0xff]
          %v2118 = vrcp.pop %v2117
          %s2119 = scalar_lea.vmem [#allocation5], 48
          %v2120 = vld [vmem:[%s2119] sm:$0xff]
          %2122 = vset.pattern.permute.xlu0 0
          %2123 = vperm.xlu0 %2122, %v2118
          %v2124 = vpop.permute.xlu0 %2123
          %v2126 = vmul.f32 %v2120, %v2124
          %s2127 = scalar_lea.vmem [#allocation4], 56
          %v2128 = vld [vmem:[%s2127] sm:$0xff]
          %v2129 = vrcp.pop %v2128
          %s2130 = scalar_lea.vmem [#allocation5], 56
          %v2131 = vld [vmem:[%s2130] sm:$0xff]
          %2133 = vset.pattern.permute.xlu0 0
          %2134 = vperm.xlu0 %2133, %v2129
          %v2135 = vpop.permute.xlu0 %2134
          %v2137 = vmul.f32 %v2131, %v2135
          %2139 = vrot.lane.b32.xlu0 %v2071, 8
          %v2140 = vpop.permute.xlu0 %2139
          %2143 = vrot.lane.b32.xlu0 %v2082, 16
          %v2144 = vpop.permute.xlu0 %2143
          %2147 = vrot.lane.b32.xlu0 %v2093, 24
          %v2148 = vpop.permute.xlu0 %2147
          %2151 = vrot.lane.b32.xlu0 %v2104, 32
          %v2152 = vpop.permute.xlu0 %2151
          %2155 = vrot.lane.b32.xlu0 %v2115, 40
          %v2156 = vpop.permute.xlu0 %2155
          %2159 = vrot.lane.b32.xlu0 %v2126, 48
          %v2160 = vpop.permute.xlu0 %2159
          %2163 = vrot.lane.b32.xlu0 %v2137, 56
          %v2164 = vpop.permute.xlu0 %2163
          %vm2166 = vcmask 64512
          %v2167 = vsel %vm2166, %v2060, %v2140
          %vm2168 = vcmask 130048
          %v2169 = vsel %vm2168, %v2167, %v2144
          %vm2170 = vcmask 195584
          %v2171 = vsel %vm2170, %v2169, %v2148
          %vm2172 = vcmask 261120
          %v2173 = vsel %vm2172, %v2171, %v2152
          %vm2174 = vcmask 326656
          %v2175 = vsel %vm2174, %v2173, %v2156
          %vm2176 = vcmask 392192
          %v2177 = vsel %vm2176, %v2175, %v2160
          %vm2178 = vcmask 457728
          %v2179 = vsel %vm2178, %v2177, %v2164
          %v2180 = vld [vmem:[#allocation14] sm:$0xff]
          %v2181 = vld [vmem:[#allocation14 + $0x8] sm:$0xff]
          %v2182 = vld [vmem:[#allocation14 + $0x10] sm:$0xff]
          %v2183 = vld [vmem:[#allocation14 + $0x18] sm:$0xff]
          %v2184 = vld [vmem:[#allocation14 + $0x20] sm:$0xff]
          %v2185 = vld [vmem:[#allocation14 + $0x28] sm:$0xff]
          %v2186 = vld [vmem:[#allocation14 + $0x30] sm:$0xff]
          %v2187 = vld [vmem:[#allocation14 + $0x38] sm:$0xff]
          %vm2188 = vcmask 523264
          %v2190 = vsel %vm2188, %v2179, 0
          %2192 = vmatprep.subr.mxu0 0.0
          %2193 = vmatpush1.msra.mxu0 %v2180
          %2194 = vmatprep.subr.mxu0 0.0
          %2195 = vmatpush1.msra.mxu0 %v2181
          %2196 = vmatprep.subr.mxu0 0.0
          %2197 = vmatpush1.msra.mxu0 %v2182
          %2198 = vmatprep.subr.mxu0 0.0
          %2199 = vmatpush1.msra.mxu0 %v2183
          %2200 = vmatprep.subr.mxu0 0.0
          %2201 = vmatpush1.msra.mxu0 %v2184
          %2202 = vmatprep.subr.mxu0 0.0
          %2203 = vmatpush1.msra.mxu0 %v2185
          %2204 = vmatprep.subr.mxu0 0.0
          %2205 = vmatpush1.msra.mxu0 %v2186
          %2206 = vmatprep.subr.mxu0 0.0
          %2207 = vmatpush1.msra.mxu0 %v2187
          %2208 = vmatprep.subr.mxu0 0.0
          %2209 = vmatpush1.msra.mxu0 0.0
          %2210 = vmatprep.subr.mxu0 0.0
          %2211 = vmatpush1.msra.mxu0 0.0
          %2212 = vmatprep.subr.mxu0 0.0
          %2213 = vmatpush1.msra.mxu0 0.0
          %2214 = vmatprep.subr.mxu0 0.0
          %2215 = vmatpush1.msra.mxu0 0.0
          %2216 = vmatprep.subr.mxu0 0.0
          %2217 = vmatpush1.msra.mxu0 0.0
          %2218 = vmatprep.subr.mxu0 0.0
          %2219 = vmatpush1.msra.mxu0 0.0
          %2220 = vmatprep.subr.mxu0 0.0
          %2221 = vmatpush1.msra.mxu0 0.0
          %2222 = vmatprep.subr.mxu0 0.0
          %2223 = vmatpush1.msra.mxu0 0.0
          %2224 = vmatprep.subr.mxu0 0.0
          %2225 = vmatpush1.msra.mxu0 0.0
          %2226 = vmatprep.subr.mxu0 0.0
          %2227 = vmatpush1.msra.mxu0 0.0
          %2228 = vmatprep.subr.mxu0 0.0
          %2229 = vmatpush1.msra.mxu0 0.0
          %2230 = vmatprep.subr.mxu0 0.0
          %2231 = vmatpush1.msra.mxu0 0.0
          %2232 = vmatprep.subr.mxu0 0.0
          %2233 = vmatpush1.msra.mxu0 0.0
          %2234 = vmatprep.subr.mxu0 0.0
          %2235 = vmatpush1.msra.mxu0 0.0
          %2236 = vmatprep.subr.mxu0 0.0
          %2237 = vmatpush1.msra.mxu0 0.0
          %2238 = vmatprep.subr.mxu0 0.0
          %2239 = vmatpush1.msra.mxu0 0.0
          %2240 = vmatprep.subr.mxu0 0.0
          %2241 = vmatpush1.msra.mxu0 0.0
          %2242 = vmatprep.subr.mxu0 0.0
          %2243 = vmatpush1.msra.mxu0 0.0
          %2244 = vmatprep.subr.mxu0 0.0
          %2245 = vmatpush1.msra.mxu0 0.0
          %2246 = vmatprep.subr.mxu0 0.0
          %2247 = vmatpush1.msra.mxu0 0.0
          %2248 = vmatprep.subr.mxu0 0.0
          %2249 = vmatpush1.msra.mxu0 0.0
          %2250 = vmatprep.subr.mxu0 0.0
          %2251 = vmatpush1.msra.mxu0 0.0
          %2252 = vmatprep.subr.mxu0 0.0
          %2253 = vmatpush1.msra.mxu0 0.0
          %2254 = vmatprep.subr.mxu0 0.0
          %2255 = vmatpush1.msra.mxu0 0.0
          %2256 = vmatprep.mubr.f32.mxu0 0.0
          %2257 = vmatmul.mubr.f32.gmra.mrb[0].mxu0 %v2190
          %v2258 = vpop.f32.mrb[0].mxu0
          %v2259 = vadd.f32 0.0, %v2258
          %v2260 = vpop.f32.mrb[0].mxu0
          %2261 = vdwg.mxu0
          %2262 = vst.msk [vmem:[%s369] sm:$0xff] %vm2188, %v2259
        $region72: #{tpu_custom_call.1} parent=39 // pred_fallthru
          _
        %s2263 = sand.u32 %s181, 1
        %s2264 = scalar_lea.sflag [#allocation8], %s2263
        %s2265 = sand.u32 %s181, 1
        %s2266 = smul.addr %s2265, 8
        %s2267 = scalar_lea.vmem [#allocation15], %s2266
        // Predicated region
        $region73: #{tpu_custom_call.1} parent=39 // pred_check
          %p2268 = pneg %p191
        $region74: #{tpu_custom_call.1} parent=39 // pred_check_branch
          %2270 = sbr.rel (%p2268) target = $region76
        $region75: #{tpu_custom_call.1} parent=39 // pred_region
          %s2272 = ssub.s32 128, 128
          %2273 = vsyncadd %s2264, %s2272
          %s2274 = sadd.s32 %s32, %s31
          %s2275 = smul.addr %s2274, 128
          %s2276 = scalar_lea.hbm %s5, %s2275
          %s2278 = sshll.u32 %s2267, 4
          %s2279 = int_to_ptr.vmem [resolvable:$true] %s2278
          %2281 = dma.vmem_to_hbm [thread:$0]  %s2279, 128, %s2276, %s2264
        $region76: #{tpu_custom_call.1} parent=39 // pred_fallthru
          _
      $region40: #{tpu_custom_call.1} parent=5 // pred_fallthru
        _
      %p2282 = scmp.le.s32.totalorder 2, %s21
      // Predicated region
      $region77: #{tpu_custom_call.1} parent=5 // pred_check
        %p2283 = pneg %p2282
      $region78: #{tpu_custom_call.1} parent=5 // pred_check_branch
        %2285 = sbr.rel (%p2283) target = $region80
      $region79: #{tpu_custom_call.1} parent=5 // pred_region
        %s2286 = ssub.s32 %s21, 2
        // Predicated region
        $region81: #{tpu_custom_call.1} parent=79 // pred_check
          %p2287 = pneg %p197
        $region82: #{tpu_custom_call.1} parent=79 // pred_check_branch
          %2289 = sbr.rel (%p2287) target = $region84
        $region83: #{tpu_custom_call.1} parent=79 // pred_region
          %s2290 = sand.u32 %s182, 1
          %s2291 = scalar_lea.sflag [#allocation8], %s2290
          %s2292 = sand.u32 %s182, 1
          %s2293 = smul.addr %s2292, 8
          %s2294 = scalar_lea.vmem [#allocation15], %s2293
          %2295 = dma.done %s2291, 128
        $region84: #{tpu_custom_call.1} parent=79 // pred_fallthru
          _
      $region80: #{tpu_custom_call.1} parent=5 // pred_fallthru
        _
    $region6: #{tpu_custom_call.1} parent=1 // loop_footer
      %s25 = sadd.s32 1, %s21
    $region7: #{tpu_custom_call.1} parent=1 // loop_footer_branch
      %20 = sbr.rel target = $region3
    $region8: #{tpu_custom_call.1} parent=1 // loop_exit
      _
    %2296 = vsyncpa [#allocation7], 1
    %s2297 = scalar_lea.sflag [#allocation7], 1
    %2298 = vsyncpa %s2297, 1
    %2299 = vsyncpa [#allocation10], 1
    %s2300 = scalar_lea.sflag [#allocation10], 1
    %2301 = vsyncpa %s2300, 1
    %2302 = vsyncpa [#allocation13], 1
    %2303 = vsyncpa [#allocation8], 1
    %s2304 = scalar_lea.sflag [#allocation8], 1
    %2305 = vsyncpa %s2304, 1

</llo_original>
